<compile_context>
chip_gen: v7x
topology: tpu7x:2x2x1
jax: 0.10.0
libtpu: 0.0.40
codegen_flags: <defaults>
</compile_context>

<pallas_src>
import jax
import jax.numpy as jnp
from jax import lax
from jax.experimental import pallas as pl
from jax.experimental.pallas import tpu as pltpu

LATENT_DIM = 20
LATENT_PAD = 32            # 8-aligned K for the first matmul
OUT_DIM = 784
OUT_PAD = 896              # 7 * 128 -> lane-dense final output
DIMS = [LATENT_DIM, 128, 256, 512, 1024, OUT_DIM]
BN_EPS = 1e-5
LRELU_SLOPE = 0.2


def _leaky_relu(x):
    return jnp.where(x > 0, x, LRELU_SLOPE * x)


def _batch_norm(x, gamma, beta):
    """Training-mode BatchNorm1d (biased batch variance), single-pass stats."""
    n = x.shape[0]
    inv_n = 1.0 / n
    s = jnp.sum(x, axis=0, keepdims=True)
    ss = jnp.sum(x * x, axis=0, keepdims=True)
    mu = s * inv_n
    var = jnp.maximum(ss * inv_n - mu * mu, 0.0)
    return (x - mu) * lax.rsqrt(var + BN_EPS) * gamma + beta


def _bf16_dot(x_f32, w_bf16, bias_f32):
    """bf16 x bf16 -> f32 MXU matmul, plus f32 bias."""
    return jnp.dot(x_f32.astype(jnp.bfloat16), w_bf16,
                   preferred_element_type=jnp.float32) + bias_f32


def generator_kernel(z_ref,
                     b1_ref, b2_ref, g2_ref, be2_ref,
                     b3_ref, g3_ref, be3_ref,
                     b4_ref, g4_ref, be4_ref,
                     b5_ref,
                     w1_hbm, w2_hbm, w3_hbm, w4_hbm, w5_hbm,
                     out_ref,
                     w1_v, w2_v, w3_v, w4_v, w5_v,
                     dma_sems):
    # Kick off all weight DMAs immediately; wait for each one only right
    # before its layer so later-layer DMA overlaps earlier-layer compute.
    copies = []
    for i, (hbm, vmem) in enumerate([(w1_hbm, w1_v), (w2_hbm, w2_v),
                                     (w3_hbm, w3_v), (w4_hbm, w4_v),
                                     (w5_hbm, w5_v)]):
        cp = pltpu.make_async_copy(hbm, vmem, dma_sems.at[i])
        cp.start()
        copies.append(cp)

    x = z_ref[...]                                   # (B, 32) f32, zero-padded

    # Layer 1: Linear + LeakyReLU
    copies[0].wait()
    h = _leaky_relu(_bf16_dot(x, w1_v[...], b1_ref[...]))

    # Layer 2: Linear + BatchNorm + LeakyReLU
    copies[1].wait()
    h = _bf16_dot(h, w2_v[...], b2_ref[...])
    h = _leaky_relu(_batch_norm(h, g2_ref[...], be2_ref[...]))

    # Layer 3: Linear + BatchNorm + LeakyReLU
    copies[2].wait()
    h = _bf16_dot(h, w3_v[...], b3_ref[...])
    h = _leaky_relu(_batch_norm(h, g3_ref[...], be3_ref[...]))

    # Layer 4: Linear + BatchNorm + LeakyReLU
    copies[3].wait()
    h = _bf16_dot(h, w4_v[...], b4_ref[...])
    h = _leaky_relu(_batch_norm(h, g4_ref[...], be4_ref[...]))

    # Layer 5: Linear + Tanh (lane-dense padded width 896; padding is all-zero)
    copies[4].wait()
    h = _bf16_dot(h, w5_v[...], b5_ref[...])
    out_ref[...] = jnp.tanh(h)


def init_params(key):
    """Deterministic f32 params matching the PyTorch module's __init__.

    Weights are stored transposed as (d_in, d_out) so the kernel computes
    x @ W; xavier_uniform bound is symmetric in (fan_in, fan_out) so the
    distribution is identical to the PyTorch (d_out, d_in) init.
    """
    params = []
    keys = jax.random.split(key, len(DIMS) - 1)
    for li, (d_in, d_out) in enumerate(zip(DIMS[:-1], DIMS[1:])):
        bound = (6.0 / (d_in + d_out)) ** 0.5
        w = jax.random.uniform(keys[li], (d_in, d_out), jnp.float32, -bound, bound)
        b = jnp.full((1, d_out), 0.01, jnp.float32)          # bias.data.fill_(0.01)
        params.append(w)
        params.append(b)
        # BatchNorm1d follows hidden layers 2..4 (dims 256, 512, 1024).
        if 1 <= li <= 3:
            params.append(jnp.ones((1, d_out), jnp.float32))   # gamma
            params.append(jnp.zeros((1, d_out), jnp.float32))  # beta
    return params


def prepare_params(params_f32):
    """One-time conversion: bf16 weights, K-pad W1 (20->32), N-pad layer 5 (784->896)."""
    (w1, b1, w2, b2, g2, be2,
     w3, b3, g3, be3,
     w4, b4, g4, be4,
     w5, b5) = params_f32
    w1p = jnp.pad(w1, ((0, LATENT_PAD - LATENT_DIM), (0, 0))).astype(jnp.bfloat16)
    w5p = jnp.pad(w5, ((0, 0), (0, OUT_PAD - OUT_DIM))).astype(jnp.bfloat16)
    b5p = jnp.pad(b5, ((0, 0), (0, OUT_PAD - OUT_DIM)))
    return dict(
        w1=w1p, w2=w2.astype(jnp.bfloat16), w3=w3.astype(jnp.bfloat16),
        w4=w4.astype(jnp.bfloat16), w5=w5p,
        b1=b1, b2=b2, b3=b3, b4=b4, b5=b5p,
        g2=g2, be2=be2, g3=g3, be3=be3, g4=g4, be4=be4,
    )


def generator_forward(z, kp):
    batch = z.shape[0]
    z_pad = jnp.pad(z, ((0, 0), (0, LATENT_PAD - z.shape[1])))

    vmem = pl.BlockSpec(memory_space=pltpu.MemorySpace.VMEM)
    hbm = pl.BlockSpec(memory_space=pl.ANY)      # weights stay in HBM; manual DMA

    small = (kp["b1"],
             kp["b2"], kp["g2"], kp["be2"],
             kp["b3"], kp["g3"], kp["be3"],
             kp["b4"], kp["g4"], kp["be4"],
             kp["b5"])
    weights = (kp["w1"], kp["w2"], kp["w3"], kp["w4"], kp["w5"])

    out = pl.pallas_call(
        generator_kernel,
        out_shape=jax.ShapeDtypeStruct((batch, OUT_PAD), jnp.float32),
        in_specs=[vmem] * (1 + len(small)) + [hbm] * len(weights),
        out_specs=vmem,
        scratch_shapes=[
            pltpu.VMEM((LATENT_PAD, 128), jnp.bfloat16),
            pltpu.VMEM((128, 256), jnp.bfloat16),
            pltpu.VMEM((256, 512), jnp.bfloat16),
            pltpu.VMEM((512, 1024), jnp.bfloat16),
            pltpu.VMEM((1024, OUT_PAD), jnp.bfloat16),
            pltpu.SemaphoreType.DMA((5,)),
        ],
        compiler_params=pltpu.CompilerParams(vmem_limit_bytes=32 << 20),
    )(z_pad, *small, *weights)
    return out[:, :OUT_DIM]


def reference_forward(z, params_f32, bf16_weights):
    """Pure-JAX reference. bf16_weights=True mirrors the kernel's precision."""
    (w1, b1, w2, b2, g2, be2,
     w3, b3, g3, be3,
     w4, b4, g4, be4,
     w5, b5) = params_f32

    def dot(x, w):
        if bf16_weights:
            return jnp.dot(x.astype(jnp.bfloat16), w.astype(jnp.bfloat16),
                           preferred_element_type=jnp.float32)
        return jnp.dot(x, w, preferred_element_type=jnp.float32)

    h = _leaky_relu(dot(z, w1) + b1)
    h = _leaky_relu(_batch_norm(dot(h, w2) + b2, g2, be2))
    h = _leaky_relu(_batch_norm(dot(h, w3) + b3, g3, be3))
    h = _leaky_relu(_batch_norm(dot(h, w4) + b4, g4, be4))
    return jnp.tanh(dot(h, w5) + b5)


if __name__ == "__main__":
    key = jax.random.PRNGKey(0)
    k_param, k_z = jax.random.split(key)

    batch = 32   # small demo batch (multiple of 8; BatchNorm1d requires batch > 1)
    params_f32 = init_params(k_param)
    kernel_params = prepare_params(params_f32)
    z = jax.random.normal(k_z, (batch, LATENT_DIM), jnp.float32)

    out = jax.block_until_ready(generator_forward(z, kernel_params))
    assert out.shape == (batch, OUT_DIM), out.shape

    # Tight check vs a reference that mirrors the kernel's bf16-weight matmuls.
    ref_mirror = reference_forward(z, params_f32, bf16_weights=True)
    err_m = float(jnp.max(jnp.abs(out - ref_mirror)))
    assert jnp.allclose(out, ref_mirror, atol=2e-3, rtol=2e-3), err_m

    # Loose check vs the pure-f32 reference (bf16 weights => ~1e-2 rel error).
    ref_f32 = reference_forward(z, params_f32, bf16_weights=False)
    err_f = float(jnp.max(jnp.abs(out - ref_f32)))
    assert jnp.allclose(out, ref_f32, atol=5e-2, rtol=5e-2), err_f

    print("KERNEL_OK")
</pallas_src>

<mosaic_0001>
module attributes {stable_mosaic.version = 11 : i64} {
  func.func @generator_kernel(%arg0: memref<32x32xf32, #tpu.memory_space<vmem>>, %arg1: memref<1x128xf32, #tpu.memory_space<vmem>>, %arg2: memref<1x256xf32, #tpu.memory_space<vmem>>, %arg3: memref<1x256xf32, #tpu.memory_space<vmem>>, %arg4: memref<1x256xf32, #tpu.memory_space<vmem>>, %arg5: memref<1x512xf32, #tpu.memory_space<vmem>>, %arg6: memref<1x512xf32, #tpu.memory_space<vmem>>, %arg7: memref<1x512xf32, #tpu.memory_space<vmem>>, %arg8: memref<1x1024xf32, #tpu.memory_space<vmem>>, %arg9: memref<1x1024xf32, #tpu.memory_space<vmem>>, %arg10: memref<1x1024xf32, #tpu.memory_space<vmem>>, %arg11: memref<1x896xf32, #tpu.memory_space<vmem>>, %arg12: memref<32x128xbf16, #tpu.memory_space<any>>, %arg13: memref<128x256xbf16, #tpu.memory_space<any>>, %arg14: memref<256x512xbf16, #tpu.memory_space<any>>, %arg15: memref<512x1024xbf16, #tpu.memory_space<any>>, %arg16: memref<1024x896xbf16, #tpu.memory_space<any>>, %arg17: memref<32x896xf32, #tpu.memory_space<vmem>>, %arg18: memref<32x128xbf16, #tpu.memory_space<vmem>>, %arg19: memref<128x256xbf16, #tpu.memory_space<vmem>>, %arg20: memref<256x512xbf16, #tpu.memory_space<vmem>>, %arg21: memref<512x1024xbf16, #tpu.memory_space<vmem>>, %arg22: memref<1024x896xbf16, #tpu.memory_space<vmem>>, %arg23: memref<5x!tpu.dma_semaphore, #tpu.memory_space<semaphore_mem>>) attributes {dimension_semantics = [], scalar_prefetch = 0 : i64, scratch_operands = 6 : i64, tpu.core_type = #tpu.core_type<tc>} {
    %c0_i32 = arith.constant 0 : i32
    %0 = tpu.memref_slice %arg23[%c0_i32] : memref<5x!tpu.dma_semaphore, #tpu.memory_space<semaphore_mem>> -> memref<1x!tpu.dma_semaphore, #tpu.memory_space<semaphore_mem>>
    %1 = tpu.memref_squeeze %0 : memref<1x!tpu.dma_semaphore, #tpu.memory_space<semaphore_mem>> -> memref<!tpu.dma_semaphore, #tpu.memory_space<semaphore_mem>>
    tpu.enqueue_dma source(%arg12 : memref<32x128xbf16, #tpu.memory_space<any>>) target(%arg18 : memref<32x128xbf16, #tpu.memory_space<vmem>>) target_semaphore(%1 : memref<!tpu.dma_semaphore, #tpu.memory_space<semaphore_mem>>)
    %c1_i32 = arith.constant 1 : i32
    %2 = tpu.memref_slice %arg23[%c1_i32] : memref<5x!tpu.dma_semaphore, #tpu.memory_space<semaphore_mem>> -> memref<1x!tpu.dma_semaphore, #tpu.memory_space<semaphore_mem>>
    %3 = tpu.memref_squeeze %2 : memref<1x!tpu.dma_semaphore, #tpu.memory_space<semaphore_mem>> -> memref<!tpu.dma_semaphore, #tpu.memory_space<semaphore_mem>>
    tpu.enqueue_dma source(%arg13 : memref<128x256xbf16, #tpu.memory_space<any>>) target(%arg19 : memref<128x256xbf16, #tpu.memory_space<vmem>>) target_semaphore(%3 : memref<!tpu.dma_semaphore, #tpu.memory_space<semaphore_mem>>)
    %c2_i32 = arith.constant 2 : i32
    %4 = tpu.memref_slice %arg23[%c2_i32] : memref<5x!tpu.dma_semaphore, #tpu.memory_space<semaphore_mem>> -> memref<1x!tpu.dma_semaphore, #tpu.memory_space<semaphore_mem>>
    %5 = tpu.memref_squeeze %4 : memref<1x!tpu.dma_semaphore, #tpu.memory_space<semaphore_mem>> -> memref<!tpu.dma_semaphore, #tpu.memory_space<semaphore_mem>>
    tpu.enqueue_dma source(%arg14 : memref<256x512xbf16, #tpu.memory_space<any>>) target(%arg20 : memref<256x512xbf16, #tpu.memory_space<vmem>>) target_semaphore(%5 : memref<!tpu.dma_semaphore, #tpu.memory_space<semaphore_mem>>)
    %c3_i32 = arith.constant 3 : i32
    %6 = tpu.memref_slice %arg23[%c3_i32] : memref<5x!tpu.dma_semaphore, #tpu.memory_space<semaphore_mem>> -> memref<1x!tpu.dma_semaphore, #tpu.memory_space<semaphore_mem>>
    %7 = tpu.memref_squeeze %6 : memref<1x!tpu.dma_semaphore, #tpu.memory_space<semaphore_mem>> -> memref<!tpu.dma_semaphore, #tpu.memory_space<semaphore_mem>>
    tpu.enqueue_dma source(%arg15 : memref<512x1024xbf16, #tpu.memory_space<any>>) target(%arg21 : memref<512x1024xbf16, #tpu.memory_space<vmem>>) target_semaphore(%7 : memref<!tpu.dma_semaphore, #tpu.memory_space<semaphore_mem>>)
    %c4_i32 = arith.constant 4 : i32
    %8 = tpu.memref_slice %arg23[%c4_i32] : memref<5x!tpu.dma_semaphore, #tpu.memory_space<semaphore_mem>> -> memref<1x!tpu.dma_semaphore, #tpu.memory_space<semaphore_mem>>
    %9 = tpu.memref_squeeze %8 : memref<1x!tpu.dma_semaphore, #tpu.memory_space<semaphore_mem>> -> memref<!tpu.dma_semaphore, #tpu.memory_space<semaphore_mem>>
    tpu.enqueue_dma source(%arg16 : memref<1024x896xbf16, #tpu.memory_space<any>>) target(%arg22 : memref<1024x896xbf16, #tpu.memory_space<vmem>>) target_semaphore(%9 : memref<!tpu.dma_semaphore, #tpu.memory_space<semaphore_mem>>)
    %c0 = arith.constant 0 : index
    %c0_0 = arith.constant 0 : index
    %10 = vector.load %arg0[%c0, %c0_0] : memref<32x32xf32, #tpu.memory_space<vmem>>, vector<32x32xf32>
    %c0_i32_1 = arith.constant 0 : i32
    %11 = tpu.memref_slice %arg23[%c0_i32_1] : memref<5x!tpu.dma_semaphore, #tpu.memory_space<semaphore_mem>> -> memref<1x!tpu.dma_semaphore, #tpu.memory_space<semaphore_mem>>
    %12 = tpu.memref_squeeze %11 : memref<1x!tpu.dma_semaphore, #tpu.memory_space<semaphore_mem>> -> memref<!tpu.dma_semaphore, #tpu.memory_space<semaphore_mem>>
    tpu.wait_dma2 semaphore(%12 : memref<!tpu.dma_semaphore, #tpu.memory_space<semaphore_mem>>) src(%arg12 : memref<32x128xbf16, #tpu.memory_space<any>>) dst(%arg18 : memref<32x128xbf16, #tpu.memory_space<vmem>>)
    %c0_2 = arith.constant 0 : index
    %c0_3 = arith.constant 0 : index
    %13 = vector.load %arg18[%c0_2, %c0_3] : memref<32x128xbf16, #tpu.memory_space<vmem>>, vector<32x128xbf16>
    %c0_4 = arith.constant 0 : index
    %c0_5 = arith.constant 0 : index
    %14 = vector.load %arg1[%c0_4, %c0_5] : memref<1x128xf32, #tpu.memory_space<vmem>>, vector<1x128xf32>
    %15 = arith.truncf %10 : vector<32x32xf32> to vector<32x32xbf16>
    %cst = arith.constant dense<0.000000e+00> : vector<32x128xf32>
    %16 = tpu.matmul %15, %13, %cst {dimension_numbers = #tpu.dot_dimension_numbers<[1], [0], [0], [1], [0, 0, 1, 1], [], []>} : vector<32x32xbf16>, vector<32x128xbf16>, vector<32x128xf32> -> vector<32x128xf32>
    %17 = vector.broadcast %14 : vector<1x128xf32> to vector<32x128xf32>
    %18 = arith.addf %16, %17 : vector<32x128xf32>
    %cst_6 = arith.constant 0.000000e+00 : f32
    %19 = vector.broadcast %cst_6 : f32 to vector<32x128xf32>
    %20 = arith.cmpf ogt, %18, %19 : vector<32x128xf32>
    %cst_7 = arith.constant 2.000000e-01 : f32
    %21 = vector.broadcast %cst_7 : f32 to vector<32x128xf32>
    %22 = arith.mulf %21, %18 : vector<32x128xf32>
    %23 = arith.select %20, %18, %22 : vector<32x128xi1>, vector<32x128xf32>
    %c1_i32_8 = arith.constant 1 : i32
    %24 = tpu.memref_slice %arg23[%c1_i32_8] : memref<5x!tpu.dma_semaphore, #tpu.memory_space<semaphore_mem>> -> memref<1x!tpu.dma_semaphore, #tpu.memory_space<semaphore_mem>>
    %25 = tpu.memref_squeeze %24 : memref<1x!tpu.dma_semaphore, #tpu.memory_space<semaphore_mem>> -> memref<!tpu.dma_semaphore, #tpu.memory_space<semaphore_mem>>
    tpu.wait_dma2 semaphore(%25 : memref<!tpu.dma_semaphore, #tpu.memory_space<semaphore_mem>>) src(%arg13 : memref<128x256xbf16, #tpu.memory_space<any>>) dst(%arg19 : memref<128x256xbf16, #tpu.memory_space<vmem>>)
    %c0_9 = arith.constant 0 : index
    %c0_10 = arith.constant 0 : index
    %26 = vector.load %arg19[%c0_9, %c0_10] : memref<128x256xbf16, #tpu.memory_space<vmem>>, vector<128x256xbf16>
    %c0_11 = arith.constant 0 : index
    %c0_12 = arith.constant 0 : index
    %27 = vector.load %arg2[%c0_11, %c0_12] : memref<1x256xf32, #tpu.memory_space<vmem>>, vector<1x256xf32>
    %28 = arith.truncf %23 : vector<32x128xf32> to vector<32x128xbf16>
    %cst_13 = arith.constant dense<0.000000e+00> : vector<32x256xf32>
    %29 = tpu.matmul %28, %26, %cst_13 {dimension_numbers = #tpu.dot_dimension_numbers<[1], [0], [0], [1], [0, 0, 1, 1], [], []>} : vector<32x128xbf16>, vector<128x256xbf16>, vector<32x256xf32> -> vector<32x256xf32>
    %30 = vector.broadcast %27 : vector<1x256xf32> to vector<32x256xf32>
    %31 = arith.addf %29, %30 : vector<32x256xf32>
    %c0_14 = arith.constant 0 : index
    %c0_15 = arith.constant 0 : index
    %32 = vector.load %arg3[%c0_14, %c0_15] : memref<1x256xf32, #tpu.memory_space<vmem>>, vector<1x256xf32>
    %c0_16 = arith.constant 0 : index
    %c0_17 = arith.constant 0 : index
    %33 = vector.load %arg4[%c0_16, %c0_17] : memref<1x256xf32, #tpu.memory_space<vmem>>, vector<1x256xf32>
    %cst_18 = arith.constant dense<0.000000e+00> : vector<256xf32>
    %34 = vector.multi_reduction <add>, %31, %cst_18 [0] : vector<32x256xf32> to vector<256xf32>
    %35 = vector.shape_cast %34 : vector<256xf32> to vector<1x256xf32>
    %36 = arith.mulf %31, %31 : vector<32x256xf32>
    %cst_19 = arith.constant dense<0.000000e+00> : vector<256xf32>
    %37 = vector.multi_reduction <add>, %36, %cst_19 [0] : vector<32x256xf32> to vector<256xf32>
    %38 = vector.shape_cast %37 : vector<256xf32> to vector<1x256xf32>
    %cst_20 = arith.constant 3.125000e-02 : f32
    %39 = vector.broadcast %cst_20 : f32 to vector<1x256xf32>
    %40 = arith.mulf %35, %39 : vector<1x256xf32>
    %cst_21 = arith.constant 3.125000e-02 : f32
    %41 = vector.broadcast %cst_21 : f32 to vector<1x256xf32>
    %42 = arith.mulf %38, %41 : vector<1x256xf32>
    %43 = arith.mulf %40, %40 : vector<1x256xf32>
    %44 = arith.subf %42, %43 : vector<1x256xf32>
    %cst_22 = arith.constant 0.000000e+00 : f32
    %45 = vector.broadcast %cst_22 : f32 to vector<1x256xf32>
    %46 = arith.maximumf %44, %45 : vector<1x256xf32>
    %47 = vector.broadcast %40 : vector<1x256xf32> to vector<32x256xf32>
    %48 = arith.subf %31, %47 : vector<32x256xf32>
    %cst_23 = arith.constant 9.99999974E-6 : f32
    %49 = vector.broadcast %cst_23 : f32 to vector<1x256xf32>
    %50 = arith.addf %46, %49 : vector<1x256xf32>
    %51 = math.rsqrt %50 : vector<1x256xf32>
    %52 = vector.broadcast %51 : vector<1x256xf32> to vector<32x256xf32>
    %53 = arith.mulf %48, %52 : vector<32x256xf32>
    %54 = vector.broadcast %32 : vector<1x256xf32> to vector<32x256xf32>
    %55 = arith.mulf %53, %54 : vector<32x256xf32>
    %56 = vector.broadcast %33 : vector<1x256xf32> to vector<32x256xf32>
    %57 = arith.addf %55, %56 : vector<32x256xf32>
    %cst_24 = arith.constant 0.000000e+00 : f32
    %58 = vector.broadcast %cst_24 : f32 to vector<32x256xf32>
    %59 = arith.cmpf ogt, %57, %58 : vector<32x256xf32>
    %cst_25 = arith.constant 2.000000e-01 : f32
    %60 = vector.broadcast %cst_25 : f32 to vector<32x256xf32>
    %61 = arith.mulf %60, %57 : vector<32x256xf32>
    %62 = arith.select %59, %57, %61 : vector<32x256xi1>, vector<32x256xf32>
    %c2_i32_26 = arith.constant 2 : i32
    %63 = tpu.memref_slice %arg23[%c2_i32_26] : memref<5x!tpu.dma_semaphore, #tpu.memory_space<semaphore_mem>> -> memref<1x!tpu.dma_semaphore, #tpu.memory_space<semaphore_mem>>
    %64 = tpu.memref_squeeze %63 : memref<1x!tpu.dma_semaphore, #tpu.memory_space<semaphore_mem>> -> memref<!tpu.dma_semaphore, #tpu.memory_space<semaphore_mem>>
    tpu.wait_dma2 semaphore(%64 : memref<!tpu.dma_semaphore, #tpu.memory_space<semaphore_mem>>) src(%arg14 : memref<256x512xbf16, #tpu.memory_space<any>>) dst(%arg20 : memref<256x512xbf16, #tpu.memory_space<vmem>>)
    %c0_27 = arith.constant 0 : index
    %c0_28 = arith.constant 0 : index
    %65 = vector.load %arg20[%c0_27, %c0_28] : memref<256x512xbf16, #tpu.memory_space<vmem>>, vector<256x512xbf16>
    %c0_29 = arith.constant 0 : index
    %c0_30 = arith.constant 0 : index
    %66 = vector.load %arg5[%c0_29, %c0_30] : memref<1x512xf32, #tpu.memory_space<vmem>>, vector<1x512xf32>
    %67 = arith.truncf %62 : vector<32x256xf32> to vector<32x256xbf16>
    %cst_31 = arith.constant dense<0.000000e+00> : vector<32x512xf32>
    %68 = tpu.matmul %67, %65, %cst_31 {dimension_numbers = #tpu.dot_dimension_numbers<[1], [0], [0], [1], [0, 0, 1, 1], [], []>} : vector<32x256xbf16>, vector<256x512xbf16>, vector<32x512xf32> -> vector<32x512xf32>
    %69 = vector.broadcast %66 : vector<1x512xf32> to vector<32x512xf32>
    %70 = arith.addf %68, %69 : vector<32x512xf32>
    %c0_32 = arith.constant 0 : index
    %c0_33 = arith.constant 0 : index
    %71 = vector.load %arg6[%c0_32, %c0_33] : memref<1x512xf32, #tpu.memory_space<vmem>>, vector<1x512xf32>
    %c0_34 = arith.constant 0 : index
    %c0_35 = arith.constant 0 : index
    %72 = vector.load %arg7[%c0_34, %c0_35] : memref<1x512xf32, #tpu.memory_space<vmem>>, vector<1x512xf32>
    %cst_36 = arith.constant dense<0.000000e+00> : vector<512xf32>
    %73 = vector.multi_reduction <add>, %70, %cst_36 [0] : vector<32x512xf32> to vector<512xf32>
    %74 = vector.shape_cast %73 : vector<512xf32> to vector<1x512xf32>
    %75 = arith.mulf %70, %70 : vector<32x512xf32>
    %cst_37 = arith.constant dense<0.000000e+00> : vector<512xf32>
    %76 = vector.multi_reduction <add>, %75, %cst_37 [0] : vector<32x512xf32> to vector<512xf32>
    %77 = vector.shape_cast %76 : vector<512xf32> to vector<1x512xf32>
    %cst_38 = arith.constant 3.125000e-02 : f32
    %78 = vector.broadcast %cst_38 : f32 to vector<1x512xf32>
    %79 = arith.mulf %74, %78 : vector<1x512xf32>
    %cst_39 = arith.constant 3.125000e-02 : f32
    %80 = vector.broadcast %cst_39 : f32 to vector<1x512xf32>
    %81 = arith.mulf %77, %80 : vector<1x512xf32>
    %82 = arith.mulf %79, %79 : vector<1x512xf32>
    %83 = arith.subf %81, %82 : vector<1x512xf32>
    %cst_40 = arith.constant 0.000000e+00 : f32
    %84 = vector.broadcast %cst_40 : f32 to vector<1x512xf32>
    %85 = arith.maximumf %83, %84 : vector<1x512xf32>
    %86 = vector.broadcast %79 : vector<1x512xf32> to vector<32x512xf32>
    %87 = arith.subf %70, %86 : vector<32x512xf32>
    %cst_41 = arith.constant 9.99999974E-6 : f32
    %88 = vector.broadcast %cst_41 : f32 to vector<1x512xf32>
    %89 = arith.addf %85, %88 : vector<1x512xf32>
    %90 = math.rsqrt %89 : vector<1x512xf32>
    %91 = vector.broadcast %90 : vector<1x512xf32> to vector<32x512xf32>
    %92 = arith.mulf %87, %91 : vector<32x512xf32>
    %93 = vector.broadcast %71 : vector<1x512xf32> to vector<32x512xf32>
    %94 = arith.mulf %92, %93 : vector<32x512xf32>
    %95 = vector.broadcast %72 : vector<1x512xf32> to vector<32x512xf32>
    %96 = arith.addf %94, %95 : vector<32x512xf32>
    %cst_42 = arith.constant 0.000000e+00 : f32
    %97 = vector.broadcast %cst_42 : f32 to vector<32x512xf32>
    %98 = arith.cmpf ogt, %96, %97 : vector<32x512xf32>
    %cst_43 = arith.constant 2.000000e-01 : f32
    %99 = vector.broadcast %cst_43 : f32 to vector<32x512xf32>
    %100 = arith.mulf %99, %96 : vector<32x512xf32>
    %101 = arith.select %98, %96, %100 : vector<32x512xi1>, vector<32x512xf32>
    %c3_i32_44 = arith.constant 3 : i32
    %102 = tpu.memref_slice %arg23[%c3_i32_44] : memref<5x!tpu.dma_semaphore, #tpu.memory_space<semaphore_mem>> -> memref<1x!tpu.dma_semaphore, #tpu.memory_space<semaphore_mem>>
    %103 = tpu.memref_squeeze %102 : memref<1x!tpu.dma_semaphore, #tpu.memory_space<semaphore_mem>> -> memref<!tpu.dma_semaphore, #tpu.memory_space<semaphore_mem>>
    tpu.wait_dma2 semaphore(%103 : memref<!tpu.dma_semaphore, #tpu.memory_space<semaphore_mem>>) src(%arg15 : memref<512x1024xbf16, #tpu.memory_space<any>>) dst(%arg21 : memref<512x1024xbf16, #tpu.memory_space<vmem>>)
    %c0_45 = arith.constant 0 : index
    %c0_46 = arith.constant 0 : index
    %104 = vector.load %arg21[%c0_45, %c0_46] : memref<512x1024xbf16, #tpu.memory_space<vmem>>, vector<512x1024xbf16>
    %c0_47 = arith.constant 0 : index
    %c0_48 = arith.constant 0 : index
    %105 = vector.load %arg8[%c0_47, %c0_48] : memref<1x1024xf32, #tpu.memory_space<vmem>>, vector<1x1024xf32>
    %106 = arith.truncf %101 : vector<32x512xf32> to vector<32x512xbf16>
    %cst_49 = arith.constant dense<0.000000e+00> : vector<32x1024xf32>
    %107 = tpu.matmul %106, %104, %cst_49 {dimension_numbers = #tpu.dot_dimension_numbers<[1], [0], [0], [1], [0, 0, 1, 1], [], []>} : vector<32x512xbf16>, vector<512x1024xbf16>, vector<32x1024xf32> -> vector<32x1024xf32>
    %108 = vector.broadcast %105 : vector<1x1024xf32> to vector<32x1024xf32>
    %109 = arith.addf %107, %108 : vector<32x1024xf32>
    %c0_50 = arith.constant 0 : index
    %c0_51 = arith.constant 0 : index
    %110 = vector.load %arg9[%c0_50, %c0_51] : memref<1x1024xf32, #tpu.memory_space<vmem>>, vector<1x1024xf32>
    %c0_52 = arith.constant 0 : index
    %c0_53 = arith.constant 0 : index
    %111 = vector.load %arg10[%c0_52, %c0_53] : memref<1x1024xf32, #tpu.memory_space<vmem>>, vector<1x1024xf32>
    %cst_54 = arith.constant dense<0.000000e+00> : vector<1024xf32>
    %112 = vector.multi_reduction <add>, %109, %cst_54 [0] : vector<32x1024xf32> to vector<1024xf32>
    %113 = vector.shape_cast %112 : vector<1024xf32> to vector<1x1024xf32>
    %114 = arith.mulf %109, %109 : vector<32x1024xf32>
    %cst_55 = arith.constant dense<0.000000e+00> : vector<1024xf32>
    %115 = vector.multi_reduction <add>, %114, %cst_55 [0] : vector<32x1024xf32> to vector<1024xf32>
    %116 = vector.shape_cast %115 : vector<1024xf32> to vector<1x1024xf32>
    %cst_56 = arith.constant 3.125000e-02 : f32
    %117 = vector.broadcast %cst_56 : f32 to vector<1x1024xf32>
    %118 = arith.mulf %113, %117 : vector<1x1024xf32>
    %cst_57 = arith.constant 3.125000e-02 : f32
    %119 = vector.broadcast %cst_57 : f32 to vector<1x1024xf32>
    %120 = arith.mulf %116, %119 : vector<1x1024xf32>
    %121 = arith.mulf %118, %118 : vector<1x1024xf32>
    %122 = arith.subf %120, %121 : vector<1x1024xf32>
    %cst_58 = arith.constant 0.000000e+00 : f32
    %123 = vector.broadcast %cst_58 : f32 to vector<1x1024xf32>
    %124 = arith.maximumf %122, %123 : vector<1x1024xf32>
    %125 = vector.broadcast %118 : vector<1x1024xf32> to vector<32x1024xf32>
    %126 = arith.subf %109, %125 : vector<32x1024xf32>
    %cst_59 = arith.constant 9.99999974E-6 : f32
    %127 = vector.broadcast %cst_59 : f32 to vector<1x1024xf32>
    %128 = arith.addf %124, %127 : vector<1x1024xf32>
    %129 = math.rsqrt %128 : vector<1x1024xf32>
    %130 = vector.broadcast %129 : vector<1x1024xf32> to vector<32x1024xf32>
    %131 = arith.mulf %126, %130 : vector<32x1024xf32>
    %132 = vector.broadcast %110 : vector<1x1024xf32> to vector<32x1024xf32>
    %133 = arith.mulf %131, %132 : vector<32x1024xf32>
    %134 = vector.broadcast %111 : vector<1x1024xf32> to vector<32x1024xf32>
    %135 = arith.addf %133, %134 : vector<32x1024xf32>
    %cst_60 = arith.constant 0.000000e+00 : f32
    %136 = vector.broadcast %cst_60 : f32 to vector<32x1024xf32>
    %137 = arith.cmpf ogt, %135, %136 : vector<32x1024xf32>
    %cst_61 = arith.constant 2.000000e-01 : f32
    %138 = vector.broadcast %cst_61 : f32 to vector<32x1024xf32>
    %139 = arith.mulf %138, %135 : vector<32x1024xf32>
    %140 = arith.select %137, %135, %139 : vector<32x1024xi1>, vector<32x1024xf32>
    %c4_i32_62 = arith.constant 4 : i32
    %141 = tpu.memref_slice %arg23[%c4_i32_62] : memref<5x!tpu.dma_semaphore, #tpu.memory_space<semaphore_mem>> -> memref<1x!tpu.dma_semaphore, #tpu.memory_space<semaphore_mem>>
    %142 = tpu.memref_squeeze %141 : memref<1x!tpu.dma_semaphore, #tpu.memory_space<semaphore_mem>> -> memref<!tpu.dma_semaphore, #tpu.memory_space<semaphore_mem>>
    tpu.wait_dma2 semaphore(%142 : memref<!tpu.dma_semaphore, #tpu.memory_space<semaphore_mem>>) src(%arg16 : memref<1024x896xbf16, #tpu.memory_space<any>>) dst(%arg22 : memref<1024x896xbf16, #tpu.memory_space<vmem>>)
    %c0_63 = arith.constant 0 : index
    %c0_64 = arith.constant 0 : index
    %143 = vector.load %arg22[%c0_63, %c0_64] : memref<1024x896xbf16, #tpu.memory_space<vmem>>, vector<1024x896xbf16>
    %c0_65 = arith.constant 0 : index
    %c0_66 = arith.constant 0 : index
    %144 = vector.load %arg11[%c0_65, %c0_66] : memref<1x896xf32, #tpu.memory_space<vmem>>, vector<1x896xf32>
    %145 = arith.truncf %140 : vector<32x1024xf32> to vector<32x1024xbf16>
    %cst_67 = arith.constant dense<0.000000e+00> : vector<32x896xf32>
    %146 = tpu.matmul %145, %143, %cst_67 {dimension_numbers = #tpu.dot_dimension_numbers<[1], [0], [0], [1], [0, 0, 1, 1], [], []>} : vector<32x1024xbf16>, vector<1024x896xbf16>, vector<32x896xf32> -> vector<32x896xf32>
    %147 = vector.broadcast %144 : vector<1x896xf32> to vector<32x896xf32>
    %148 = arith.addf %146, %147 : vector<32x896xf32>
    %149 = math.tanh %148 : vector<32x896xf32>
    %c0_68 = arith.constant 0 : index
    %c0_69 = arith.constant 0 : index
    %150 = vector.load %arg17[%c0_68, %c0_69] : memref<32x896xf32, #tpu.memory_space<vmem>>, vector<32x896xf32>
    tpu.vector_store %arg17[%c0_68, %c0_69], %149 {strides = array<i32>} : memref<32x896xf32, #tpu.memory_space<vmem>>, vector<32x896xf32>,
    return
  }
}

</mosaic_0001>

<llo_original>
// kernel: tpu_custom_call.1
$region0: #{tpu_custom_call.1}
  #allocation0 [shape = 'u32[]', space=smem, size = 0x4, offset = 0x4, fixed_abs, tag = 'smem constant byte address 0x4 - core index']
  #allocation1 [shape = 'u32[144,128]{1,0:T(1,128)}', space=vmem, size = 0x12000, scoped, tag = 'internal scratch']
  #allocation2 [shape = 'bf16[32,128]{1,0:T(16,128)(2,1)}', space=vmem, size = 0x2000, scoped, tag = 'scratch operand']
  #allocation3 [shape = 'bf16[128,256]{1,0:T(16,128)(2,1)}', space=vmem, size = 0x10000, scoped, tag = 'scratch operand']
  #allocation4 [shape = 'bf16[256,512]{1,0:T(16,128)(2,1)}', space=vmem, size = 0x40000, scoped, tag = 'scratch operand']
  #allocation5 [shape = 'bf16[512,1024]{1,0:T(16,128)(2,1)}', space=vmem, size = 0x100000, scoped, tag = 'scratch operand']
  #allocation6 [shape = 'bf16[1024,896]{1,0:T(16,128)(2,1)}', space=vmem, size = 0x1c0000, scoped, tag = 'scratch operand']
  #allocation7 [shape = 's32[5]{0}', space=sflag, size = 0x14, scoped, tag = 'scratch operand']
  #allocation29 [shape = 's32[]', space=sflag, size = 0x4, offset = 0, fixed_abs, tag = 'sflag constant byte address 0x0 - dummy sync flag']
  #allocation30 [shape = 's32[]', space=sflag, size = 0x4, offset = 0, fixed_abs, tag = 'sflag constant byte address 0x0 - dummy sync flag']
  #allocation31 [shape = 'u32[]', space=smem, size = 0x4, offset = 0x44, fixed_abs, tag = 'smem constant byte address 0x44 - assertion arg 0']
  #allocation32 [shape = 'u32[]', space=smem, size = 0x4, offset = 0x48, fixed_abs, tag = 'smem constant byte address 0x48 - assertion arg 1']
  #allocation33 [shape = 's32[]', space=sflag, size = 0x4, offset = 0, fixed_abs, tag = 'sflag constant byte address 0x0 - dummy sync flag']
  #allocation35 [shape = 's32[]', space=sflag, size = 0x4, offset = 0, fixed_abs, tag = 'sflag constant byte address 0x0 - dummy sync flag']
  #allocation37 [shape = 's32[]', space=sflag, size = 0x4, offset = 0, fixed_abs, tag = 'sflag constant byte address 0x0 - dummy sync flag']
  #allocation39 [shape = 's32[]', space=sflag, size = 0x4, offset = 0, fixed_abs, tag = 'sflag constant byte address 0x0 - dummy sync flag']
  %s0 = inlined_call_operand.hbm [shape: f32[32,32], index: 0, kind: input, shape index: {}]
  %s1 = inlined_call_operand.hbm [shape: f32[1,128], index: 1, kind: input, shape index: {}]
  %s2 = inlined_call_operand.hbm [shape: f32[1,256], index: 2, kind: input, shape index: {}]
  %s3 = inlined_call_operand.hbm [shape: f32[1,256], index: 3, kind: input, shape index: {}]
  %s4 = inlined_call_operand.hbm [shape: f32[1,256], index: 4, kind: input, shape index: {}]
  %s5 = inlined_call_operand.hbm [shape: f32[1,512], index: 5, kind: input, shape index: {}]
  %s6 = inlined_call_operand.hbm [shape: f32[1,512], index: 6, kind: input, shape index: {}]
  %s7 = inlined_call_operand.hbm [shape: f32[1,512], index: 7, kind: input, shape index: {}]
  %s8 = inlined_call_operand.hbm [shape: f32[1,1024], index: 8, kind: input, shape index: {}]
  %s9 = inlined_call_operand.hbm [shape: f32[1,1024], index: 9, kind: input, shape index: {}]
  %s10 = inlined_call_operand.hbm [shape: f32[1,1024], index: 10, kind: input, shape index: {}]
  %s11 = inlined_call_operand.hbm [shape: f32[1,896], index: 11, kind: input, shape index: {}]
  %s12 = inlined_call_operand.hbm [shape: bf16[32,128], index: 12, kind: input, shape index: {}]
  %s13 = inlined_call_operand.hbm [shape: bf16[128,256], index: 13, kind: input, shape index: {}]
  %s14 = inlined_call_operand.hbm [shape: bf16[256,512], index: 14, kind: input, shape index: {}]
  %s15 = inlined_call_operand.hbm [shape: bf16[512,1024], index: 15, kind: input, shape index: {}]
  %s16 = inlined_call_operand.hbm [shape: bf16[1024,896], index: 16, kind: input, shape index: {}]
  %s17 = inlined_call_operand.hbm [shape: f32[32,896], index: 17, kind: output, shape index: {}]
  %s18 = sld [smem:[#allocation0]]
  $region110: #{tpu_custom_call.1} parent=0
    _
  %s20 = ssub.s32 1, %s18
  %s21 = scalar_select 0, %s20, %s18
  $region1: #{tpu_custom_call.1} parent=0
    #allocation8 [shape = 'u8[16384]{0}', space=vmem, size = 0x4000, scoped, tag = 'input window, operand 0, single buffered']
    #allocation9 [shape = 's32[1]{0}', space=sflag, size = 0x4, scoped, tag = 'scoped memory for tpu_custom_call.1']
    #allocation10 [shape = 's32[1]{0}', space=sflag, size = 0x4, scoped, tag = 'scoped memory for tpu_custom_call.1']
    #allocation11 [shape = 'u8[512]{0}', space=vmem, size = 0x400, scoped, tag = 'input window, operand 1, single buffered']
    #allocation12 [shape = 's32[1]{0}', space=sflag, size = 0x4, scoped, tag = 'scoped memory for tpu_custom_call.1']
    #allocation13 [shape = 'u8[1024]{0}', space=vmem, size = 0x400, scoped, tag = 'input window, operand 2, single buffered']
    #allocation14 [shape = 'u8[1024]{0}', space=vmem, size = 0x400, scoped, tag = 'input window, operand 3, single buffered']
    #allocation15 [shape = 's32[1]{0}', space=sflag, size = 0x4, scoped, tag = 'scoped memory for tpu_custom_call.1']
    #allocation16 [shape = 'u8[1024]{0}', space=vmem, size = 0x400, scoped, tag = 'input window, operand 4, single buffered']
    #allocation17 [shape = 'u8[2048]{0}', space=vmem, size = 0x800, scoped, tag = 'input window, operand 5, single buffered']
    #allocation18 [shape = 's32[1]{0}', space=sflag, size = 0x4, scoped, tag = 'scoped memory for tpu_custom_call.1']
    #allocation19 [shape = 'u8[2048]{0}', space=vmem, size = 0x800, scoped, tag = 'input window, operand 6, single buffered']
    #allocation20 [shape = 'u8[2048]{0}', space=vmem, size = 0x800, scoped, tag = 'input window, operand 7, single buffered']
    #allocation21 [shape = 's32[1]{0}', space=sflag, size = 0x4, scoped, tag = 'scoped memory for tpu_custom_call.1']
    #allocation22 [shape = 'u8[4096]{0}', space=vmem, size = 0x1000, scoped, tag = 'input window, operand 8, single buffered']
    #allocation23 [shape = 'u8[4096]{0}', space=vmem, size = 0x1000, scoped, tag = 'input window, operand 9, single buffered']
    #allocation24 [shape = 's32[1]{0}', space=sflag, size = 0x4, scoped, tag = 'scoped memory for tpu_custom_call.1']
    #allocation25 [shape = 'u8[4096]{0}', space=vmem, size = 0x1000, scoped, tag = 'input window, operand 10, single buffered']
    #allocation26 [shape = 'u8[3584]{0}', space=vmem, size = 0x1000, scoped, tag = 'input window, operand 11, single buffered']
    #allocation27 [shape = 's32[1]{0}', space=sflag, size = 0x4, scoped, tag = 'scoped memory for tpu_custom_call.1']
    #allocation28 [shape = 'u8[114688]{0}', space=vmem, size = 0x1c000, scoped, tag = 'output window, operand 0, single buffered']
    #allocation34 [shape = 'u32[9]{0}', space=smem, size = 0x24, scoped, tag = 'DMA stride descriptor']
    #allocation36 [shape = 'u32[9]{0}', space=smem, size = 0x24, scoped, tag = 'DMA stride descriptor']
    #allocation38 [shape = 'u32[9]{0}', space=smem, size = 0x24, scoped, tag = 'DMA stride descriptor']
    #allocation40 [shape = 'u32[9]{0}', space=smem, size = 0x24, scoped, tag = 'DMA stride descriptor']
    %22 = vsyncpa [#allocation9], 0
    %23 = vsyncpa [#allocation12], 0
    %24 = vsyncpa [#allocation15], 0
    %25 = vsyncpa [#allocation18], 0
    %26 = vsyncpa [#allocation21], 0
    %27 = vsyncpa [#allocation24], 0
    %28 = vsyncpa [#allocation27], 0
    %29 = vsyncpa [#allocation10], 0
    // Predicated region
    $region2: #{tpu_custom_call.1} parent=1 // pred_check
      _
    $region3: #{tpu_custom_call.1} parent=1 // pred_check_branch
      %31 = sbr.rel (0) target = $region5
    $region4: #{tpu_custom_call.1} parent=1 // pred_region
      %s33 = ssub.s32 512, 512
      %34 = vsyncadd [#allocation9], %s33
      %s35 = sshll.u32 [#allocation8], 4
      %s36 = int_to_ptr.vmem [resolvable:$true] %s35
      %41 = dma.hbm_to_vmem [thread:$0]  %s0, 512, %s36, [#allocation9], 128, 128, 8
    $region5: #{tpu_custom_call.1} parent=1 // pred_fallthru
      _
    // Predicated region
    $region6: #{tpu_custom_call.1} parent=1 // pred_check
      _
    $region7: #{tpu_custom_call.1} parent=1 // pred_check_branch
      %43 = sbr.rel (0) target = $region9
    $region8: #{tpu_custom_call.1} parent=1 // pred_region
      %s45 = ssub.s32 16, 16
      %46 = vsyncadd [#allocation12], %s45
      %s48 = sshll.u32 [#allocation11], 4
      %s49 = int_to_ptr.vmem [resolvable:$true] %s48
      %51 = dma.hbm_to_vmem [thread:$0]  %s1, 16, %s49, [#allocation12]
    $region9: #{tpu_custom_call.1} parent=1 // pred_fallthru
      _
    // Predicated region
    $region10: #{tpu_custom_call.1} parent=1 // pred_check
      _
    $region11: #{tpu_custom_call.1} parent=1 // pred_check_branch
      %53 = sbr.rel (0) target = $region13
    $region12: #{tpu_custom_call.1} parent=1 // pred_region
      %s55 = ssub.s32 32, 32
      %56 = vsyncadd [#allocation12], %s55
      %s58 = sshll.u32 [#allocation13], 4
      %s59 = int_to_ptr.vmem [resolvable:$true] %s58
      %61 = dma.hbm_to_vmem [thread:$0]  %s2, 32, %s59, [#allocation12]
    $region13: #{tpu_custom_call.1} parent=1 // pred_fallthru
      _
    // Predicated region
    $region14: #{tpu_custom_call.1} parent=1 // pred_check
      _
    $region15: #{tpu_custom_call.1} parent=1 // pred_check_branch
      %63 = sbr.rel (0) target = $region17
    $region16: #{tpu_custom_call.1} parent=1 // pred_region
      %s65 = ssub.s32 32, 32
      %66 = vsyncadd [#allocation15], %s65
      %s68 = sshll.u32 [#allocation14], 4
      %s69 = int_to_ptr.vmem [resolvable:$true] %s68
      %71 = dma.hbm_to_vmem [thread:$0]  %s3, 32, %s69, [#allocation15]
    $region17: #{tpu_custom_call.1} parent=1 // pred_fallthru
      _
    // Predicated region
    $region18: #{tpu_custom_call.1} parent=1 // pred_check
      _
    $region19: #{tpu_custom_call.1} parent=1 // pred_check_branch
      %73 = sbr.rel (0) target = $region21
    $region20: #{tpu_custom_call.1} parent=1 // pred_region
      %s75 = ssub.s32 32, 32
      %76 = vsyncadd [#allocation15], %s75
      %s78 = sshll.u32 [#allocation16], 4
      %s79 = int_to_ptr.vmem [resolvable:$true] %s78
      %81 = dma.hbm_to_vmem [thread:$0]  %s4, 32, %s79, [#allocation15]
    $region21: #{tpu_custom_call.1} parent=1 // pred_fallthru
      _
    // Predicated region
    $region22: #{tpu_custom_call.1} parent=1 // pred_check
      _
    $region23: #{tpu_custom_call.1} parent=1 // pred_check_branch
      %83 = sbr.rel (0) target = $region25
    $region24: #{tpu_custom_call.1} parent=1 // pred_region
      %s85 = ssub.s32 64, 64
      %86 = vsyncadd [#allocation18], %s85
      %s88 = sshll.u32 [#allocation17], 4
      %s89 = int_to_ptr.vmem [resolvable:$true] %s88
      %91 = dma.hbm_to_vmem [thread:$0]  %s5, 64, %s89, [#allocation18]
    $region25: #{tpu_custom_call.1} parent=1 // pred_fallthru
      _
    // Predicated region
    $region26: #{tpu_custom_call.1} parent=1 // pred_check
      _
    $region27: #{tpu_custom_call.1} parent=1 // pred_check_branch
      %93 = sbr.rel (0) target = $region29
    $region28: #{tpu_custom_call.1} parent=1 // pred_region
      %s95 = ssub.s32 64, 64
      %96 = vsyncadd [#allocation18], %s95
      %s98 = sshll.u32 [#allocation19], 4
      %s99 = int_to_ptr.vmem [resolvable:$true] %s98
      %101 = dma.hbm_to_vmem [thread:$0]  %s6, 64, %s99, [#allocation18]
    $region29: #{tpu_custom_call.1} parent=1 // pred_fallthru
      _
    // Predicated region
    $region30: #{tpu_custom_call.1} parent=1 // pred_check
      _
    $region31: #{tpu_custom_call.1} parent=1 // pred_check_branch
      %103 = sbr.rel (0) target = $region33
    $region32: #{tpu_custom_call.1} parent=1 // pred_region
      %s105 = ssub.s32 64, 64
      %106 = vsyncadd [#allocation21], %s105
      %s108 = sshll.u32 [#allocation20], 4
      %s109 = int_to_ptr.vmem [resolvable:$true] %s108
      %111 = dma.hbm_to_vmem [thread:$0]  %s7, 64, %s109, [#allocation21]
    $region33: #{tpu_custom_call.1} parent=1 // pred_fallthru
      _
    // Predicated region
    $region34: #{tpu_custom_call.1} parent=1 // pred_check
      _
    $region35: #{tpu_custom_call.1} parent=1 // pred_check_branch
      %113 = sbr.rel (0) target = $region37
    $region36: #{tpu_custom_call.1} parent=1 // pred_region
      %s115 = ssub.s32 128, 128
      %116 = vsyncadd [#allocation21], %s115
      %s118 = sshll.u32 [#allocation22], 4
      %s119 = int_to_ptr.vmem [resolvable:$true] %s118
      %121 = dma.hbm_to_vmem [thread:$0]  %s8, 128, %s119, [#allocation21]
    $region37: #{tpu_custom_call.1} parent=1 // pred_fallthru
      _
    // Predicated region
    $region38: #{tpu_custom_call.1} parent=1 // pred_check
      _
    $region39: #{tpu_custom_call.1} parent=1 // pred_check_branch
      %123 = sbr.rel (0) target = $region41
    $region40: #{tpu_custom_call.1} parent=1 // pred_region
      %s125 = ssub.s32 128, 128
      %126 = vsyncadd [#allocation24], %s125
      %s128 = sshll.u32 [#allocation23], 4
      %s129 = int_to_ptr.vmem [resolvable:$true] %s128
      %131 = dma.hbm_to_vmem [thread:$0]  %s9, 128, %s129, [#allocation24]
    $region41: #{tpu_custom_call.1} parent=1 // pred_fallthru
      _
    // Predicated region
    $region42: #{tpu_custom_call.1} parent=1 // pred_check
      _
    $region43: #{tpu_custom_call.1} parent=1 // pred_check_branch
      %133 = sbr.rel (0) target = $region45
    $region44: #{tpu_custom_call.1} parent=1 // pred_region
      %s135 = ssub.s32 128, 128
      %136 = vsyncadd [#allocation24], %s135
      %s138 = sshll.u32 [#allocation25], 4
      %s139 = int_to_ptr.vmem [resolvable:$true] %s138
      %141 = dma.hbm_to_vmem [thread:$0]  %s10, 128, %s139, [#allocation24]
    $region45: #{tpu_custom_call.1} parent=1 // pred_fallthru
      _
    // Predicated region
    $region46: #{tpu_custom_call.1} parent=1 // pred_check
      _
    $region47: #{tpu_custom_call.1} parent=1 // pred_check_branch
      %143 = sbr.rel (0) target = $region49
    $region48: #{tpu_custom_call.1} parent=1 // pred_region
      %s145 = ssub.s32 112, 112
      %146 = vsyncadd [#allocation27], %s145
      %s148 = sshll.u32 [#allocation26], 4
      %s149 = int_to_ptr.vmem [resolvable:$true] %s148
      %151 = dma.hbm_to_vmem [thread:$0]  %s11, 112, %s149, [#allocation27]
    $region49: #{tpu_custom_call.1} parent=1 // pred_fallthru
      _
    // Predicated region
    $region50: #{tpu_custom_call.1} parent=1 // pred_check
      _
    $region51: #{tpu_custom_call.1} parent=1 // pred_check_branch
      %153 = sbr.rel (0) target = $region53
    $region52: #{tpu_custom_call.1} parent=1 // pred_region
      %154 = dma.done [#allocation9], 512
    $region53: #{tpu_custom_call.1} parent=1 // pred_fallthru
      _
    // Predicated region
    $region54: #{tpu_custom_call.1} parent=1 // pred_check
      _
    $region55: #{tpu_custom_call.1} parent=1 // pred_check_branch
      %156 = sbr.rel (0) target = $region57
    $region56: #{tpu_custom_call.1} parent=1 // pred_region
      %157 = dma.done [#allocation12], 16
    $region57: #{tpu_custom_call.1} parent=1 // pred_fallthru
      _
    // Predicated region
    $region58: #{tpu_custom_call.1} parent=1 // pred_check
      _
    $region59: #{tpu_custom_call.1} parent=1 // pred_check_branch
      %159 = sbr.rel (0) target = $region61
    $region60: #{tpu_custom_call.1} parent=1 // pred_region
      %160 = dma.done [#allocation12], 32
    $region61: #{tpu_custom_call.1} parent=1 // pred_fallthru
      _
    // Predicated region
    $region62: #{tpu_custom_call.1} parent=1 // pred_check
      _
    $region63: #{tpu_custom_call.1} parent=1 // pred_check_branch
      %162 = sbr.rel (0) target = $region65
    $region64: #{tpu_custom_call.1} parent=1 // pred_region
      %163 = dma.done [#allocation15], 32
    $region65: #{tpu_custom_call.1} parent=1 // pred_fallthru
      _
    // Predicated region
    $region66: #{tpu_custom_call.1} parent=1 // pred_check
      _
    $region67: #{tpu_custom_call.1} parent=1 // pred_check_branch
      %165 = sbr.rel (0) target = $region69
    $region68: #{tpu_custom_call.1} parent=1 // pred_region
      %166 = dma.done [#allocation15], 32
    $region69: #{tpu_custom_call.1} parent=1 // pred_fallthru
      _
    // Predicated region
    $region70: #{tpu_custom_call.1} parent=1 // pred_check
      _
    $region71: #{tpu_custom_call.1} parent=1 // pred_check_branch
      %168 = sbr.rel (0) target = $region73
    $region72: #{tpu_custom_call.1} parent=1 // pred_region
      %169 = dma.done [#allocation18], 64
    $region73: #{tpu_custom_call.1} parent=1 // pred_fallthru
      _
    // Predicated region
    $region74: #{tpu_custom_call.1} parent=1 // pred_check
      _
    $region75: #{tpu_custom_call.1} parent=1 // pred_check_branch
      %171 = sbr.rel (0) target = $region77
    $region76: #{tpu_custom_call.1} parent=1 // pred_region
      %172 = dma.done [#allocation18], 64
    $region77: #{tpu_custom_call.1} parent=1 // pred_fallthru
      _
    // Predicated region
    $region78: #{tpu_custom_call.1} parent=1 // pred_check
      _
    $region79: #{tpu_custom_call.1} parent=1 // pred_check_branch
      %174 = sbr.rel (0) target = $region81
    $region80: #{tpu_custom_call.1} parent=1 // pred_region
      %175 = dma.done [#allocation21], 64
    $region81: #{tpu_custom_call.1} parent=1 // pred_fallthru
      _
    // Predicated region
    $region82: #{tpu_custom_call.1} parent=1 // pred_check
      _
    $region83: #{tpu_custom_call.1} parent=1 // pred_check_branch
      %177 = sbr.rel (0) target = $region85
    $region84: #{tpu_custom_call.1} parent=1 // pred_region
      %178 = dma.done [#allocation21], 128
    $region85: #{tpu_custom_call.1} parent=1 // pred_fallthru
      _
    // Predicated region
    $region86: #{tpu_custom_call.1} parent=1 // pred_check
      _
    $region87: #{tpu_custom_call.1} parent=1 // pred_check_branch
      %180 = sbr.rel (0) target = $region89
    $region88: #{tpu_custom_call.1} parent=1 // pred_region
      %181 = dma.done [#allocation24], 128
    $region89: #{tpu_custom_call.1} parent=1 // pred_fallthru
      _
    // Predicated region
    $region90: #{tpu_custom_call.1} parent=1 // pred_check
      _
    $region91: #{tpu_custom_call.1} parent=1 // pred_check_branch
      %183 = sbr.rel (0) target = $region93
    $region92: #{tpu_custom_call.1} parent=1 // pred_region
      %184 = dma.done [#allocation24], 128
    $region93: #{tpu_custom_call.1} parent=1 // pred_fallthru
      _
    // Predicated region
    $region94: #{tpu_custom_call.1} parent=1 // pred_check
      _
    $region95: #{tpu_custom_call.1} parent=1 // pred_check_branch
      %186 = sbr.rel (0) target = $region97
    $region96: #{tpu_custom_call.1} parent=1 // pred_region
      %187 = dma.done [#allocation27], 112
    $region97: #{tpu_custom_call.1} parent=1 // pred_fallthru
      _
    // Predicated region
    $region98: #{tpu_custom_call.1} parent=1 // pred_check
      _
    $region99: #{tpu_custom_call.1} parent=1 // pred_check_branch
      %190 = sbr.rel target = $region101
    $region100: #{tpu_custom_call.1} parent=1 // pred_region
      %191 = sst [smem:[#allocation31]] [#allocation30]
      %192 = sst [smem:[#allocation32]] [#allocation29]
    $region101: #{tpu_custom_call.1} parent=1 // pred_fallthru
      _
    %194 = shalt.err (0)
    %s196 = sshll.u32 [#allocation2], 4
    %s197 = int_to_ptr.vmem [resolvable:$true] %s196
    %199 = dma.hbm_to_vmem [thread:$0]  %s12, 256, %s197, [#allocation7]
    %s200 = scalar_lea.sflag [#allocation7], 1
    %s202 = sshll.u32 1, 14
    %s203 = sxor.u32 4294967295, %s202
    %s205 = sld [smem:[#allocation0]]
    %s206 = sadd.s32 2, %s205
    %s208 = sshll.u32 7, 26
    %s209 = sxor.u32 4294967295, %s208
    %s210 = sand.u32 0, %s209
    %s211 = sshll.u32 %s206, 26
    %s212 = sor.u32 %s210, %s211
    %s213 = sshll.u32 [#allocation3], 4
    %s214 = int_to_ptr.vmem [resolvable:$true] %s213
    %217 = sst [smem:[#allocation34]] 256
    %s218 = scalar_lea.smem [#allocation34], 1
    %219 = sst [smem:[%s218]] 256
    %s220 = scalar_lea.smem [#allocation34], 2
    %221 = sst [smem:[%s220]] 2
    %s222 = scalar_lea.smem [#allocation34], 3
    %223 = sst [smem:[%s222]] 64
    %s224 = scalar_lea.smem [#allocation34], 4
    %225 = sst [smem:[%s224]] 128
    %s226 = scalar_lea.smem [#allocation34], 5
    %227 = sst [smem:[%s226]] 2
    %s228 = scalar_lea.smem [#allocation34], 6
    %229 = sst [smem:[%s228]] 128
    %s230 = scalar_lea.smem [#allocation34], 7
    %231 = sst [smem:[%s230]] 64
    %s232 = scalar_lea.smem [#allocation34], 8
    %233 = sst [smem:[%s232]] 4
    %235 = dma.general %s13, 2048, %s214, %s200, [#allocation33], [#allocation34], %s212, 0
    %s236 = scalar_lea.sflag [#allocation7], 2
    %s238 = sshll.u32 1, 14
    %s239 = sxor.u32 4294967295, %s238
    %s241 = sadd.s32 2, %s205
    %s243 = sshll.u32 7, 26
    %s244 = sxor.u32 4294967295, %s243
    %s245 = sand.u32 0, %s244
    %s246 = sshll.u32 %s241, 26
    %s247 = sor.u32 %s245, %s246
    %s248 = sshll.u32 [#allocation4], 4
    %s249 = int_to_ptr.vmem [resolvable:$true] %s248
    %252 = sst [smem:[#allocation36]] 512
    %s253 = scalar_lea.smem [#allocation36], 1
    %254 = sst [smem:[%s253]] 512
    %s255 = scalar_lea.smem [#allocation36], 2
    %256 = sst [smem:[%s255]] 4
    %s257 = scalar_lea.smem [#allocation36], 3
    %258 = sst [smem:[%s257]] 64
    %s259 = scalar_lea.smem [#allocation36], 4
    %260 = sst [smem:[%s259]] 128
    %s261 = scalar_lea.smem [#allocation36], 5
    %262 = sst [smem:[%s261]] 2
    %s263 = scalar_lea.smem [#allocation36], 6
    %264 = sst [smem:[%s263]] 256
    %s265 = scalar_lea.smem [#allocation36], 7
    %266 = sst [smem:[%s265]] 64
    %s267 = scalar_lea.smem [#allocation36], 8
    %268 = sst [smem:[%s267]] 4
    %270 = dma.general %s14, 8192, %s249, %s236, [#allocation35], [#allocation36], %s247, 0
    %s271 = scalar_lea.sflag [#allocation7], 3
    %s273 = sshll.u32 1, 14
    %s274 = sxor.u32 4294967295, %s273
    %s276 = sadd.s32 2, %s205
    %s278 = sshll.u32 7, 26
    %s279 = sxor.u32 4294967295, %s278
    %s280 = sand.u32 0, %s279
    %s281 = sshll.u32 %s276, 26
    %s282 = sor.u32 %s280, %s281
    %s283 = sshll.u32 [#allocation5], 4
    %s284 = int_to_ptr.vmem [resolvable:$true] %s283
    %287 = sst [smem:[#allocation38]] 1024
    %s288 = scalar_lea.smem [#allocation38], 1
    %289 = sst [smem:[%s288]] 1024
    %s290 = scalar_lea.smem [#allocation38], 2
    %291 = sst [smem:[%s290]] 8
    %s292 = scalar_lea.smem [#allocation38], 3
    %293 = sst [smem:[%s292]] 64
    %s294 = scalar_lea.smem [#allocation38], 4
    %295 = sst [smem:[%s294]] 128
    %s296 = scalar_lea.smem [#allocation38], 5
    %297 = sst [smem:[%s296]] 2
    %s298 = scalar_lea.smem [#allocation38], 6
    %299 = sst [smem:[%s298]] 512
    %s300 = scalar_lea.smem [#allocation38], 7
    %301 = sst [smem:[%s300]] 64
    %s302 = scalar_lea.smem [#allocation38], 8
    %303 = sst [smem:[%s302]] 4
    %305 = dma.general %s15, 32768, %s284, %s271, [#allocation37], [#allocation38], %s282, 0
    %s306 = scalar_lea.sflag [#allocation7], 4
    %s308 = sshll.u32 1, 14
    %s309 = sxor.u32 4294967295, %s308
    %s311 = sadd.s32 2, %s205
    %s313 = sshll.u32 7, 26
    %s314 = sxor.u32 4294967295, %s313
    %s315 = sand.u32 0, %s314
    %s316 = sshll.u32 %s311, 26
    %s317 = sor.u32 %s315, %s316
    %s318 = sshll.u32 [#allocation6], 4
    %s319 = int_to_ptr.vmem [resolvable:$true] %s318
    %322 = sst [smem:[#allocation40]] 896
    %s323 = scalar_lea.smem [#allocation40], 1
    %324 = sst [smem:[%s323]] 896
    %s325 = scalar_lea.smem [#allocation40], 2
    %326 = sst [smem:[%s325]] 7
    %s327 = scalar_lea.smem [#allocation40], 3
    %328 = sst [smem:[%s327]] 64
    %s329 = scalar_lea.smem [#allocation40], 4
    %330 = sst [smem:[%s329]] 128
    %s331 = scalar_lea.smem [#allocation40], 5
    %332 = sst [smem:[%s331]] 2
    %s333 = scalar_lea.smem [#allocation40], 6
    %334 = sst [smem:[%s333]] 448
    %s335 = scalar_lea.smem [#allocation40], 7
    %336 = sst [smem:[%s335]] 64
    %s337 = scalar_lea.smem [#allocation40], 8
    %338 = sst [smem:[%s337]] 4
    %340 = dma.general %s16, 57344, %s319, %s306, [#allocation39], [#allocation40], %s317, 0
    %v341 = vld [vmem:[#allocation8] sm:$0xff]
    %v342 = vld [vmem:[#allocation8 + $0x8] sm:$0xff]
    %v343 = vld [vmem:[#allocation8 + $0x10] sm:$0xff]
    %v344 = vld [vmem:[#allocation8 + $0x18] sm:$0xff]
    %s345 = smul.u32 4, 4
    %s346 = smul.u32 %s345, 1
    %s347 = sshll.u32 %s346, 4
    %348 = dma.done [#allocation7], %s347
    %v349 = vld [vmem:[#allocation2] sm:$0xff]
    %v350 = vld [vmem:[#allocation2 + $0x8] sm:$0xff]
    %v351 = vld [vmem:[#allocation11] sm:$0x1]
    %v352 = vpack.c.bf16 %v342, %v341
    %v353 = vpack.c.bf16 %v344, %v343
    %v355 = vlaneseq
    %v356 = vshrl.u32 %v355, 7
    %v357 = vsub.s32 0, %v356
    %v358 = vrot.slane %v351, %v357
    %vm360 = vcmask 261120
    %v362 = vsel %vm360, %v352, 0
    %v365 = vsel %vm360, %v353, 0
    %367 = vmatprep.subr.bf16.mxu0 0
    %368 = vmatpush1.bf16.msra.mxu0 %v349
    %369 = vmatprep.subr.bf16.mxu0 0
    %370 = vmatpush1.bf16.msra.mxu0 %v350
    %371 = vmatprep.subr.bf16.mxu0 0
    %372 = vmatpush1.bf16.msra.mxu0 0
    %373 = vmatprep.subr.bf16.mxu0 0
    %374 = vmatpush1.bf16.msra.mxu0 0
    %375 = vmatprep.subr.bf16.mxu0 0
    %376 = vmatpush1.bf16.msra.mxu0 0
    %377 = vmatprep.subr.bf16.mxu0 0
    %378 = vmatpush1.bf16.msra.mxu0 0
    %379 = vmatprep.subr.bf16.mxu0 0
    %380 = vmatpush1.bf16.msra.mxu0 0
    %381 = vmatprep.subr.bf16.mxu0 0
    %382 = vmatpush1.bf16.msra.mxu0 0
    %383 = vmatprep.subr.bf16.mxu0 0
    %384 = vmatpush1.bf16.msra.mxu0 0
    %385 = vmatprep.subr.bf16.mxu0 0
    %386 = vmatpush1.bf16.msra.mxu0 0
    %387 = vmatprep.subr.bf16.mxu0 0
    %388 = vmatpush1.bf16.msra.mxu0 0
    %389 = vmatprep.subr.bf16.mxu0 0
    %390 = vmatpush1.bf16.msra.mxu0 0
    %391 = vmatprep.subr.bf16.mxu0 0
    %392 = vmatpush1.bf16.msra.mxu0 0
    %393 = vmatprep.subr.bf16.mxu0 0
    %394 = vmatpush1.bf16.msra.mxu0 0
    %395 = vmatprep.subr.bf16.mxu0 0
    %396 = vmatpush1.bf16.msra.mxu0 0
    %397 = vmatprep.subr.bf16.mxu0 0
    %398 = vmatpush1.bf16.msra.mxu0 0
    %399 = vmatprep.mubr.bf16.mxu0 0
    %400 = vmatmul.mubr.bf16.gmra.mrb[0].mxu0 %v362
    %v401 = vpop.f32.mrb[0].mxu0
    %v402 = vadd.f32 %v358, %v401
    %v403 = vpop.f32.mrb[0].mxu0
    %v404 = vpop.f32.mrb[0].mxu0
    %v405 = vadd.f32 %v358, %v404
    %v406 = vpop.f32.mrb[0].mxu0
    %407 = vmatprep.mubr.bf16.mxu0 0
    %408 = vmatmul.mubr.bf16.gmra.mrb[0].mxu0 %v365
    %v409 = vpop.f32.mrb[0].mxu0
    %v410 = vadd.f32 %v358, %v409
    %v411 = vpop.f32.mrb[0].mxu0
    %v412 = vpop.f32.mrb[0].mxu0
    %v413 = vadd.f32 %v358, %v412
    %v414 = vpop.f32.mrb[0].mxu0
    %415 = vdwg.mxu0
    %vm416 = vcmp.gt.f32.partialorder %v402, 0.0
    %vm417 = vcmp.gt.f32.partialorder %v405, 0.0
    %vm418 = vcmp.gt.f32.partialorder %v410, 0.0
    %vm419 = vcmp.gt.f32.partialorder %v413, 0.0
    %v420 = vmul.f32 %v402, 0.2
    %v421 = vmul.f32 %v405, 0.2
    %v422 = vmul.f32 %v410, 0.2
    %v423 = vmul.f32 %v413, 0.2
    %v424 = vsel %vm416, %v402, %v420
    %v425 = vsel %vm417, %v405, %v421
    %v426 = vsel %vm418, %v410, %v422
    %v427 = vsel %vm419, %v413, %v423
    %s428 = smul.u32 4, 16
    %s429 = smul.u32 %s428, 2
    %s430 = sshll.u32 %s429, 4
    %431 = dma.done %s200, %s430
    %v432 = vld [vmem:[#allocation3] sm:$0xff]
    %v433 = vld [vmem:[#allocation3 + $0x8] sm:$0xff]
    %v434 = vld [vmem:[#allocation3 + $0x10] sm:$0xff]
    %v435 = vld [vmem:[#allocation3 + $0x18] sm:$0xff]
    %v436 = vld [vmem:[#allocation3 + $0x20] sm:$0xff]
    %v437 = vld [vmem:[#allocation3 + $0x28] sm:$0xff]
    %v438 = vld [vmem:[#allocation3 + $0x30] sm:$0xff]
    %v439 = vld [vmem:[#allocation3 + $0x38] sm:$0xff]
    %v440 = vld [vmem:[#allocation3 + $0x40] sm:$0xff]
    %v441 = vld [vmem:[#allocation3 + $0x48] sm:$0xff]
    %v442 = vld [vmem:[#allocation3 + $0x50] sm:$0xff]
    %v443 = vld [vmem:[#allocation3 + $0x58] sm:$0xff]
    %v444 = vld [vmem:[#allocation3 + $0x60] sm:$0xff]
    %v445 = vld [vmem:[#allocation3 + $0x68] sm:$0xff]
    %v446 = vld [vmem:[#allocation3 + $0x70] sm:$0xff]
    %v447 = vld [vmem:[#allocation3 + $0x78] sm:$0xff]
    %v448 = vld [vmem:[#allocation13] sm:$0x3]
    %v449 = vpack.c.bf16 %v425, %v424
    %v450 = vpack.c.bf16 %v427, %v426
    %v452 = vlaneseq
    %v453 = vshrl.u32 %v452, 7
    %v454 = vsub.s32 0, %v453
    %v455 = vrot.slane %v448, %v454
    %v456 = vlaneseq
    %v457 = vshrl.u32 %v456, 7
    %v458 = vsub.s32 1, %v457
    %v459 = vrot.slane %v448, %v458
    %462 = vmatprep.subr.bf16.mxu0 %v433
    %463 = vmatpush1.bf16.msra.mxu0 %v432
    %464 = vmatprep.subr.bf16.mxu0 %v435
    %465 = vmatpush1.bf16.msra.mxu0 %v434
    %466 = vmatprep.subr.bf16.mxu0 %v437
    %467 = vmatpush1.bf16.msra.mxu0 %v436
    %468 = vmatprep.subr.bf16.mxu0 %v439
    %469 = vmatpush1.bf16.msra.mxu0 %v438
    %470 = vmatprep.subr.bf16.mxu0 %v441
    %471 = vmatpush1.bf16.msra.mxu0 %v440
    %472 = vmatprep.subr.bf16.mxu0 %v443
    %473 = vmatpush1.bf16.msra.mxu0 %v442
    %474 = vmatprep.subr.bf16.mxu0 %v445
    %475 = vmatpush1.bf16.msra.mxu0 %v444
    %476 = vmatprep.subr.bf16.mxu0 %v447
    %477 = vmatpush1.bf16.msra.mxu0 %v446
    %478 = vmatprep.subr.bf16.mxu0 0
    %479 = vmatpush1.bf16.msra.mxu0 0
    %480 = vmatprep.subr.bf16.mxu0 0
    %481 = vmatpush1.bf16.msra.mxu0 0
    %482 = vmatprep.subr.bf16.mxu0 0
    %483 = vmatpush1.bf16.msra.mxu0 0
    %484 = vmatprep.subr.bf16.mxu0 0
    %485 = vmatpush1.bf16.msra.mxu0 0
    %486 = vmatprep.subr.bf16.mxu0 0
    %487 = vmatpush1.bf16.msra.mxu0 0
    %488 = vmatprep.subr.bf16.mxu0 0
    %489 = vmatpush1.bf16.msra.mxu0 0
    %490 = vmatprep.subr.bf16.mxu0 0
    %491 = vmatpush1.bf16.msra.mxu0 0
    %492 = vmatprep.subr.bf16.mxu0 0
    %493 = vmatpush1.bf16.msra.mxu0 0
    %494 = vmatprep.mubr.bf16.mxu0 0
    %495 = vmatmul.mubr.bf16.gmra.mrb[0].mxu0 %v449
    %v496 = vpop.f32.mrb[0].mxu0
    %v497 = vadd.f32 %v455, %v496
    %v498 = vpop.f32.mrb[0].mxu0
    %v499 = vadd.f32 %v459, %v498
    %v500 = vpop.f32.mrb[0].mxu0
    %v501 = vadd.f32 %v455, %v500
    %v502 = vpop.f32.mrb[0].mxu0
    %v503 = vadd.f32 %v459, %v502
    %504 = vmatprep.mubr.bf16.mxu0 0
    %505 = vmatmul.mubr.bf16.gmra.mrb[0].mxu0 %v450
    %v506 = vpop.f32.mrb[0].mxu0
    %v507 = vadd.f32 %v455, %v506
    %v508 = vpop.f32.mrb[0].mxu0
    %v509 = vadd.f32 %v459, %v508
    %v510 = vpop.f32.mrb[0].mxu0
    %v511 = vadd.f32 %v455, %v510
    %v512 = vpop.f32.mrb[0].mxu0
    %v513 = vadd.f32 %v459, %v512
    %514 = vdwg.mxu0
    %v515 = vld [vmem:[#allocation14] sm:$0x3]
    %v516 = vld [vmem:[#allocation16] sm:$0x3]
    %v517 = vadd.f32 %v497, %v501
    %v518 = vadd.f32 %v517, %v507
    %v519 = vadd.f32 %v518, %v511
    %v520 = vrot.slane %v519, 4
    %v521 = vadd.f32 %v519, %v520
    %v522 = vrot.slane %v521, 2
    %v523 = vadd.f32 %v521, %v522
    %v524 = vrot.slane %v523, 1
    %v525 = vadd.f32 %v523, %v524
    %v526 = vadd.f32 %v499, %v503
    %v527 = vadd.f32 %v526, %v509
    %v528 = vadd.f32 %v527, %v513
    %v529 = vrot.slane %v528, 4
    %v530 = vadd.f32 %v528, %v529
    %v531 = vrot.slane %v530, 2
    %v532 = vadd.f32 %v530, %v531
    %v533 = vrot.slane %v532, 1
    %v534 = vadd.f32 %v532, %v533
    %v535 = vmul.f32 %v497, %v497
    %v536 = vmul.f32 %v499, %v499
    %v537 = vmul.f32 %v501, %v501
    %v538 = vmul.f32 %v503, %v503
    %v539 = vmul.f32 %v507, %v507
    %v540 = vmul.f32 %v509, %v509
    %v541 = vmul.f32 %v511, %v511
    %v542 = vmul.f32 %v513, %v513
    %v543 = vadd.f32 %v535, %v537
    %v544 = vadd.f32 %v543, %v539
    %v545 = vadd.f32 %v544, %v541
    %v546 = vrot.slane %v545, 4
    %v547 = vadd.f32 %v545, %v546
    %v548 = vrot.slane %v547, 2
    %v549 = vadd.f32 %v547, %v548
    %v550 = vrot.slane %v549, 1
    %v551 = vadd.f32 %v549, %v550
    %v552 = vadd.f32 %v536, %v538
    %v553 = vadd.f32 %v552, %v540
    %v554 = vadd.f32 %v553, %v542
    %v555 = vrot.slane %v554, 4
    %v556 = vadd.f32 %v554, %v555
    %v557 = vrot.slane %v556, 2
    %v558 = vadd.f32 %v556, %v557
    %v559 = vrot.slane %v558, 1
    %v560 = vadd.f32 %v558, %v559
    %v561 = vmul.f32 %v525, 0.03125
    %v562 = vmul.f32 %v534, 0.03125
    %v563 = vmul.f32 %v551, 0.03125
    %v564 = vmul.f32 %v560, 0.03125
    %v565 = vmul.f32 %v561, %v561
    %v566 = vmul.f32 %v562, %v562
    %v567 = vsub.f32 %v563, %v565
    %v568 = vsub.f32 %v564, %v566
    %v569 = vmax.f32 %v567, 0.0
    %v570 = vmax.f32 %v568, 0.0
    %v571 = vsub.f32 %v497, %v561
    %v572 = vsub.f32 %v499, %v562
    %v573 = vsub.f32 %v501, %v561
    %v574 = vsub.f32 %v503, %v562
    %v575 = vsub.f32 %v507, %v561
    %v576 = vsub.f32 %v509, %v562
    %v577 = vsub.f32 %v511, %v561
    %v578 = vsub.f32 %v513, %v562
    %v579 = vadd.f32 %v569, 1e-05
    %v580 = vadd.f32 %v570, 1e-05
    %v581 = vrsqrt.pop %v579
    %v582 = vrsqrt.pop %v580
    %v583 = vmul.f32 %v571, %v581
    %v584 = vmul.f32 %v572, %v582
    %v585 = vmul.f32 %v573, %v581
    %v586 = vmul.f32 %v574, %v582
    %v587 = vmul.f32 %v575, %v581
    %v588 = vmul.f32 %v576, %v582
    %v589 = vmul.f32 %v577, %v581
    %v590 = vmul.f32 %v578, %v582
    %v592 = vlaneseq
    %v593 = vshrl.u32 %v592, 7
    %v594 = vsub.s32 0, %v593
    %v595 = vrot.slane %v515, %v594
    %v596 = vlaneseq
    %v597 = vshrl.u32 %v596, 7
    %v598 = vsub.s32 1, %v597
    %v599 = vrot.slane %v515, %v598
    %v602 = vmul.f32 %v583, %v595
    %v603 = vmul.f32 %v584, %v599
    %v604 = vmul.f32 %v585, %v595
    %v605 = vmul.f32 %v586, %v599
    %v606 = vmul.f32 %v587, %v595
    %v607 = vmul.f32 %v588, %v599
    %v608 = vmul.f32 %v589, %v595
    %v609 = vmul.f32 %v590, %v599
    %v611 = vlaneseq
    %v612 = vshrl.u32 %v611, 7
    %v613 = vsub.s32 0, %v612
    %v614 = vrot.slane %v516, %v613
    %v615 = vlaneseq
    %v616 = vshrl.u32 %v615, 7
    %v617 = vsub.s32 1, %v616
    %v618 = vrot.slane %v516, %v617
    %v621 = vadd.f32 %v602, %v614
    %v622 = vadd.f32 %v603, %v618
    %v623 = vadd.f32 %v604, %v614
    %v624 = vadd.f32 %v605, %v618
    %v625 = vadd.f32 %v606, %v614
    %v626 = vadd.f32 %v607, %v618
    %v627 = vadd.f32 %v608, %v614
    %v628 = vadd.f32 %v609, %v618
    %vm629 = vcmp.gt.f32.partialorder %v621, 0.0
    %vm630 = vcmp.gt.f32.partialorder %v622, 0.0
    %vm631 = vcmp.gt.f32.partialorder %v623, 0.0
    %vm632 = vcmp.gt.f32.partialorder %v624, 0.0
    %vm633 = vcmp.gt.f32.partialorder %v625, 0.0
    %vm634 = vcmp.gt.f32.partialorder %v626, 0.0
    %vm635 = vcmp.gt.f32.partialorder %v627, 0.0
    %vm636 = vcmp.gt.f32.partialorder %v628, 0.0
    %v637 = vmul.f32 %v621, 0.2
    %v638 = vmul.f32 %v622, 0.2
    %v639 = vmul.f32 %v623, 0.2
    %v640 = vmul.f32 %v624, 0.2
    %v641 = vmul.f32 %v625, 0.2
    %v642 = vmul.f32 %v626, 0.2
    %v643 = vmul.f32 %v627, 0.2
    %v644 = vmul.f32 %v628, 0.2
    %v645 = vsel %vm629, %v621, %v637
    %v646 = vsel %vm630, %v622, %v638
    %v647 = vsel %vm631, %v623, %v639
    %v648 = vsel %vm632, %v624, %v640
    %v649 = vsel %vm633, %v625, %v641
    %v650 = vsel %vm634, %v626, %v642
    %v651 = vsel %vm635, %v627, %v643
    %v652 = vsel %vm636, %v628, %v644
    %s653 = smul.u32 4, 32
    %s654 = smul.u32 %s653, 4
    %s655 = sshll.u32 %s654, 4
    %656 = dma.done %s236, %s655
    %v657 = vld [vmem:[#allocation4] sm:$0xff]
    %v658 = vld [vmem:[#allocation4 + $0x8] sm:$0xff]
    %v659 = vld [vmem:[#allocation4 + $0x10] sm:$0xff]
    %v660 = vld [vmem:[#allocation4 + $0x18] sm:$0xff]
    %v661 = vld [vmem:[#allocation4 + $0x20] sm:$0xff]
    %v662 = vld [vmem:[#allocation4 + $0x28] sm:$0xff]
    %v663 = vld [vmem:[#allocation4 + $0x30] sm:$0xff]
    %v664 = vld [vmem:[#allocation4 + $0x38] sm:$0xff]
    %v665 = vld [vmem:[#allocation4 + $0x40] sm:$0xff]
    %v666 = vld [vmem:[#allocation4 + $0x48] sm:$0xff]
    %v667 = vld [vmem:[#allocation4 + $0x50] sm:$0xff]
    %v668 = vld [vmem:[#allocation4 + $0x58] sm:$0xff]
    %v669 = vld [vmem:[#allocation4 + $0x60] sm:$0xff]
    %v670 = vld [vmem:[#allocation4 + $0x68] sm:$0xff]
    %v671 = vld [vmem:[#allocation4 + $0x70] sm:$0xff]
    %v672 = vld [vmem:[#allocation4 + $0x78] sm:$0xff]
    %v673 = vld [vmem:[#allocation4 + $0x80] sm:$0xff]
    %v674 = vld [vmem:[#allocation4 + $0x88] sm:$0xff]
    %v675 = vld [vmem:[#allocation4 + $0x90] sm:$0xff]
    %v676 = vld [vmem:[#allocation4 + $0x98] sm:$0xff]
    %v677 = vld [vmem:[#allocation4 + $0xa0] sm:$0xff]
    %v678 = vld [vmem:[#allocation4 + $0xa8] sm:$0xff]
    %v679 = vld [vmem:[#allocation4 + $0xb0] sm:$0xff]
    %v680 = vld [vmem:[#allocation4 + $0xb8] sm:$0xff]
    %v681 = vld [vmem:[#allocation4 + $0xc0] sm:$0xff]
    %v682 = vld [vmem:[#allocation4 + $0xc8] sm:$0xff]
    %v683 = vld [vmem:[#allocation4 + $0xd0] sm:$0xff]
    %v684 = vld [vmem:[#allocation4 + $0xd8] sm:$0xff]
    %v685 = vld [vmem:[#allocation4 + $0xe0] sm:$0xff]
    %v686 = vld [vmem:[#allocation4 + $0xe8] sm:$0xff]
    %v687 = vld [vmem:[#allocation4 + $0xf0] sm:$0xff]
    %v688 = vld [vmem:[#allocation4 + $0xf8] sm:$0xff]
    %v689 = vld [vmem:[#allocation4 + $0x100] sm:$0xff]
    %v690 = vld [vmem:[#allocation4 + $0x108] sm:$0xff]
    %v691 = vld [vmem:[#allocation4 + $0x110] sm:$0xff]
    %v692 = vld [vmem:[#allocation4 + $0x118] sm:$0xff]
    %v693 = vld [vmem:[#allocation4 + $0x120] sm:$0xff]
    %v694 = vld [vmem:[#allocation4 + $0x128] sm:$0xff]
    %v695 = vld [vmem:[#allocation4 + $0x130] sm:$0xff]
    %v696 = vld [vmem:[#allocation4 + $0x138] sm:$0xff]
    %v697 = vld [vmem:[#allocation4 + $0x140] sm:$0xff]
    %v698 = vld [vmem:[#allocation4 + $0x148] sm:$0xff]
    %v699 = vld [vmem:[#allocation4 + $0x150] sm:$0xff]
    %v700 = vld [vmem:[#allocation4 + $0x158] sm:$0xff]
    %v701 = vld [vmem:[#allocation4 + $0x160] sm:$0xff]
    %v702 = vld [vmem:[#allocation4 + $0x168] sm:$0xff]
    %v703 = vld [vmem:[#allocation4 + $0x170] sm:$0xff]
    %v704 = vld [vmem:[#allocation4 + $0x178] sm:$0xff]
    %v705 = vld [vmem:[#allocation4 + $0x180] sm:$0xff]
    %v706 = vld [vmem:[#allocation4 + $0x188] sm:$0xff]
    %v707 = vld [vmem:[#allocation4 + $0x190] sm:$0xff]
    %v708 = vld [vmem:[#allocation4 + $0x198] sm:$0xff]
    %v709 = vld [vmem:[#allocation4 + $0x1a0] sm:$0xff]
    %v710 = vld [vmem:[#allocation4 + $0x1a8] sm:$0xff]
    %v711 = vld [vmem:[#allocation4 + $0x1b0] sm:$0xff]
    %v712 = vld [vmem:[#allocation4 + $0x1b8] sm:$0xff]
    %v713 = vld [vmem:[#allocation4 + $0x1c0] sm:$0xff]
    %v714 = vld [vmem:[#allocation4 + $0x1c8] sm:$0xff]
    %v715 = vld [vmem:[#allocation4 + $0x1d0] sm:$0xff]
    %v716 = vld [vmem:[#allocation4 + $0x1d8] sm:$0xff]
    %v717 = vld [vmem:[#allocation4 + $0x1e0] sm:$0xff]
    %v718 = vld [vmem:[#allocation4 + $0x1e8] sm:$0xff]
    %v719 = vld [vmem:[#allocation4 + $0x1f0] sm:$0xff]
    %v720 = vld [vmem:[#allocation4 + $0x1f8] sm:$0xff]
    %v721 = vld [vmem:[#allocation17] sm:$0xf]
    %v722 = vpack.c.bf16 %v647, %v645
    %v723 = vpack.c.bf16 %v648, %v646
    %v724 = vpack.c.bf16 %v651, %v649
    %v725 = vpack.c.bf16 %v652, %v650
    %v727 = vlaneseq
    %v728 = vshrl.u32 %v727, 7
    %v729 = vsub.s32 0, %v728
    %v730 = vrot.slane %v721, %v729
    %v731 = vlaneseq
    %v732 = vshrl.u32 %v731, 7
    %v733 = vsub.s32 1, %v732
    %v734 = vrot.slane %v721, %v733
    %v735 = vlaneseq
    %v736 = vshrl.u32 %v735, 7
    %v737 = vsub.s32 2, %v736
    %v738 = vrot.slane %v721, %v737
    %v739 = vlaneseq
    %v740 = vshrl.u32 %v739, 7
    %v741 = vsub.s32 3, %v740
    %v742 = vrot.slane %v721, %v741
    %747 = vmatprep.subr.bf16.mxu0 %v658
    %748 = vmatpush1.bf16.msra.mxu0 %v657
    %749 = vmatprep.subr.bf16.mxu0 %v662
    %750 = vmatpush1.bf16.msra.mxu0 %v661
    %751 = vmatprep.subr.bf16.mxu0 %v666
    %752 = vmatpush1.bf16.msra.mxu0 %v665
    %753 = vmatprep.subr.bf16.mxu0 %v670
    %754 = vmatpush1.bf16.msra.mxu0 %v669
    %755 = vmatprep.subr.bf16.mxu0 %v674
    %756 = vmatpush1.bf16.msra.mxu0 %v673
    %757 = vmatprep.subr.bf16.mxu0 %v678
    %758 = vmatpush1.bf16.msra.mxu0 %v677
    %759 = vmatprep.subr.bf16.mxu0 %v682
    %760 = vmatpush1.bf16.msra.mxu0 %v681
    %761 = vmatprep.subr.bf16.mxu0 %v686
    %762 = vmatpush1.bf16.msra.mxu0 %v685
    %763 = vmatprep.subr.bf16.mxu0 %v690
    %764 = vmatpush1.bf16.msra.mxu0 %v689
    %765 = vmatprep.subr.bf16.mxu0 %v694
    %766 = vmatpush1.bf16.msra.mxu0 %v693
    %767 = vmatprep.subr.bf16.mxu0 %v698
    %768 = vmatpush1.bf16.msra.mxu0 %v697
    %769 = vmatprep.subr.bf16.mxu0 %v702
    %770 = vmatpush1.bf16.msra.mxu0 %v701
    %771 = vmatprep.subr.bf16.mxu0 %v706
    %772 = vmatpush1.bf16.msra.mxu0 %v705
    %773 = vmatprep.subr.bf16.mxu0 %v710
    %774 = vmatpush1.bf16.msra.mxu0 %v709
    %775 = vmatprep.subr.bf16.mxu0 %v714
    %776 = vmatpush1.bf16.msra.mxu0 %v713
    %777 = vmatprep.subr.bf16.mxu0 %v718
    %778 = vmatpush1.bf16.msra.mxu0 %v717
    %779 = vmatprep.mubr.bf16.mxu0 %v723
    %780 = vmatmul.mubr.bf16.gmra.mrb[0].mxu0 %v722
    %v781 = vpop.f32.mrb[0].mxu0
    %v782 = vadd.f32 %v730, %v781
    %v783 = vpop.f32.mrb[0].mxu0
    %v784 = vadd.f32 %v734, %v783
    %v785 = vpop.f32.mrb[0].mxu0
    %v786 = vadd.f32 %v730, %v785
    %v787 = vpop.f32.mrb[0].mxu0
    %v788 = vadd.f32 %v734, %v787
    %789 = vmatprep.mubr.bf16.mxu0 %v725
    %790 = vmatmul.mubr.bf16.gmra.mrb[0].mxu0 %v724
    %v791 = vpop.f32.mrb[0].mxu0
    %v792 = vadd.f32 %v730, %v791
    %v793 = vpop.f32.mrb[0].mxu0
    %v794 = vadd.f32 %v734, %v793
    %v795 = vpop.f32.mrb[0].mxu0
    %v796 = vadd.f32 %v730, %v795
    %v797 = vpop.f32.mrb[0].mxu0
    %v798 = vadd.f32 %v734, %v797
    %799 = vdwg.mxu0
    %800 = vmatprep.subr.bf16.mxu0 %v660
    %801 = vmatpush1.bf16.msra.mxu0 %v659
    %802 = vmatprep.subr.bf16.mxu0 %v664
    %803 = vmatpush1.bf16.msra.mxu0 %v663
    %804 = vmatprep.subr.bf16.mxu0 %v668
    %805 = vmatpush1.bf16.msra.mxu0 %v667
    %806 = vmatprep.subr.bf16.mxu0 %v672
    %807 = vmatpush1.bf16.msra.mxu0 %v671
    %808 = vmatprep.subr.bf16.mxu0 %v676
    %809 = vmatpush1.bf16.msra.mxu0 %v675
    %810 = vmatprep.subr.bf16.mxu0 %v680
    %811 = vmatpush1.bf16.msra.mxu0 %v679
    %812 = vmatprep.subr.bf16.mxu0 %v684
    %813 = vmatpush1.bf16.msra.mxu0 %v683
    %814 = vmatprep.subr.bf16.mxu0 %v688
    %815 = vmatpush1.bf16.msra.mxu0 %v687
    %816 = vmatprep.subr.bf16.mxu0 %v692
    %817 = vmatpush1.bf16.msra.mxu0 %v691
    %818 = vmatprep.subr.bf16.mxu0 %v696
    %819 = vmatpush1.bf16.msra.mxu0 %v695
    %820 = vmatprep.subr.bf16.mxu0 %v700
    %821 = vmatpush1.bf16.msra.mxu0 %v699
    %822 = vmatprep.subr.bf16.mxu0 %v704
    %823 = vmatpush1.bf16.msra.mxu0 %v703
    %824 = vmatprep.subr.bf16.mxu0 %v708
    %825 = vmatpush1.bf16.msra.mxu0 %v707
    %826 = vmatprep.subr.bf16.mxu0 %v712
    %827 = vmatpush1.bf16.msra.mxu0 %v711
    %828 = vmatprep.subr.bf16.mxu0 %v716
    %829 = vmatpush1.bf16.msra.mxu0 %v715
    %830 = vmatprep.subr.bf16.mxu0 %v720
    %831 = vmatpush1.bf16.msra.mxu0 %v719
    %832 = vmatprep.mubr.bf16.mxu0 %v723
    %833 = vmatmul.mubr.bf16.gmra.mrb[0].mxu0 %v722
    %v834 = vpop.f32.mrb[0].mxu0
    %v835 = vadd.f32 %v738, %v834
    %v836 = vpop.f32.mrb[0].mxu0
    %v837 = vadd.f32 %v742, %v836
    %v838 = vpop.f32.mrb[0].mxu0
    %v839 = vadd.f32 %v738, %v838
    %v840 = vpop.f32.mrb[0].mxu0
    %v841 = vadd.f32 %v742, %v840
    %842 = vmatprep.mubr.bf16.mxu0 %v725
    %843 = vmatmul.mubr.bf16.gmra.mrb[0].mxu0 %v724
    %v844 = vpop.f32.mrb[0].mxu0
    %v845 = vadd.f32 %v738, %v844
    %v846 = vpop.f32.mrb[0].mxu0
    %v847 = vadd.f32 %v742, %v846
    %v848 = vpop.f32.mrb[0].mxu0
    %v849 = vadd.f32 %v738, %v848
    %v850 = vpop.f32.mrb[0].mxu0
    %v851 = vadd.f32 %v742, %v850
    %852 = vdwg.mxu0
    %v853 = vld [vmem:[#allocation19] sm:$0xf]
    %v854 = vld [vmem:[#allocation20] sm:$0xf]
    %v855 = vadd.f32 %v782, %v786
    %v856 = vadd.f32 %v855, %v792
    %v857 = vadd.f32 %v856, %v796
    %v858 = vrot.slane %v857, 4
    %v859 = vadd.f32 %v857, %v858
    %v860 = vrot.slane %v859, 2
    %v861 = vadd.f32 %v859, %v860
    %v862 = vrot.slane %v861, 1
    %v863 = vadd.f32 %v861, %v862
    %v864 = vadd.f32 %v784, %v788
    %v865 = vadd.f32 %v864, %v794
    %v866 = vadd.f32 %v865, %v798
    %v867 = vrot.slane %v866, 4
    %v868 = vadd.f32 %v866, %v867
    %v869 = vrot.slane %v868, 2
    %v870 = vadd.f32 %v868, %v869
    %v871 = vrot.slane %v870, 1
    %v872 = vadd.f32 %v870, %v871
    %v873 = vadd.f32 %v835, %v839
    %v874 = vadd.f32 %v873, %v845
    %v875 = vadd.f32 %v874, %v849
    %v876 = vrot.slane %v875, 4
    %v877 = vadd.f32 %v875, %v876
    %v878 = vrot.slane %v877, 2
    %v879 = vadd.f32 %v877, %v878
    %v880 = vrot.slane %v879, 1
    %v881 = vadd.f32 %v879, %v880
    %v882 = vadd.f32 %v837, %v841
    %v883 = vadd.f32 %v882, %v847
    %v884 = vadd.f32 %v883, %v851
    %v885 = vrot.slane %v884, 4
    %v886 = vadd.f32 %v884, %v885
    %v887 = vrot.slane %v886, 2
    %v888 = vadd.f32 %v886, %v887
    %v889 = vrot.slane %v888, 1
    %v890 = vadd.f32 %v888, %v889
    %v891 = vmul.f32 %v782, %v782
    %v892 = vmul.f32 %v784, %v784
    %v893 = vmul.f32 %v835, %v835
    %v894 = vmul.f32 %v837, %v837
    %v895 = vmul.f32 %v786, %v786
    %v896 = vmul.f32 %v788, %v788
    %v897 = vmul.f32 %v839, %v839
    %v898 = vmul.f32 %v841, %v841
    %v899 = vmul.f32 %v792, %v792
    %v900 = vmul.f32 %v794, %v794
    %v901 = vmul.f32 %v845, %v845
    %v902 = vmul.f32 %v847, %v847
    %v903 = vmul.f32 %v796, %v796
    %v904 = vmul.f32 %v798, %v798
    %v905 = vmul.f32 %v849, %v849
    %v906 = vmul.f32 %v851, %v851
    %v907 = vadd.f32 %v891, %v895
    %v908 = vadd.f32 %v907, %v899
    %v909 = vadd.f32 %v908, %v903
    %v910 = vrot.slane %v909, 4
    %v911 = vadd.f32 %v909, %v910
    %v912 = vrot.slane %v911, 2
    %v913 = vadd.f32 %v911, %v912
    %v914 = vrot.slane %v913, 1
    %v915 = vadd.f32 %v913, %v914
    %v916 = vadd.f32 %v892, %v896
    %v917 = vadd.f32 %v916, %v900
    %v918 = vadd.f32 %v917, %v904
    %v919 = vrot.slane %v918, 4
    %v920 = vadd.f32 %v918, %v919
    %v921 = vrot.slane %v920, 2
    %v922 = vadd.f32 %v920, %v921
    %v923 = vrot.slane %v922, 1
    %v924 = vadd.f32 %v922, %v923
    %v925 = vadd.f32 %v893, %v897
    %v926 = vadd.f32 %v925, %v901
    %v927 = vadd.f32 %v926, %v905
    %v928 = vrot.slane %v927, 4
    %v929 = vadd.f32 %v927, %v928
    %v930 = vrot.slane %v929, 2
    %v931 = vadd.f32 %v929, %v930
    %v932 = vrot.slane %v931, 1
    %v933 = vadd.f32 %v931, %v932
    %v934 = vadd.f32 %v894, %v898
    %v935 = vadd.f32 %v934, %v902
    %v936 = vadd.f32 %v935, %v906
    %v937 = vrot.slane %v936, 4
    %v938 = vadd.f32 %v936, %v937
    %v939 = vrot.slane %v938, 2
    %v940 = vadd.f32 %v938, %v939
    %v941 = vrot.slane %v940, 1
    %v942 = vadd.f32 %v940, %v941
    %v943 = vmul.f32 %v863, 0.03125
    %v944 = vmul.f32 %v872, 0.03125
    %v945 = vmul.f32 %v881, 0.03125
    %v946 = vmul.f32 %v890, 0.03125
    %v947 = vmul.f32 %v915, 0.03125
    %v948 = vmul.f32 %v924, 0.03125
    %v949 = vmul.f32 %v933, 0.03125
    %v950 = vmul.f32 %v942, 0.03125
    %v951 = vmul.f32 %v943, %v943
    %v952 = vmul.f32 %v944, %v944
    %v953 = vmul.f32 %v945, %v945
    %v954 = vmul.f32 %v946, %v946
    %v955 = vsub.f32 %v947, %v951
    %v956 = vsub.f32 %v948, %v952
    %v957 = vsub.f32 %v949, %v953
    %v958 = vsub.f32 %v950, %v954
    %v959 = vmax.f32 %v955, 0.0
    %v960 = vmax.f32 %v956, 0.0
    %v961 = vmax.f32 %v957, 0.0
    %v962 = vmax.f32 %v958, 0.0
    %v963 = vsub.f32 %v782, %v943
    %v964 = vsub.f32 %v784, %v944
    %v965 = vsub.f32 %v835, %v945
    %v966 = vsub.f32 %v837, %v946
    %v967 = vsub.f32 %v786, %v943
    %v968 = vsub.f32 %v788, %v944
    %v969 = vsub.f32 %v839, %v945
    %v970 = vsub.f32 %v841, %v946
    %v971 = vsub.f32 %v792, %v943
    %v972 = vsub.f32 %v794, %v944
    %v973 = vsub.f32 %v845, %v945
    %v974 = vsub.f32 %v847, %v946
    %v975 = vsub.f32 %v796, %v943
    %v976 = vsub.f32 %v798, %v944
    %v977 = vsub.f32 %v849, %v945
    %v978 = vsub.f32 %v851, %v946
    %v979 = vadd.f32 %v959, 1e-05
    %v980 = vadd.f32 %v960, 1e-05
    %v981 = vadd.f32 %v961, 1e-05
    %v982 = vadd.f32 %v962, 1e-05
    %v983 = vrsqrt.pop %v979
    %v984 = vrsqrt.pop %v980
    %v985 = vrsqrt.pop %v981
    %v986 = vrsqrt.pop %v982
    %v987 = vmul.f32 %v963, %v983
    %v988 = vmul.f32 %v964, %v984
    %v989 = vmul.f32 %v965, %v985
    %v990 = vmul.f32 %v966, %v986
    %v991 = vmul.f32 %v967, %v983
    %v992 = vmul.f32 %v968, %v984
    %v993 = vmul.f32 %v969, %v985
    %v994 = vmul.f32 %v970, %v986
    %v995 = vmul.f32 %v971, %v983
    %v996 = vmul.f32 %v972, %v984
    %v997 = vmul.f32 %v973, %v985
    %v998 = vmul.f32 %v974, %v986
    %v999 = vmul.f32 %v975, %v983
    %v1000 = vmul.f32 %v976, %v984
    %v1001 = vmul.f32 %v977, %v985
    %v1002 = vmul.f32 %v978, %v986
    %v1004 = vlaneseq
    %v1005 = vshrl.u32 %v1004, 7
    %v1006 = vsub.s32 0, %v1005
    %v1007 = vrot.slane %v853, %v1006
    %v1008 = vlaneseq
    %v1009 = vshrl.u32 %v1008, 7
    %v1010 = vsub.s32 1, %v1009
    %v1011 = vrot.slane %v853, %v1010
    %v1012 = vlaneseq
    %v1013 = vshrl.u32 %v1012, 7
    %v1014 = vsub.s32 2, %v1013
    %v1015 = vrot.slane %v853, %v1014
    %v1016 = vlaneseq
    %v1017 = vshrl.u32 %v1016, 7
    %v1018 = vsub.s32 3, %v1017
    %v1019 = vrot.slane %v853, %v1018
    %v1024 = vmul.f32 %v987, %v1007
    %v1025 = vmul.f32 %v988, %v1011
    %v1026 = vmul.f32 %v989, %v1015
    %v1027 = vmul.f32 %v990, %v1019
    %v1028 = vmul.f32 %v991, %v1007
    %v1029 = vmul.f32 %v992, %v1011
    %v1030 = vmul.f32 %v993, %v1015
    %v1031 = vmul.f32 %v994, %v1019
    %v1032 = vmul.f32 %v995, %v1007
    %v1033 = vmul.f32 %v996, %v1011
    %v1034 = vmul.f32 %v997, %v1015
    %v1035 = vmul.f32 %v998, %v1019
    %v1036 = vmul.f32 %v999, %v1007
    %v1037 = vmul.f32 %v1000, %v1011
    %v1038 = vmul.f32 %v1001, %v1015
    %v1039 = vmul.f32 %v1002, %v1019
    %v1041 = vlaneseq
    %v1042 = vshrl.u32 %v1041, 7
    %v1043 = vsub.s32 0, %v1042
    %v1044 = vrot.slane %v854, %v1043
    %v1045 = vlaneseq
    %v1046 = vshrl.u32 %v1045, 7
    %v1047 = vsub.s32 1, %v1046
    %v1048 = vrot.slane %v854, %v1047
    %v1049 = vlaneseq
    %v1050 = vshrl.u32 %v1049, 7
    %v1051 = vsub.s32 2, %v1050
    %v1052 = vrot.slane %v854, %v1051
    %v1053 = vlaneseq
    %v1054 = vshrl.u32 %v1053, 7
    %v1055 = vsub.s32 3, %v1054
    %v1056 = vrot.slane %v854, %v1055
    %v1061 = vadd.f32 %v1024, %v1044
    %v1062 = vadd.f32 %v1025, %v1048
    %v1063 = vadd.f32 %v1026, %v1052
    %v1064 = vadd.f32 %v1027, %v1056
    %v1065 = vadd.f32 %v1028, %v1044
    %v1066 = vadd.f32 %v1029, %v1048
    %v1067 = vadd.f32 %v1030, %v1052
    %v1068 = vadd.f32 %v1031, %v1056
    %v1069 = vadd.f32 %v1032, %v1044
    %v1070 = vadd.f32 %v1033, %v1048
    %v1071 = vadd.f32 %v1034, %v1052
    %v1072 = vadd.f32 %v1035, %v1056
    %v1073 = vadd.f32 %v1036, %v1044
    %v1074 = vadd.f32 %v1037, %v1048
    %v1075 = vadd.f32 %v1038, %v1052
    %v1076 = vadd.f32 %v1039, %v1056
    %vm1077 = vcmp.gt.f32.partialorder %v1061, 0.0
    %vm1078 = vcmp.gt.f32.partialorder %v1062, 0.0
    %vm1079 = vcmp.gt.f32.partialorder %v1063, 0.0
    %vm1080 = vcmp.gt.f32.partialorder %v1064, 0.0
    %vm1081 = vcmp.gt.f32.partialorder %v1065, 0.0
    %vm1082 = vcmp.gt.f32.partialorder %v1066, 0.0
    %vm1083 = vcmp.gt.f32.partialorder %v1067, 0.0
    %vm1084 = vcmp.gt.f32.partialorder %v1068, 0.0
    %vm1085 = vcmp.gt.f32.partialorder %v1069, 0.0
    %vm1086 = vcmp.gt.f32.partialorder %v1070, 0.0
    %vm1087 = vcmp.gt.f32.partialorder %v1071, 0.0
    %vm1088 = vcmp.gt.f32.partialorder %v1072, 0.0
    %vm1089 = vcmp.gt.f32.partialorder %v1073, 0.0
    %vm1090 = vcmp.gt.f32.partialorder %v1074, 0.0
    %vm1091 = vcmp.gt.f32.partialorder %v1075, 0.0
    %vm1092 = vcmp.gt.f32.partialorder %v1076, 0.0
    %v1093 = vmul.f32 %v1061, 0.2
    %v1094 = vmul.f32 %v1062, 0.2
    %v1095 = vmul.f32 %v1063, 0.2
    %v1096 = vmul.f32 %v1064, 0.2
    %v1097 = vmul.f32 %v1065, 0.2
    %v1098 = vmul.f32 %v1066, 0.2
    %v1099 = vmul.f32 %v1067, 0.2
    %v1100 = vmul.f32 %v1068, 0.2
    %v1101 = vmul.f32 %v1069, 0.2
    %v1102 = vmul.f32 %v1070, 0.2
    %v1103 = vmul.f32 %v1071, 0.2
    %v1104 = vmul.f32 %v1072, 0.2
    %v1105 = vmul.f32 %v1073, 0.2
    %v1106 = vmul.f32 %v1074, 0.2
    %v1107 = vmul.f32 %v1075, 0.2
    %v1108 = vmul.f32 %v1076, 0.2
    %v1109 = vsel %vm1077, %v1061, %v1093
    %v1110 = vsel %vm1078, %v1062, %v1094
    %v1111 = vsel %vm1079, %v1063, %v1095
    %v1112 = vsel %vm1080, %v1064, %v1096
    %v1113 = vsel %vm1081, %v1065, %v1097
    %v1114 = vsel %vm1082, %v1066, %v1098
    %v1115 = vsel %vm1083, %v1067, %v1099
    %v1116 = vsel %vm1084, %v1068, %v1100
    %v1117 = vsel %vm1085, %v1069, %v1101
    %v1118 = vsel %vm1086, %v1070, %v1102
    %v1119 = vsel %vm1087, %v1071, %v1103
    %v1120 = vsel %vm1088, %v1072, %v1104
    %v1121 = vsel %vm1089, %v1073, %v1105
    %v1122 = vsel %vm1090, %v1074, %v1106
    %v1123 = vsel %vm1091, %v1075, %v1107
    %v1124 = vsel %vm1092, %v1076, %v1108
    %s1125 = smul.u32 4, 64
    %s1126 = smul.u32 %s1125, 8
    %s1127 = sshll.u32 %s1126, 4
    %1128 = dma.done %s271, %s1127
    %v1129 = vld [vmem:[#allocation5] sm:$0xff]
    %v1130 = vld [vmem:[#allocation5 + $0x8] sm:$0xff]
    %v1131 = vld [vmem:[#allocation5 + $0x10] sm:$0xff]
    %v1132 = vld [vmem:[#allocation5 + $0x18] sm:$0xff]
    %v1133 = vld [vmem:[#allocation5 + $0x20] sm:$0xff]
    %v1134 = vld [vmem:[#allocation5 + $0x28] sm:$0xff]
    %v1135 = vld [vmem:[#allocation5 + $0x30] sm:$0xff]
    %v1136 = vld [vmem:[#allocation5 + $0x38] sm:$0xff]
    %v1137 = vld [vmem:[#allocation5 + $0x40] sm:$0xff]
    %v1138 = vld [vmem:[#allocation5 + $0x48] sm:$0xff]
    %v1139 = vld [vmem:[#allocation5 + $0x50] sm:$0xff]
    %v1140 = vld [vmem:[#allocation5 + $0x58] sm:$0xff]
    %v1141 = vld [vmem:[#allocation5 + $0x60] sm:$0xff]
    %v1142 = vld [vmem:[#allocation5 + $0x68] sm:$0xff]
    %v1143 = vld [vmem:[#allocation5 + $0x70] sm:$0xff]
    %v1144 = vld [vmem:[#allocation5 + $0x78] sm:$0xff]
    %v1145 = vld [vmem:[#allocation5 + $0x80] sm:$0xff]
    %v1146 = vld [vmem:[#allocation5 + $0x88] sm:$0xff]
    %v1147 = vld [vmem:[#allocation5 + $0x90] sm:$0xff]
    %v1148 = vld [vmem:[#allocation5 + $0x98] sm:$0xff]
    %v1149 = vld [vmem:[#allocation5 + $0xa0] sm:$0xff]
    %v1150 = vld [vmem:[#allocation5 + $0xa8] sm:$0xff]
    %v1151 = vld [vmem:[#allocation5 + $0xb0] sm:$0xff]
    %v1152 = vld [vmem:[#allocation5 + $0xb8] sm:$0xff]
    %v1153 = vld [vmem:[#allocation5 + $0xc0] sm:$0xff]
    %v1154 = vld [vmem:[#allocation5 + $0xc8] sm:$0xff]
    %v1155 = vld [vmem:[#allocation5 + $0xd0] sm:$0xff]
    %v1156 = vld [vmem:[#allocation5 + $0xd8] sm:$0xff]
    %v1157 = vld [vmem:[#allocation5 + $0xe0] sm:$0xff]
    %v1158 = vld [vmem:[#allocation5 + $0xe8] sm:$0xff]
    %v1159 = vld [vmem:[#allocation5 + $0xf0] sm:$0xff]
    %v1160 = vld [vmem:[#allocation5 + $0xf8] sm:$0xff]
    %v1161 = vld [vmem:[#allocation5 + $0x100] sm:$0xff]
    %v1162 = vld [vmem:[#allocation5 + $0x108] sm:$0xff]
    %v1163 = vld [vmem:[#allocation5 + $0x110] sm:$0xff]
    %v1164 = vld [vmem:[#allocation5 + $0x118] sm:$0xff]
    %v1165 = vld [vmem:[#allocation5 + $0x120] sm:$0xff]
    %v1166 = vld [vmem:[#allocation5 + $0x128] sm:$0xff]
    %v1167 = vld [vmem:[#allocation5 + $0x130] sm:$0xff]
    %v1168 = vld [vmem:[#allocation5 + $0x138] sm:$0xff]
    %v1169 = vld [vmem:[#allocation5 + $0x140] sm:$0xff]
    %v1170 = vld [vmem:[#allocation5 + $0x148] sm:$0xff]
    %v1171 = vld [vmem:[#allocation5 + $0x150] sm:$0xff]
    %v1172 = vld [vmem:[#allocation5 + $0x158] sm:$0xff]
    %v1173 = vld [vmem:[#allocation5 + $0x160] sm:$0xff]
    %v1174 = vld [vmem:[#allocation5 + $0x168] sm:$0xff]
    %v1175 = vld [vmem:[#allocation5 + $0x170] sm:$0xff]
    %v1176 = vld [vmem:[#allocation5 + $0x178] sm:$0xff]
    %v1177 = vld [vmem:[#allocation5 + $0x180] sm:$0xff]
    %v1178 = vld [vmem:[#allocation5 + $0x188] sm:$0xff]
    %v1179 = vld [vmem:[#allocation5 + $0x190] sm:$0xff]
    %v1180 = vld [vmem:[#allocation5 + $0x198] sm:$0xff]
    %v1181 = vld [vmem:[#allocation5 + $0x1a0] sm:$0xff]
    %v1182 = vld [vmem:[#allocation5 + $0x1a8] sm:$0xff]
    %v1183 = vld [vmem:[#allocation5 + $0x1b0] sm:$0xff]
    %v1184 = vld [vmem:[#allocation5 + $0x1b8] sm:$0xff]
    %v1185 = vld [vmem:[#allocation5 + $0x1c0] sm:$0xff]
    %v1186 = vld [vmem:[#allocation5 + $0x1c8] sm:$0xff]
    %v1187 = vld [vmem:[#allocation5 + $0x1d0] sm:$0xff]
    %v1188 = vld [vmem:[#allocation5 + $0x1d8] sm:$0xff]
    %v1189 = vld [vmem:[#allocation5 + $0x1e0] sm:$0xff]
    %v1190 = vld [vmem:[#allocation5 + $0x1e8] sm:$0xff]
    %v1191 = vld [vmem:[#allocation5 + $0x1f0] sm:$0xff]
    %v1192 = vld [vmem:[#allocation5 + $0x1f8] sm:$0xff]
    %v1193 = vld [vmem:[#allocation5 + $0x200] sm:$0xff]
    %v1194 = vld [vmem:[#allocation5 + $0x208] sm:$0xff]
    %v1195 = vld [vmem:[#allocation5 + $0x210] sm:$0xff]
    %v1196 = vld [vmem:[#allocation5 + $0x218] sm:$0xff]
    %v1197 = vld [vmem:[#allocation5 + $0x220] sm:$0xff]
    %v1198 = vld [vmem:[#allocation5 + $0x228] sm:$0xff]
    %v1199 = vld [vmem:[#allocation5 + $0x230] sm:$0xff]
    %v1200 = vld [vmem:[#allocation5 + $0x238] sm:$0xff]
    %v1201 = vld [vmem:[#allocation5 + $0x240] sm:$0xff]
    %v1202 = vld [vmem:[#allocation5 + $0x248] sm:$0xff]
    %v1203 = vld [vmem:[#allocation5 + $0x250] sm:$0xff]
    %v1204 = vld [vmem:[#allocation5 + $0x258] sm:$0xff]
    %v1205 = vld [vmem:[#allocation5 + $0x260] sm:$0xff]
    %v1206 = vld [vmem:[#allocation5 + $0x268] sm:$0xff]
    %v1207 = vld [vmem:[#allocation5 + $0x270] sm:$0xff]
    %v1208 = vld [vmem:[#allocation5 + $0x278] sm:$0xff]
    %v1209 = vld [vmem:[#allocation5 + $0x280] sm:$0xff]
    %v1210 = vld [vmem:[#allocation5 + $0x288] sm:$0xff]
    %v1211 = vld [vmem:[#allocation5 + $0x290] sm:$0xff]
    %v1212 = vld [vmem:[#allocation5 + $0x298] sm:$0xff]
    %v1213 = vld [vmem:[#allocation5 + $0x2a0] sm:$0xff]
    %v1214 = vld [vmem:[#allocation5 + $0x2a8] sm:$0xff]
    %v1215 = vld [vmem:[#allocation5 + $0x2b0] sm:$0xff]
    %v1216 = vld [vmem:[#allocation5 + $0x2b8] sm:$0xff]
    %v1217 = vld [vmem:[#allocation5 + $0x2c0] sm:$0xff]
    %v1218 = vld [vmem:[#allocation5 + $0x2c8] sm:$0xff]
    %v1219 = vld [vmem:[#allocation5 + $0x2d0] sm:$0xff]
    %v1220 = vld [vmem:[#allocation5 + $0x2d8] sm:$0xff]
    %v1221 = vld [vmem:[#allocation5 + $0x2e0] sm:$0xff]
    %v1222 = vld [vmem:[#allocation5 + $0x2e8] sm:$0xff]
    %v1223 = vld [vmem:[#allocation5 + $0x2f0] sm:$0xff]
    %v1224 = vld [vmem:[#allocation5 + $0x2f8] sm:$0xff]
    %v1225 = vld [vmem:[#allocation5 + $0x300] sm:$0xff]
    %v1226 = vld [vmem:[#allocation5 + $0x308] sm:$0xff]
    %v1227 = vld [vmem:[#allocation5 + $0x310] sm:$0xff]
    %v1228 = vld [vmem:[#allocation5 + $0x318] sm:$0xff]
    %v1229 = vld [vmem:[#allocation5 + $0x320] sm:$0xff]
    %v1230 = vld [vmem:[#allocation5 + $0x328] sm:$0xff]
    %v1231 = vld [vmem:[#allocation5 + $0x330] sm:$0xff]
    %v1232 = vld [vmem:[#allocation5 + $0x338] sm:$0xff]
    %v1233 = vld [vmem:[#allocation5 + $0x340] sm:$0xff]
    %v1234 = vld [vmem:[#allocation5 + $0x348] sm:$0xff]
    %v1235 = vld [vmem:[#allocation5 + $0x350] sm:$0xff]
    %v1236 = vld [vmem:[#allocation5 + $0x358] sm:$0xff]
    %v1237 = vld [vmem:[#allocation5 + $0x360] sm:$0xff]
    %v1238 = vld [vmem:[#allocation5 + $0x368] sm:$0xff]
    %v1239 = vld [vmem:[#allocation5 + $0x370] sm:$0xff]
    %v1240 = vld [vmem:[#allocation5 + $0x378] sm:$0xff]
    %v1241 = vld [vmem:[#allocation5 + $0x380] sm:$0xff]
    %v1242 = vld [vmem:[#allocation5 + $0x388] sm:$0xff]
    %v1243 = vld [vmem:[#allocation5 + $0x390] sm:$0xff]
    %v1244 = vld [vmem:[#allocation5 + $0x398] sm:$0xff]
    %v1245 = vld [vmem:[#allocation5 + $0x3a0] sm:$0xff]
    %v1246 = vld [vmem:[#allocation5 + $0x3a8] sm:$0xff]
    %v1247 = vld [vmem:[#allocation5 + $0x3b0] sm:$0xff]
    %v1248 = vld [vmem:[#allocation5 + $0x3b8] sm:$0xff]
    %v1249 = vld [vmem:[#allocation5 + $0x3c0] sm:$0xff]
    %v1250 = vld [vmem:[#allocation5 + $0x3c8] sm:$0xff]
    %v1251 = vld [vmem:[#allocation5 + $0x3d0] sm:$0xff]
    %v1252 = vld [vmem:[#allocation5 + $0x3d8] sm:$0xff]
    %v1253 = vld [vmem:[#allocation5 + $0x3e0] sm:$0xff]
    %v1254 = vld [vmem:[#allocation5 + $0x3e8] sm:$0xff]
    %v1255 = vld [vmem:[#allocation5 + $0x3f0] sm:$0xff]
    %v1256 = vld [vmem:[#allocation5 + $0x3f8] sm:$0xff]
    %v1257 = vld [vmem:[#allocation5 + $0x400] sm:$0xff]
    %v1258 = vld [vmem:[#allocation5 + $0x408] sm:$0xff]
    %v1259 = vld [vmem:[#allocation5 + $0x410] sm:$0xff]
    %v1260 = vld [vmem:[#allocation5 + $0x418] sm:$0xff]
    %v1261 = vld [vmem:[#allocation5 + $0x420] sm:$0xff]
    %v1262 = vld [vmem:[#allocation5 + $0x428] sm:$0xff]
    %v1263 = vld [vmem:[#allocation5 + $0x430] sm:$0xff]
    %v1264 = vld [vmem:[#allocation5 + $0x438] sm:$0xff]
    %v1265 = vld [vmem:[#allocation5 + $0x440] sm:$0xff]
    %v1266 = vld [vmem:[#allocation5 + $0x448] sm:$0xff]
    %v1267 = vld [vmem:[#allocation5 + $0x450] sm:$0xff]
    %v1268 = vld [vmem:[#allocation5 + $0x458] sm:$0xff]
    %v1269 = vld [vmem:[#allocation5 + $0x460] sm:$0xff]
    %v1270 = vld [vmem:[#allocation5 + $0x468] sm:$0xff]
    %v1271 = vld [vmem:[#allocation5 + $0x470] sm:$0xff]
    %v1272 = vld [vmem:[#allocation5 + $0x478] sm:$0xff]
    %v1273 = vld [vmem:[#allocation5 + $0x480] sm:$0xff]
    %v1274 = vld [vmem:[#allocation5 + $0x488] sm:$0xff]
    %v1275 = vld [vmem:[#allocation5 + $0x490] sm:$0xff]
    %v1276 = vld [vmem:[#allocation5 + $0x498] sm:$0xff]
    %v1277 = vld [vmem:[#allocation5 + $0x4a0] sm:$0xff]
    %v1278 = vld [vmem:[#allocation5 + $0x4a8] sm:$0xff]
    %v1279 = vld [vmem:[#allocation5 + $0x4b0] sm:$0xff]
    %v1280 = vld [vmem:[#allocation5 + $0x4b8] sm:$0xff]
    %v1281 = vld [vmem:[#allocation5 + $0x4c0] sm:$0xff]
    %v1282 = vld [vmem:[#allocation5 + $0x4c8] sm:$0xff]
    %v1283 = vld [vmem:[#allocation5 + $0x4d0] sm:$0xff]
    %v1284 = vld [vmem:[#allocation5 + $0x4d8] sm:$0xff]
    %v1285 = vld [vmem:[#allocation5 + $0x4e0] sm:$0xff]
    %v1286 = vld [vmem:[#allocation5 + $0x4e8] sm:$0xff]
    %v1287 = vld [vmem:[#allocation5 + $0x4f0] sm:$0xff]
    %v1288 = vld [vmem:[#allocation5 + $0x4f8] sm:$0xff]
    %v1289 = vld [vmem:[#allocation5 + $0x500] sm:$0xff]
    %v1290 = vld [vmem:[#allocation5 + $0x508] sm:$0xff]
    %v1291 = vld [vmem:[#allocation5 + $0x510] sm:$0xff]
    %v1292 = vld [vmem:[#allocation5 + $0x518] sm:$0xff]
    %v1293 = vld [vmem:[#allocation5 + $0x520] sm:$0xff]
    %v1294 = vld [vmem:[#allocation5 + $0x528] sm:$0xff]
    %v1295 = vld [vmem:[#allocation5 + $0x530] sm:$0xff]
    %v1296 = vld [vmem:[#allocation5 + $0x538] sm:$0xff]
    %v1297 = vld [vmem:[#allocation5 + $0x540] sm:$0xff]
    %v1298 = vld [vmem:[#allocation5 + $0x548] sm:$0xff]
    %v1299 = vld [vmem:[#allocation5 + $0x550] sm:$0xff]
    %v1300 = vld [vmem:[#allocation5 + $0x558] sm:$0xff]
    %v1301 = vld [vmem:[#allocation5 + $0x560] sm:$0xff]
    %v1302 = vld [vmem:[#allocation5 + $0x568] sm:$0xff]
    %v1303 = vld [vmem:[#allocation5 + $0x570] sm:$0xff]
    %v1304 = vld [vmem:[#allocation5 + $0x578] sm:$0xff]
    %v1305 = vld [vmem:[#allocation5 + $0x580] sm:$0xff]
    %v1306 = vld [vmem:[#allocation5 + $0x588] sm:$0xff]
    %v1307 = vld [vmem:[#allocation5 + $0x590] sm:$0xff]
    %v1308 = vld [vmem:[#allocation5 + $0x598] sm:$0xff]
    %v1309 = vld [vmem:[#allocation5 + $0x5a0] sm:$0xff]
    %v1310 = vld [vmem:[#allocation5 + $0x5a8] sm:$0xff]
    %v1311 = vld [vmem:[#allocation5 + $0x5b0] sm:$0xff]
    %v1312 = vld [vmem:[#allocation5 + $0x5b8] sm:$0xff]
    %v1313 = vld [vmem:[#allocation5 + $0x5c0] sm:$0xff]
    %v1314 = vld [vmem:[#allocation5 + $0x5c8] sm:$0xff]
    %v1315 = vld [vmem:[#allocation5 + $0x5d0] sm:$0xff]
    %v1316 = vld [vmem:[#allocation5 + $0x5d8] sm:$0xff]
    %v1317 = vld [vmem:[#allocation5 + $0x5e0] sm:$0xff]
    %v1318 = vld [vmem:[#allocation5 + $0x5e8] sm:$0xff]
    %v1319 = vld [vmem:[#allocation5 + $0x5f0] sm:$0xff]
    %v1320 = vld [vmem:[#allocation5 + $0x5f8] sm:$0xff]
    %v1321 = vld [vmem:[#allocation5 + $0x600] sm:$0xff]
    %v1322 = vld [vmem:[#allocation5 + $0x608] sm:$0xff]
    %v1323 = vld [vmem:[#allocation5 + $0x610] sm:$0xff]
    %v1324 = vld [vmem:[#allocation5 + $0x618] sm:$0xff]
    %v1325 = vld [vmem:[#allocation5 + $0x620] sm:$0xff]
    %v1326 = vld [vmem:[#allocation5 + $0x628] sm:$0xff]
    %v1327 = vld [vmem:[#allocation5 + $0x630] sm:$0xff]
    %v1328 = vld [vmem:[#allocation5 + $0x638] sm:$0xff]
    %v1329 = vld [vmem:[#allocation5 + $0x640] sm:$0xff]
    %v1330 = vld [vmem:[#allocation5 + $0x648] sm:$0xff]
    %v1331 = vld [vmem:[#allocation5 + $0x650] sm:$0xff]
    %v1332 = vld [vmem:[#allocation5 + $0x658] sm:$0xff]
    %v1333 = vld [vmem:[#allocation5 + $0x660] sm:$0xff]
    %v1334 = vld [vmem:[#allocation5 + $0x668] sm:$0xff]
    %v1335 = vld [vmem:[#allocation5 + $0x670] sm:$0xff]
    %v1336 = vld [vmem:[#allocation5 + $0x678] sm:$0xff]
    %v1337 = vld [vmem:[#allocation5 + $0x680] sm:$0xff]
    %v1338 = vld [vmem:[#allocation5 + $0x688] sm:$0xff]
    %v1339 = vld [vmem:[#allocation5 + $0x690] sm:$0xff]
    %v1340 = vld [vmem:[#allocation5 + $0x698] sm:$0xff]
    %v1341 = vld [vmem:[#allocation5 + $0x6a0] sm:$0xff]
    %v1342 = vld [vmem:[#allocation5 + $0x6a8] sm:$0xff]
    %v1343 = vld [vmem:[#allocation5 + $0x6b0] sm:$0xff]
    %v1344 = vld [vmem:[#allocation5 + $0x6b8] sm:$0xff]
    %v1345 = vld [vmem:[#allocation5 + $0x6c0] sm:$0xff]
    %v1346 = vld [vmem:[#allocation5 + $0x6c8] sm:$0xff]
    %v1347 = vld [vmem:[#allocation5 + $0x6d0] sm:$0xff]
    %v1348 = vld [vmem:[#allocation5 + $0x6d8] sm:$0xff]
    %v1349 = vld [vmem:[#allocation5 + $0x6e0] sm:$0xff]
    %v1350 = vld [vmem:[#allocation5 + $0x6e8] sm:$0xff]
    %v1351 = vld [vmem:[#allocation5 + $0x6f0] sm:$0xff]
    %v1352 = vld [vmem:[#allocation5 + $0x6f8] sm:$0xff]
    %v1353 = vld [vmem:[#allocation5 + $0x700] sm:$0xff]
    %v1354 = vld [vmem:[#allocation5 + $0x708] sm:$0xff]
    %v1355 = vld [vmem:[#allocation5 + $0x710] sm:$0xff]
    %v1356 = vld [vmem:[#allocation5 + $0x718] sm:$0xff]
    %v1357 = vld [vmem:[#allocation5 + $0x720] sm:$0xff]
    %v1358 = vld [vmem:[#allocation5 + $0x728] sm:$0xff]
    %v1359 = vld [vmem:[#allocation5 + $0x730] sm:$0xff]
    %v1360 = vld [vmem:[#allocation5 + $0x738] sm:$0xff]
    %v1361 = vld [vmem:[#allocation5 + $0x740] sm:$0xff]
    %v1362 = vld [vmem:[#allocation5 + $0x748] sm:$0xff]
    %v1363 = vld [vmem:[#allocation5 + $0x750] sm:$0xff]
    %v1364 = vld [vmem:[#allocation5 + $0x758] sm:$0xff]
    %v1365 = vld [vmem:[#allocation5 + $0x760] sm:$0xff]
    %v1366 = vld [vmem:[#allocation5 + $0x768] sm:$0xff]
    %v1367 = vld [vmem:[#allocation5 + $0x770] sm:$0xff]
    %v1368 = vld [vmem:[#allocation5 + $0x778] sm:$0xff]
    %v1369 = vld [vmem:[#allocation5 + $0x780] sm:$0xff]
    %v1370 = vld [vmem:[#allocation5 + $0x788] sm:$0xff]
    %v1371 = vld [vmem:[#allocation5 + $0x790] sm:$0xff]
    %v1372 = vld [vmem:[#allocation5 + $0x798] sm:$0xff]
    %v1373 = vld [vmem:[#allocation5 + $0x7a0] sm:$0xff]
    %v1374 = vld [vmem:[#allocation5 + $0x7a8] sm:$0xff]
    %v1375 = vld [vmem:[#allocation5 + $0x7b0] sm:$0xff]
    %v1376 = vld [vmem:[#allocation5 + $0x7b8] sm:$0xff]
    %v1377 = vld [vmem:[#allocation5 + $0x7c0] sm:$0xff]
    %v1378 = vld [vmem:[#allocation5 + $0x7c8] sm:$0xff]
    %v1379 = vld [vmem:[#allocation5 + $0x7d0] sm:$0xff]
    %v1380 = vld [vmem:[#allocation5 + $0x7d8] sm:$0xff]
    %v1381 = vld [vmem:[#allocation5 + $0x7e0] sm:$0xff]
    %v1382 = vld [vmem:[#allocation5 + $0x7e8] sm:$0xff]
    %v1383 = vld [vmem:[#allocation5 + $0x7f0] sm:$0xff]
    %v1384 = vld [vmem:[#allocation5 + $0x7f8] sm:$0xff]
    %v1385 = vld [vmem:[#allocation22] sm:$0xff]
    %v1386 = vpack.c.bf16 %v1113, %v1109
    %v1387 = vpack.c.bf16 %v1114, %v1110
    %v1388 = vpack.c.bf16 %v1115, %v1111
    %v1389 = vpack.c.bf16 %v1116, %v1112
    %v1390 = vpack.c.bf16 %v1121, %v1117
    %v1391 = vpack.c.bf16 %v1122, %v1118
    %v1392 = vpack.c.bf16 %v1123, %v1119
    %v1393 = vpack.c.bf16 %v1124, %v1120
    %v1395 = vlaneseq
    %v1396 = vshrl.u32 %v1395, 7
    %v1397 = vsub.s32 0, %v1396
    %v1398 = vrot.slane %v1385, %v1397
    %v1399 = vlaneseq
    %v1400 = vshrl.u32 %v1399, 7
    %v1401 = vsub.s32 1, %v1400
    %v1402 = vrot.slane %v1385, %v1401
    %v1403 = vlaneseq
    %v1404 = vshrl.u32 %v1403, 7
    %v1405 = vsub.s32 2, %v1404
    %v1406 = vrot.slane %v1385, %v1405
    %v1407 = vlaneseq
    %v1408 = vshrl.u32 %v1407, 7
    %v1409 = vsub.s32 3, %v1408
    %v1410 = vrot.slane %v1385, %v1409
    %v1411 = vlaneseq
    %v1412 = vshrl.u32 %v1411, 7
    %v1413 = vsub.s32 4, %v1412
    %v1414 = vrot.slane %v1385, %v1413
    %v1415 = vlaneseq
    %v1416 = vshrl.u32 %v1415, 7
    %v1417 = vsub.s32 5, %v1416
    %v1418 = vrot.slane %v1385, %v1417
    %v1419 = vlaneseq
    %v1420 = vshrl.u32 %v1419, 7
    %v1421 = vsub.s32 6, %v1420
    %v1422 = vrot.slane %v1385, %v1421
    %v1423 = vlaneseq
    %v1424 = vshrl.u32 %v1423, 7
    %v1425 = vsub.s32 7, %v1424
    %v1426 = vrot.slane %v1385, %v1425
    %1435 = vmatprep.subr.bf16.mxu0 %v1130
    %1436 = vmatpush1.bf16.msra.mxu0 %v1129
    %1437 = vmatprep.subr.bf16.mxu0 %v1138
    %1438 = vmatpush1.bf16.msra.mxu0 %v1137
    %1439 = vmatprep.subr.bf16.mxu0 %v1146
    %1440 = vmatpush1.bf16.msra.mxu0 %v1145
    %1441 = vmatprep.subr.bf16.mxu0 %v1154
    %1442 = vmatpush1.bf16.msra.mxu0 %v1153
    %1443 = vmatprep.subr.bf16.mxu0 %v1162
    %1444 = vmatpush1.bf16.msra.mxu0 %v1161
    %1445 = vmatprep.subr.bf16.mxu0 %v1170
    %1446 = vmatpush1.bf16.msra.mxu0 %v1169
    %1447 = vmatprep.subr.bf16.mxu0 %v1178
    %1448 = vmatpush1.bf16.msra.mxu0 %v1177
    %1449 = vmatprep.subr.bf16.mxu0 %v1186
    %1450 = vmatpush1.bf16.msra.mxu0 %v1185
    %1451 = vmatprep.subr.bf16.mxu0 %v1194
    %1452 = vmatpush1.bf16.msra.mxu0 %v1193
    %1453 = vmatprep.subr.bf16.mxu0 %v1202
    %1454 = vmatpush1.bf16.msra.mxu0 %v1201
    %1455 = vmatprep.subr.bf16.mxu0 %v1210
    %1456 = vmatpush1.bf16.msra.mxu0 %v1209
    %1457 = vmatprep.subr.bf16.mxu0 %v1218
    %1458 = vmatpush1.bf16.msra.mxu0 %v1217
    %1459 = vmatprep.subr.bf16.mxu0 %v1226
    %1460 = vmatpush1.bf16.msra.mxu0 %v1225
    %1461 = vmatprep.subr.bf16.mxu0 %v1234
    %1462 = vmatpush1.bf16.msra.mxu0 %v1233
    %1463 = vmatprep.subr.bf16.mxu0 %v1242
    %1464 = vmatpush1.bf16.msra.mxu0 %v1241
    %1465 = vmatprep.subr.bf16.mxu0 %v1250
    %1466 = vmatpush1.bf16.msra.mxu0 %v1249
    %1467 = vmatprep.mubr.bf16.mxu0 %v1387
    %1468 = vmatmul.mubr.bf16.gmra.mrb[0].mxu0 %v1386
    %v1469 = vpop.f32.mrb[0].mxu0
    %v1470 = vadd.f32 %v1398, %v1469
    %v1471 = vpop.f32.mrb[0].mxu0
    %v1472 = vadd.f32 %v1402, %v1471
    %v1473 = vpop.f32.mrb[0].mxu0
    %v1474 = vadd.f32 %v1398, %v1473
    %v1475 = vpop.f32.mrb[0].mxu0
    %v1476 = vadd.f32 %v1402, %v1475
    %1477 = vmatprep.mubr.bf16.mxu0 %v1391
    %1478 = vmatmul.mubr.bf16.gmra.mrb[0].mxu0 %v1390
    %v1479 = vpop.f32.mrb[0].mxu0
    %v1480 = vadd.f32 %v1398, %v1479
    %v1481 = vpop.f32.mrb[0].mxu0
    %v1482 = vadd.f32 %v1402, %v1481
    %v1483 = vpop.f32.mrb[0].mxu0
    %v1484 = vadd.f32 %v1398, %v1483
    %v1485 = vpop.f32.mrb[0].mxu0
    %v1486 = vadd.f32 %v1402, %v1485
    %1487 = vdwg.mxu0
    %1488 = vmatprep.subr.bf16.mxu0 %v1258
    %1489 = vmatpush1.bf16.msra.mxu0 %v1257
    %1490 = vmatprep.subr.bf16.mxu0 %v1266
    %1491 = vmatpush1.bf16.msra.mxu0 %v1265
    %1492 = vmatprep.subr.bf16.mxu0 %v1274
    %1493 = vmatpush1.bf16.msra.mxu0 %v1273
    %1494 = vmatprep.subr.bf16.mxu0 %v1282
    %1495 = vmatpush1.bf16.msra.mxu0 %v1281
    %1496 = vmatprep.subr.bf16.mxu0 %v1290
    %1497 = vmatpush1.bf16.msra.mxu0 %v1289
    %1498 = vmatprep.subr.bf16.mxu0 %v1298
    %1499 = vmatpush1.bf16.msra.mxu0 %v1297
    %1500 = vmatprep.subr.bf16.mxu0 %v1306
    %1501 = vmatpush1.bf16.msra.mxu0 %v1305
    %1502 = vmatprep.subr.bf16.mxu0 %v1314
    %1503 = vmatpush1.bf16.msra.mxu0 %v1313
    %1504 = vmatprep.subr.bf16.mxu0 %v1322
    %1505 = vmatpush1.bf16.msra.mxu0 %v1321
    %1506 = vmatprep.subr.bf16.mxu0 %v1330
    %1507 = vmatpush1.bf16.msra.mxu0 %v1329
    %1508 = vmatprep.subr.bf16.mxu0 %v1338
    %1509 = vmatpush1.bf16.msra.mxu0 %v1337
    %1510 = vmatprep.subr.bf16.mxu0 %v1346
    %1511 = vmatpush1.bf16.msra.mxu0 %v1345
    %1512 = vmatprep.subr.bf16.mxu0 %v1354
    %1513 = vmatpush1.bf16.msra.mxu0 %v1353
    %1514 = vmatprep.subr.bf16.mxu0 %v1362
    %1515 = vmatpush1.bf16.msra.mxu0 %v1361
    %1516 = vmatprep.subr.bf16.mxu0 %v1370
    %1517 = vmatpush1.bf16.msra.mxu0 %v1369
    %1518 = vmatprep.subr.bf16.mxu0 %v1378
    %1519 = vmatpush1.bf16.msra.mxu0 %v1377
    %1520 = vmatprep.mubr.bf16.mxu0 %v1389
    %1521 = vmatmul.mubr.bf16.gmra.mrb[0].mxu0 %v1388
    %v1522 = vpop.f32.mrb[0].mxu0
    %v1523 = vadd.f32 %v1470, %v1522
    %v1524 = vpop.f32.mrb[0].mxu0
    %v1525 = vadd.f32 %v1472, %v1524
    %v1526 = vpop.f32.mrb[0].mxu0
    %v1527 = vadd.f32 %v1474, %v1526
    %v1528 = vpop.f32.mrb[0].mxu0
    %v1529 = vadd.f32 %v1476, %v1528
    %1530 = vmatprep.mubr.bf16.mxu0 %v1393
    %1531 = vmatmul.mubr.bf16.gmra.mrb[0].mxu0 %v1392
    %v1532 = vpop.f32.mrb[0].mxu0
    %v1533 = vadd.f32 %v1480, %v1532
    %v1534 = vpop.f32.mrb[0].mxu0
    %v1535 = vadd.f32 %v1482, %v1534
    %v1536 = vpop.f32.mrb[0].mxu0
    %v1537 = vadd.f32 %v1484, %v1536
    %v1538 = vpop.f32.mrb[0].mxu0
    %v1539 = vadd.f32 %v1486, %v1538
    %1540 = vdwg.mxu0
    %1541 = vmatprep.subr.bf16.mxu0 %v1132
    %1542 = vmatpush1.bf16.msra.mxu0 %v1131
    %1543 = vmatprep.subr.bf16.mxu0 %v1140
    %1544 = vmatpush1.bf16.msra.mxu0 %v1139
    %1545 = vmatprep.subr.bf16.mxu0 %v1148
    %1546 = vmatpush1.bf16.msra.mxu0 %v1147
    %1547 = vmatprep.subr.bf16.mxu0 %v1156
    %1548 = vmatpush1.bf16.msra.mxu0 %v1155
    %1549 = vmatprep.subr.bf16.mxu0 %v1164
    %1550 = vmatpush1.bf16.msra.mxu0 %v1163
    %1551 = vmatprep.subr.bf16.mxu0 %v1172
    %1552 = vmatpush1.bf16.msra.mxu0 %v1171
    %1553 = vmatprep.subr.bf16.mxu0 %v1180
    %1554 = vmatpush1.bf16.msra.mxu0 %v1179
    %1555 = vmatprep.subr.bf16.mxu0 %v1188
    %1556 = vmatpush1.bf16.msra.mxu0 %v1187
    %1557 = vmatprep.subr.bf16.mxu0 %v1196
    %1558 = vmatpush1.bf16.msra.mxu0 %v1195
    %1559 = vmatprep.subr.bf16.mxu0 %v1204
    %1560 = vmatpush1.bf16.msra.mxu0 %v1203
    %1561 = vmatprep.subr.bf16.mxu0 %v1212
    %1562 = vmatpush1.bf16.msra.mxu0 %v1211
    %1563 = vmatprep.subr.bf16.mxu0 %v1220
    %1564 = vmatpush1.bf16.msra.mxu0 %v1219
    %1565 = vmatprep.subr.bf16.mxu0 %v1228
    %1566 = vmatpush1.bf16.msra.mxu0 %v1227
    %1567 = vmatprep.subr.bf16.mxu0 %v1236
    %1568 = vmatpush1.bf16.msra.mxu0 %v1235
    %1569 = vmatprep.subr.bf16.mxu0 %v1244
    %1570 = vmatpush1.bf16.msra.mxu0 %v1243
    %1571 = vmatprep.subr.bf16.mxu0 %v1252
    %1572 = vmatpush1.bf16.msra.mxu0 %v1251
    %1573 = vmatprep.mubr.bf16.mxu0 %v1387
    %1574 = vmatmul.mubr.bf16.gmra.mrb[0].mxu0 %v1386
    %v1575 = vpop.f32.mrb[0].mxu0
    %v1576 = vadd.f32 %v1406, %v1575
    %v1577 = vpop.f32.mrb[0].mxu0
    %v1578 = vadd.f32 %v1410, %v1577
    %v1579 = vpop.f32.mrb[0].mxu0
    %v1580 = vadd.f32 %v1406, %v1579
    %v1581 = vpop.f32.mrb[0].mxu0
    %v1582 = vadd.f32 %v1410, %v1581
    %1583 = vmatprep.mubr.bf16.mxu0 %v1391
    %1584 = vmatmul.mubr.bf16.gmra.mrb[0].mxu0 %v1390
    %v1585 = vpop.f32.mrb[0].mxu0
    %v1586 = vadd.f32 %v1406, %v1585
    %v1587 = vpop.f32.mrb[0].mxu0
    %v1588 = vadd.f32 %v1410, %v1587
    %v1589 = vpop.f32.mrb[0].mxu0
    %v1590 = vadd.f32 %v1406, %v1589
    %v1591 = vpop.f32.mrb[0].mxu0
    %v1592 = vadd.f32 %v1410, %v1591
    %1593 = vdwg.mxu0
    %1594 = vmatprep.subr.bf16.mxu0 %v1260
    %1595 = vmatpush1.bf16.msra.mxu0 %v1259
    %1596 = vmatprep.subr.bf16.mxu0 %v1268
    %1597 = vmatpush1.bf16.msra.mxu0 %v1267
    %1598 = vmatprep.subr.bf16.mxu0 %v1276
    %1599 = vmatpush1.bf16.msra.mxu0 %v1275
    %1600 = vmatprep.subr.bf16.mxu0 %v1284
    %1601 = vmatpush1.bf16.msra.mxu0 %v1283
    %1602 = vmatprep.subr.bf16.mxu0 %v1292
    %1603 = vmatpush1.bf16.msra.mxu0 %v1291
    %1604 = vmatprep.subr.bf16.mxu0 %v1300
    %1605 = vmatpush1.bf16.msra.mxu0 %v1299
    %1606 = vmatprep.subr.bf16.mxu0 %v1308
    %1607 = vmatpush1.bf16.msra.mxu0 %v1307
    %1608 = vmatprep.subr.bf16.mxu0 %v1316
    %1609 = vmatpush1.bf16.msra.mxu0 %v1315
    %1610 = vmatprep.subr.bf16.mxu0 %v1324
    %1611 = vmatpush1.bf16.msra.mxu0 %v1323
    %1612 = vmatprep.subr.bf16.mxu0 %v1332
    %1613 = vmatpush1.bf16.msra.mxu0 %v1331
    %1614 = vmatprep.subr.bf16.mxu0 %v1340
    %1615 = vmatpush1.bf16.msra.mxu0 %v1339
    %1616 = vmatprep.subr.bf16.mxu0 %v1348
    %1617 = vmatpush1.bf16.msra.mxu0 %v1347
    %1618 = vmatprep.subr.bf16.mxu0 %v1356
    %1619 = vmatpush1.bf16.msra.mxu0 %v1355
    %1620 = vmatprep.subr.bf16.mxu0 %v1364
    %1621 = vmatpush1.bf16.msra.mxu0 %v1363
    %1622 = vmatprep.subr.bf16.mxu0 %v1372
    %1623 = vmatpush1.bf16.msra.mxu0 %v1371
    %1624 = vmatprep.subr.bf16.mxu0 %v1380
    %1625 = vmatpush1.bf16.msra.mxu0 %v1379
    %1626 = vmatprep.mubr.bf16.mxu0 %v1389
    %1627 = vmatmul.mubr.bf16.gmra.mrb[0].mxu0 %v1388
    %v1628 = vpop.f32.mrb[0].mxu0
    %v1629 = vadd.f32 %v1576, %v1628
    %v1630 = vpop.f32.mrb[0].mxu0
    %v1631 = vadd.f32 %v1578, %v1630
    %v1632 = vpop.f32.mrb[0].mxu0
    %v1633 = vadd.f32 %v1580, %v1632
    %v1634 = vpop.f32.mrb[0].mxu0
    %v1635 = vadd.f32 %v1582, %v1634
    %1636 = vmatprep.mubr.bf16.mxu0 %v1393
    %1637 = vmatmul.mubr.bf16.gmra.mrb[0].mxu0 %v1392
    %v1638 = vpop.f32.mrb[0].mxu0
    %v1639 = vadd.f32 %v1586, %v1638
    %v1640 = vpop.f32.mrb[0].mxu0
    %v1641 = vadd.f32 %v1588, %v1640
    %v1642 = vpop.f32.mrb[0].mxu0
    %v1643 = vadd.f32 %v1590, %v1642
    %v1644 = vpop.f32.mrb[0].mxu0
    %v1645 = vadd.f32 %v1592, %v1644
    %1646 = vdwg.mxu0
    %1647 = vmatprep.subr.bf16.mxu0 %v1134
    %1648 = vmatpush1.bf16.msra.mxu0 %v1133
    %1649 = vmatprep.subr.bf16.mxu0 %v1142
    %1650 = vmatpush1.bf16.msra.mxu0 %v1141
    %1651 = vmatprep.subr.bf16.mxu0 %v1150
    %1652 = vmatpush1.bf16.msra.mxu0 %v1149
    %1653 = vmatprep.subr.bf16.mxu0 %v1158
    %1654 = vmatpush1.bf16.msra.mxu0 %v1157
    %1655 = vmatprep.subr.bf16.mxu0 %v1166
    %1656 = vmatpush1.bf16.msra.mxu0 %v1165
    %1657 = vmatprep.subr.bf16.mxu0 %v1174
    %1658 = vmatpush1.bf16.msra.mxu0 %v1173
    %1659 = vmatprep.subr.bf16.mxu0 %v1182
    %1660 = vmatpush1.bf16.msra.mxu0 %v1181
    %1661 = vmatprep.subr.bf16.mxu0 %v1190
    %1662 = vmatpush1.bf16.msra.mxu0 %v1189
    %1663 = vmatprep.subr.bf16.mxu0 %v1198
    %1664 = vmatpush1.bf16.msra.mxu0 %v1197
    %1665 = vmatprep.subr.bf16.mxu0 %v1206
    %1666 = vmatpush1.bf16.msra.mxu0 %v1205
    %1667 = vmatprep.subr.bf16.mxu0 %v1214
    %1668 = vmatpush1.bf16.msra.mxu0 %v1213
    %1669 = vmatprep.subr.bf16.mxu0 %v1222
    %1670 = vmatpush1.bf16.msra.mxu0 %v1221
    %1671 = vmatprep.subr.bf16.mxu0 %v1230
    %1672 = vmatpush1.bf16.msra.mxu0 %v1229
    %1673 = vmatprep.subr.bf16.mxu0 %v1238
    %1674 = vmatpush1.bf16.msra.mxu0 %v1237
    %1675 = vmatprep.subr.bf16.mxu0 %v1246
    %1676 = vmatpush1.bf16.msra.mxu0 %v1245
    %1677 = vmatprep.subr.bf16.mxu0 %v1254
    %1678 = vmatpush1.bf16.msra.mxu0 %v1253
    %1679 = vmatprep.mubr.bf16.mxu0 %v1387
    %1680 = vmatmul.mubr.bf16.gmra.mrb[0].mxu0 %v1386
    %v1681 = vpop.f32.mrb[0].mxu0
    %v1682 = vadd.f32 %v1414, %v1681
    %v1683 = vpop.f32.mrb[0].mxu0
    %v1684 = vadd.f32 %v1418, %v1683
    %v1685 = vpop.f32.mrb[0].mxu0
    %v1686 = vadd.f32 %v1414, %v1685
    %v1687 = vpop.f32.mrb[0].mxu0
    %v1688 = vadd.f32 %v1418, %v1687
    %1689 = vmatprep.mubr.bf16.mxu0 %v1391
    %1690 = vmatmul.mubr.bf16.gmra.mrb[0].mxu0 %v1390
    %v1691 = vpop.f32.mrb[0].mxu0
    %v1692 = vadd.f32 %v1414, %v1691
    %v1693 = vpop.f32.mrb[0].mxu0
    %v1694 = vadd.f32 %v1418, %v1693
    %v1695 = vpop.f32.mrb[0].mxu0
    %v1696 = vadd.f32 %v1414, %v1695
    %v1697 = vpop.f32.mrb[0].mxu0
    %v1698 = vadd.f32 %v1418, %v1697
    %1699 = vdwg.mxu0
    %1700 = vmatprep.subr.bf16.mxu0 %v1262
    %1701 = vmatpush1.bf16.msra.mxu0 %v1261
    %1702 = vmatprep.subr.bf16.mxu0 %v1270
    %1703 = vmatpush1.bf16.msra.mxu0 %v1269
    %1704 = vmatprep.subr.bf16.mxu0 %v1278
    %1705 = vmatpush1.bf16.msra.mxu0 %v1277
    %1706 = vmatprep.subr.bf16.mxu0 %v1286
    %1707 = vmatpush1.bf16.msra.mxu0 %v1285
    %1708 = vmatprep.subr.bf16.mxu0 %v1294
    %1709 = vmatpush1.bf16.msra.mxu0 %v1293
    %1710 = vmatprep.subr.bf16.mxu0 %v1302
    %1711 = vmatpush1.bf16.msra.mxu0 %v1301
    %1712 = vmatprep.subr.bf16.mxu0 %v1310
    %1713 = vmatpush1.bf16.msra.mxu0 %v1309
    %1714 = vmatprep.subr.bf16.mxu0 %v1318
    %1715 = vmatpush1.bf16.msra.mxu0 %v1317
    %1716 = vmatprep.subr.bf16.mxu0 %v1326
    %1717 = vmatpush1.bf16.msra.mxu0 %v1325
    %1718 = vmatprep.subr.bf16.mxu0 %v1334
    %1719 = vmatpush1.bf16.msra.mxu0 %v1333
    %1720 = vmatprep.subr.bf16.mxu0 %v1342
    %1721 = vmatpush1.bf16.msra.mxu0 %v1341
    %1722 = vmatprep.subr.bf16.mxu0 %v1350
    %1723 = vmatpush1.bf16.msra.mxu0 %v1349
    %1724 = vmatprep.subr.bf16.mxu0 %v1358
    %1725 = vmatpush1.bf16.msra.mxu0 %v1357
    %1726 = vmatprep.subr.bf16.mxu0 %v1366
    %1727 = vmatpush1.bf16.msra.mxu0 %v1365
    %1728 = vmatprep.subr.bf16.mxu0 %v1374
    %1729 = vmatpush1.bf16.msra.mxu0 %v1373
    %1730 = vmatprep.subr.bf16.mxu0 %v1382
    %1731 = vmatpush1.bf16.msra.mxu0 %v1381
    %1732 = vmatprep.mubr.bf16.mxu0 %v1389
    %1733 = vmatmul.mubr.bf16.gmra.mrb[0].mxu0 %v1388
    %v1734 = vpop.f32.mrb[0].mxu0
    %v1735 = vadd.f32 %v1682, %v1734
    %v1736 = vpop.f32.mrb[0].mxu0
    %v1737 = vadd.f32 %v1684, %v1736
    %v1738 = vpop.f32.mrb[0].mxu0
    %v1739 = vadd.f32 %v1686, %v1738
    %v1740 = vpop.f32.mrb[0].mxu0
    %v1741 = vadd.f32 %v1688, %v1740
    %1742 = vmatprep.mubr.bf16.mxu0 %v1393
    %1743 = vmatmul.mubr.bf16.gmra.mrb[0].mxu0 %v1392
    %v1744 = vpop.f32.mrb[0].mxu0
    %v1745 = vadd.f32 %v1692, %v1744
    %v1746 = vpop.f32.mrb[0].mxu0
    %v1747 = vadd.f32 %v1694, %v1746
    %v1748 = vpop.f32.mrb[0].mxu0
    %v1749 = vadd.f32 %v1696, %v1748
    %v1750 = vpop.f32.mrb[0].mxu0
    %v1751 = vadd.f32 %v1698, %v1750
    %1752 = vdwg.mxu0
    %1753 = vmatprep.subr.bf16.mxu0 %v1136
    %1754 = vmatpush1.bf16.msra.mxu0 %v1135
    %1755 = vmatprep.subr.bf16.mxu0 %v1144
    %1756 = vmatpush1.bf16.msra.mxu0 %v1143
    %1757 = vmatprep.subr.bf16.mxu0 %v1152
    %1758 = vmatpush1.bf16.msra.mxu0 %v1151
    %1759 = vmatprep.subr.bf16.mxu0 %v1160
    %1760 = vmatpush1.bf16.msra.mxu0 %v1159
    %1761 = vmatprep.subr.bf16.mxu0 %v1168
    %1762 = vmatpush1.bf16.msra.mxu0 %v1167
    %1763 = vmatprep.subr.bf16.mxu0 %v1176
    %1764 = vmatpush1.bf16.msra.mxu0 %v1175
    %1765 = vmatprep.subr.bf16.mxu0 %v1184
    %1766 = vmatpush1.bf16.msra.mxu0 %v1183
    %1767 = vmatprep.subr.bf16.mxu0 %v1192
    %1768 = vmatpush1.bf16.msra.mxu0 %v1191
    %1769 = vmatprep.subr.bf16.mxu0 %v1200
    %1770 = vmatpush1.bf16.msra.mxu0 %v1199
    %1771 = vmatprep.subr.bf16.mxu0 %v1208
    %1772 = vmatpush1.bf16.msra.mxu0 %v1207
    %1773 = vmatprep.subr.bf16.mxu0 %v1216
    %1774 = vmatpush1.bf16.msra.mxu0 %v1215
    %1775 = vmatprep.subr.bf16.mxu0 %v1224
    %1776 = vmatpush1.bf16.msra.mxu0 %v1223
    %1777 = vmatprep.subr.bf16.mxu0 %v1232
    %1778 = vmatpush1.bf16.msra.mxu0 %v1231
    %1779 = vmatprep.subr.bf16.mxu0 %v1240
    %1780 = vmatpush1.bf16.msra.mxu0 %v1239
    %1781 = vmatprep.subr.bf16.mxu0 %v1248
    %1782 = vmatpush1.bf16.msra.mxu0 %v1247
    %1783 = vmatprep.subr.bf16.mxu0 %v1256
    %1784 = vmatpush1.bf16.msra.mxu0 %v1255
    %1785 = vmatprep.mubr.bf16.mxu0 %v1387
    %1786 = vmatmul.mubr.bf16.gmra.mrb[0].mxu0 %v1386
    %v1787 = vpop.f32.mrb[0].mxu0
    %v1788 = vadd.f32 %v1422, %v1787
    %v1789 = vpop.f32.mrb[0].mxu0
    %v1790 = vadd.f32 %v1426, %v1789
    %v1791 = vpop.f32.mrb[0].mxu0
    %v1792 = vadd.f32 %v1422, %v1791
    %v1793 = vpop.f32.mrb[0].mxu0
    %v1794 = vadd.f32 %v1426, %v1793
    %1795 = vmatprep.mubr.bf16.mxu0 %v1391
    %1796 = vmatmul.mubr.bf16.gmra.mrb[0].mxu0 %v1390
    %v1797 = vpop.f32.mrb[0].mxu0
    %v1798 = vadd.f32 %v1422, %v1797
    %v1799 = vpop.f32.mrb[0].mxu0
    %v1800 = vadd.f32 %v1426, %v1799
    %v1801 = vpop.f32.mrb[0].mxu0
    %v1802 = vadd.f32 %v1422, %v1801
    %v1803 = vpop.f32.mrb[0].mxu0
    %v1804 = vadd.f32 %v1426, %v1803
    %1805 = vdwg.mxu0
    %1806 = vmatprep.subr.bf16.mxu0 %v1264
    %1807 = vmatpush1.bf16.msra.mxu0 %v1263
    %1808 = vmatprep.subr.bf16.mxu0 %v1272
    %1809 = vmatpush1.bf16.msra.mxu0 %v1271
    %1810 = vmatprep.subr.bf16.mxu0 %v1280
    %1811 = vmatpush1.bf16.msra.mxu0 %v1279
    %1812 = vmatprep.subr.bf16.mxu0 %v1288
    %1813 = vmatpush1.bf16.msra.mxu0 %v1287
    %1814 = vmatprep.subr.bf16.mxu0 %v1296
    %1815 = vmatpush1.bf16.msra.mxu0 %v1295
    %1816 = vmatprep.subr.bf16.mxu0 %v1304
    %1817 = vmatpush1.bf16.msra.mxu0 %v1303
    %1818 = vmatprep.subr.bf16.mxu0 %v1312
    %1819 = vmatpush1.bf16.msra.mxu0 %v1311
    %1820 = vmatprep.subr.bf16.mxu0 %v1320
    %1821 = vmatpush1.bf16.msra.mxu0 %v1319
    %1822 = vmatprep.subr.bf16.mxu0 %v1328
    %1823 = vmatpush1.bf16.msra.mxu0 %v1327
    %1824 = vmatprep.subr.bf16.mxu0 %v1336
    %1825 = vmatpush1.bf16.msra.mxu0 %v1335
    %1826 = vmatprep.subr.bf16.mxu0 %v1344
    %1827 = vmatpush1.bf16.msra.mxu0 %v1343
    %1828 = vmatprep.subr.bf16.mxu0 %v1352
    %1829 = vmatpush1.bf16.msra.mxu0 %v1351
    %1830 = vmatprep.subr.bf16.mxu0 %v1360
    %1831 = vmatpush1.bf16.msra.mxu0 %v1359
    %1832 = vmatprep.subr.bf16.mxu0 %v1368
    %1833 = vmatpush1.bf16.msra.mxu0 %v1367
    %1834 = vmatprep.subr.bf16.mxu0 %v1376
    %1835 = vmatpush1.bf16.msra.mxu0 %v1375
    %1836 = vmatprep.subr.bf16.mxu0 %v1384
    %1837 = vmatpush1.bf16.msra.mxu0 %v1383
    %1838 = vmatprep.mubr.bf16.mxu0 %v1389
    %1839 = vmatmul.mubr.bf16.gmra.mrb[0].mxu0 %v1388
    %v1840 = vpop.f32.mrb[0].mxu0
    %v1841 = vadd.f32 %v1788, %v1840
    %v1842 = vpop.f32.mrb[0].mxu0
    %v1843 = vadd.f32 %v1790, %v1842
    %v1844 = vpop.f32.mrb[0].mxu0
    %v1845 = vadd.f32 %v1792, %v1844
    %v1846 = vpop.f32.mrb[0].mxu0
    %v1847 = vadd.f32 %v1794, %v1846
    %1848 = vmatprep.mubr.bf16.mxu0 %v1393
    %1849 = vmatmul.mubr.bf16.gmra.mrb[0].mxu0 %v1392
    %v1850 = vpop.f32.mrb[0].mxu0
    %v1851 = vadd.f32 %v1798, %v1850
    %v1852 = vpop.f32.mrb[0].mxu0
    %v1853 = vadd.f32 %v1800, %v1852
    %v1854 = vpop.f32.mrb[0].mxu0
    %v1855 = vadd.f32 %v1802, %v1854
    %v1856 = vpop.f32.mrb[0].mxu0
    %v1857 = vadd.f32 %v1804, %v1856
    %1858 = vdwg.mxu0
    %v1859 = vld [vmem:[#allocation23] sm:$0xff]
    %v1860 = vld [vmem:[#allocation25] sm:$0xff]
    %v1861 = vadd.f32 %v1523, %v1527
    %v1862 = vadd.f32 %v1861, %v1533
    %v1863 = vadd.f32 %v1862, %v1537
    %v1864 = vrot.slane %v1863, 4
    %v1865 = vadd.f32 %v1863, %v1864
    %v1866 = vrot.slane %v1865, 2
    %v1867 = vadd.f32 %v1865, %v1866
    %v1868 = vrot.slane %v1867, 1
    %v1869 = vadd.f32 %v1867, %v1868
    %v1870 = vadd.f32 %v1525, %v1529
    %v1871 = vadd.f32 %v1870, %v1535
    %v1872 = vadd.f32 %v1871, %v1539
    %v1873 = vrot.slane %v1872, 4
    %v1874 = vadd.f32 %v1872, %v1873
    %v1875 = vrot.slane %v1874, 2
    %v1876 = vadd.f32 %v1874, %v1875
    %v1877 = vrot.slane %v1876, 1
    %v1878 = vadd.f32 %v1876, %v1877
    %v1879 = vadd.f32 %v1629, %v1633
    %v1880 = vadd.f32 %v1879, %v1639
    %v1881 = vadd.f32 %v1880, %v1643
    %v1882 = vrot.slane %v1881, 4
    %v1883 = vadd.f32 %v1881, %v1882
    %v1884 = vrot.slane %v1883, 2
    %v1885 = vadd.f32 %v1883, %v1884
    %v1886 = vrot.slane %v1885, 1
    %v1887 = vadd.f32 %v1885, %v1886
    %v1888 = vadd.f32 %v1631, %v1635
    %v1889 = vadd.f32 %v1888, %v1641
    %v1890 = vadd.f32 %v1889, %v1645
    %v1891 = vrot.slane %v1890, 4
    %v1892 = vadd.f32 %v1890, %v1891
    %v1893 = vrot.slane %v1892, 2
    %v1894 = vadd.f32 %v1892, %v1893
    %v1895 = vrot.slane %v1894, 1
    %v1896 = vadd.f32 %v1894, %v1895
    %v1897 = vadd.f32 %v1735, %v1739
    %v1898 = vadd.f32 %v1897, %v1745
    %v1899 = vadd.f32 %v1898, %v1749
    %v1900 = vrot.slane %v1899, 4
    %v1901 = vadd.f32 %v1899, %v1900
    %v1902 = vrot.slane %v1901, 2
    %v1903 = vadd.f32 %v1901, %v1902
    %v1904 = vrot.slane %v1903, 1
    %v1905 = vadd.f32 %v1903, %v1904
    %v1906 = vadd.f32 %v1737, %v1741
    %v1907 = vadd.f32 %v1906, %v1747
    %v1908 = vadd.f32 %v1907, %v1751
    %v1909 = vrot.slane %v1908, 4
    %v1910 = vadd.f32 %v1908, %v1909
    %v1911 = vrot.slane %v1910, 2
    %v1912 = vadd.f32 %v1910, %v1911
    %v1913 = vrot.slane %v1912, 1
    %v1914 = vadd.f32 %v1912, %v1913
    %v1915 = vadd.f32 %v1841, %v1845
    %v1916 = vadd.f32 %v1915, %v1851
    %v1917 = vadd.f32 %v1916, %v1855
    %v1918 = vrot.slane %v1917, 4
    %v1919 = vadd.f32 %v1917, %v1918
    %v1920 = vrot.slane %v1919, 2
    %v1921 = vadd.f32 %v1919, %v1920
    %v1922 = vrot.slane %v1921, 1
    %v1923 = vadd.f32 %v1921, %v1922
    %v1924 = vadd.f32 %v1843, %v1847
    %v1925 = vadd.f32 %v1924, %v1853
    %v1926 = vadd.f32 %v1925, %v1857
    %v1927 = vrot.slane %v1926, 4
    %v1928 = vadd.f32 %v1926, %v1927
    %v1929 = vrot.slane %v1928, 2
    %v1930 = vadd.f32 %v1928, %v1929
    %v1931 = vrot.slane %v1930, 1
    %v1932 = vadd.f32 %v1930, %v1931
    %v1933 = vmul.f32 %v1523, %v1523
    %v1934 = vmul.f32 %v1525, %v1525
    %v1935 = vmul.f32 %v1629, %v1629
    %v1936 = vmul.f32 %v1631, %v1631
    %v1937 = vmul.f32 %v1735, %v1735
    %v1938 = vmul.f32 %v1737, %v1737
    %v1939 = vmul.f32 %v1841, %v1841
    %v1940 = vmul.f32 %v1843, %v1843
    %v1941 = vmul.f32 %v1527, %v1527
    %v1942 = vmul.f32 %v1529, %v1529
    %v1943 = vmul.f32 %v1633, %v1633
    %v1944 = vmul.f32 %v1635, %v1635
    %v1945 = vmul.f32 %v1739, %v1739
    %v1946 = vmul.f32 %v1741, %v1741
    %v1947 = vmul.f32 %v1845, %v1845
    %v1948 = vmul.f32 %v1847, %v1847
    %v1949 = vmul.f32 %v1533, %v1533
    %v1950 = vmul.f32 %v1535, %v1535
    %v1951 = vmul.f32 %v1639, %v1639
    %v1952 = vmul.f32 %v1641, %v1641
    %v1953 = vmul.f32 %v1745, %v1745
    %v1954 = vmul.f32 %v1747, %v1747
    %v1955 = vmul.f32 %v1851, %v1851
    %v1956 = vmul.f32 %v1853, %v1853
    %v1957 = vmul.f32 %v1537, %v1537
    %v1958 = vmul.f32 %v1539, %v1539
    %v1959 = vmul.f32 %v1643, %v1643
    %v1960 = vmul.f32 %v1645, %v1645
    %v1961 = vmul.f32 %v1749, %v1749
    %v1962 = vmul.f32 %v1751, %v1751
    %v1963 = vmul.f32 %v1855, %v1855
    %v1964 = vmul.f32 %v1857, %v1857
    %v1965 = vadd.f32 %v1933, %v1941
    %v1966 = vadd.f32 %v1965, %v1949
    %v1967 = vadd.f32 %v1966, %v1957
    %v1968 = vrot.slane %v1967, 4
    %v1969 = vadd.f32 %v1967, %v1968
    %v1970 = vrot.slane %v1969, 2
    %v1971 = vadd.f32 %v1969, %v1970
    %v1972 = vrot.slane %v1971, 1
    %v1973 = vadd.f32 %v1971, %v1972
    %v1974 = vadd.f32 %v1934, %v1942
    %v1975 = vadd.f32 %v1974, %v1950
    %v1976 = vadd.f32 %v1975, %v1958
    %v1977 = vrot.slane %v1976, 4
    %v1978 = vadd.f32 %v1976, %v1977
    %v1979 = vrot.slane %v1978, 2
    %v1980 = vadd.f32 %v1978, %v1979
    %v1981 = vrot.slane %v1980, 1
    %v1982 = vadd.f32 %v1980, %v1981
    %v1983 = vadd.f32 %v1935, %v1943
    %v1984 = vadd.f32 %v1983, %v1951
    %v1985 = vadd.f32 %v1984, %v1959
    %v1986 = vrot.slane %v1985, 4
    %v1987 = vadd.f32 %v1985, %v1986
    %v1988 = vrot.slane %v1987, 2
    %v1989 = vadd.f32 %v1987, %v1988
    %v1990 = vrot.slane %v1989, 1
    %v1991 = vadd.f32 %v1989, %v1990
    %v1992 = vadd.f32 %v1936, %v1944
    %v1993 = vadd.f32 %v1992, %v1952
    %v1994 = vadd.f32 %v1993, %v1960
    %v1995 = vrot.slane %v1994, 4
    %v1996 = vadd.f32 %v1994, %v1995
    %v1997 = vrot.slane %v1996, 2
    %v1998 = vadd.f32 %v1996, %v1997
    %v1999 = vrot.slane %v1998, 1
    %v2000 = vadd.f32 %v1998, %v1999
    %v2001 = vadd.f32 %v1937, %v1945
    %v2002 = vadd.f32 %v2001, %v1953
    %v2003 = vadd.f32 %v2002, %v1961
    %v2004 = vrot.slane %v2003, 4
    %v2005 = vadd.f32 %v2003, %v2004
    %v2006 = vrot.slane %v2005, 2
    %v2007 = vadd.f32 %v2005, %v2006
    %v2008 = vrot.slane %v2007, 1
    %v2009 = vadd.f32 %v2007, %v2008
    %v2010 = vadd.f32 %v1938, %v1946
    %v2011 = vadd.f32 %v2010, %v1954
    %v2012 = vadd.f32 %v2011, %v1962
    %v2013 = vrot.slane %v2012, 4
    %v2014 = vadd.f32 %v2012, %v2013
    %v2015 = vrot.slane %v2014, 2
    %v2016 = vadd.f32 %v2014, %v2015
    %v2017 = vrot.slane %v2016, 1
    %v2018 = vadd.f32 %v2016, %v2017
    %v2019 = vadd.f32 %v1939, %v1947
    %v2020 = vadd.f32 %v2019, %v1955
    %v2021 = vadd.f32 %v2020, %v1963
    %v2022 = vrot.slane %v2021, 4
    %v2023 = vadd.f32 %v2021, %v2022
    %v2024 = vrot.slane %v2023, 2
    %v2025 = vadd.f32 %v2023, %v2024
    %v2026 = vrot.slane %v2025, 1
    %v2027 = vadd.f32 %v2025, %v2026
    %v2028 = vadd.f32 %v1940, %v1948
    %v2029 = vadd.f32 %v2028, %v1956
    %v2030 = vadd.f32 %v2029, %v1964
    %v2031 = vrot.slane %v2030, 4
    %v2032 = vadd.f32 %v2030, %v2031
    %v2033 = vrot.slane %v2032, 2
    %v2034 = vadd.f32 %v2032, %v2033
    %v2035 = vrot.slane %v2034, 1
    %v2036 = vadd.f32 %v2034, %v2035
    %v2037 = vmul.f32 %v1869, 0.03125
    %v2038 = vmul.f32 %v1878, 0.03125
    %v2039 = vmul.f32 %v1887, 0.03125
    %v2040 = vmul.f32 %v1896, 0.03125
    %v2041 = vmul.f32 %v1905, 0.03125
    %v2042 = vmul.f32 %v1914, 0.03125
    %v2043 = vmul.f32 %v1923, 0.03125
    %v2044 = vmul.f32 %v1932, 0.03125
    %v2045 = vmul.f32 %v1973, 0.03125
    %v2046 = vmul.f32 %v1982, 0.03125
    %v2047 = vmul.f32 %v1991, 0.03125
    %v2048 = vmul.f32 %v2000, 0.03125
    %v2049 = vmul.f32 %v2009, 0.03125
    %v2050 = vmul.f32 %v2018, 0.03125
    %v2051 = vmul.f32 %v2027, 0.03125
    %v2052 = vmul.f32 %v2036, 0.03125
    %v2053 = vmul.f32 %v2037, %v2037
    %v2054 = vmul.f32 %v2038, %v2038
    %v2055 = vmul.f32 %v2039, %v2039
    %v2056 = vmul.f32 %v2040, %v2040
    %v2057 = vmul.f32 %v2041, %v2041
    %v2058 = vmul.f32 %v2042, %v2042
    %v2059 = vmul.f32 %v2043, %v2043
    %v2060 = vmul.f32 %v2044, %v2044
    %v2061 = vsub.f32 %v2045, %v2053
    %v2062 = vsub.f32 %v2046, %v2054
    %v2063 = vsub.f32 %v2047, %v2055
    %v2064 = vsub.f32 %v2048, %v2056
    %v2065 = vsub.f32 %v2049, %v2057
    %v2066 = vsub.f32 %v2050, %v2058
    %v2067 = vsub.f32 %v2051, %v2059
    %v2068 = vsub.f32 %v2052, %v2060
    %v2069 = vmax.f32 %v2061, 0.0
    %v2070 = vmax.f32 %v2062, 0.0
    %v2071 = vmax.f32 %v2063, 0.0
    %v2072 = vmax.f32 %v2064, 0.0
    %v2073 = vmax.f32 %v2065, 0.0
    %v2074 = vmax.f32 %v2066, 0.0
    %v2075 = vmax.f32 %v2067, 0.0
    %v2076 = vmax.f32 %v2068, 0.0
    %v2077 = vsub.f32 %v1523, %v2037
    %v2078 = vsub.f32 %v1525, %v2038
    %v2079 = vsub.f32 %v1629, %v2039
    %v2080 = vsub.f32 %v1631, %v2040
    %v2081 = vsub.f32 %v1735, %v2041
    %v2082 = vsub.f32 %v1737, %v2042
    %v2083 = vsub.f32 %v1841, %v2043
    %v2084 = vsub.f32 %v1843, %v2044
    %v2085 = vsub.f32 %v1527, %v2037
    %v2086 = vsub.f32 %v1529, %v2038
    %v2087 = vsub.f32 %v1633, %v2039
    %v2088 = vsub.f32 %v1635, %v2040
    %v2089 = vsub.f32 %v1739, %v2041
    %v2090 = vsub.f32 %v1741, %v2042
    %v2091 = vsub.f32 %v1845, %v2043
    %v2092 = vsub.f32 %v1847, %v2044
    %v2093 = vsub.f32 %v1533, %v2037
    %v2094 = vsub.f32 %v1535, %v2038
    %v2095 = vsub.f32 %v1639, %v2039
    %v2096 = vsub.f32 %v1641, %v2040
    %v2097 = vsub.f32 %v1745, %v2041
    %v2098 = vsub.f32 %v1747, %v2042
    %v2099 = vsub.f32 %v1851, %v2043
    %v2100 = vsub.f32 %v1853, %v2044
    %v2101 = vsub.f32 %v1537, %v2037
    %v2102 = vsub.f32 %v1539, %v2038
    %v2103 = vsub.f32 %v1643, %v2039
    %v2104 = vsub.f32 %v1645, %v2040
    %v2105 = vsub.f32 %v1749, %v2041
    %v2106 = vsub.f32 %v1751, %v2042
    %v2107 = vsub.f32 %v1855, %v2043
    %v2108 = vsub.f32 %v1857, %v2044
    %v2109 = vadd.f32 %v2069, 1e-05
    %v2110 = vadd.f32 %v2070, 1e-05
    %v2111 = vadd.f32 %v2071, 1e-05
    %v2112 = vadd.f32 %v2072, 1e-05
    %v2113 = vadd.f32 %v2073, 1e-05
    %v2114 = vadd.f32 %v2074, 1e-05
    %v2115 = vadd.f32 %v2075, 1e-05
    %v2116 = vadd.f32 %v2076, 1e-05
    %v2117 = vrsqrt.pop %v2109
    %v2118 = vrsqrt.pop %v2110
    %v2119 = vrsqrt.pop %v2111
    %v2120 = vrsqrt.pop %v2112
    %v2121 = vrsqrt.pop %v2113
    %v2122 = vrsqrt.pop %v2114
    %v2123 = vrsqrt.pop %v2115
    %v2124 = vrsqrt.pop %v2116
    %v2125 = vmul.f32 %v2077, %v2117
    %v2126 = vmul.f32 %v2078, %v2118
    %v2127 = vmul.f32 %v2079, %v2119
    %v2128 = vmul.f32 %v2080, %v2120
    %v2129 = vmul.f32 %v2081, %v2121
    %v2130 = vmul.f32 %v2082, %v2122
    %v2131 = vmul.f32 %v2083, %v2123
    %v2132 = vmul.f32 %v2084, %v2124
    %v2133 = vmul.f32 %v2085, %v2117
    %v2134 = vmul.f32 %v2086, %v2118
    %v2135 = vmul.f32 %v2087, %v2119
    %v2136 = vmul.f32 %v2088, %v2120
    %v2137 = vmul.f32 %v2089, %v2121
    %v2138 = vmul.f32 %v2090, %v2122
    %v2139 = vmul.f32 %v2091, %v2123
    %v2140 = vmul.f32 %v2092, %v2124
    %v2141 = vmul.f32 %v2093, %v2117
    %v2142 = vmul.f32 %v2094, %v2118
    %v2143 = vmul.f32 %v2095, %v2119
    %v2144 = vmul.f32 %v2096, %v2120
    %v2145 = vmul.f32 %v2097, %v2121
    %v2146 = vmul.f32 %v2098, %v2122
    %v2147 = vmul.f32 %v2099, %v2123
    %v2148 = vmul.f32 %v2100, %v2124
    %v2149 = vmul.f32 %v2101, %v2117
    %v2150 = vmul.f32 %v2102, %v2118
    %v2151 = vmul.f32 %v2103, %v2119
    %v2152 = vmul.f32 %v2104, %v2120
    %v2153 = vmul.f32 %v2105, %v2121
    %v2154 = vmul.f32 %v2106, %v2122
    %v2155 = vmul.f32 %v2107, %v2123
    %v2156 = vmul.f32 %v2108, %v2124
    %v2158 = vlaneseq
    %v2159 = vshrl.u32 %v2158, 7
    %v2160 = vsub.s32 0, %v2159
    %v2161 = vrot.slane %v1859, %v2160
    %v2162 = vlaneseq
    %v2163 = vshrl.u32 %v2162, 7
    %v2164 = vsub.s32 1, %v2163
    %v2165 = vrot.slane %v1859, %v2164
    %v2166 = vlaneseq
    %v2167 = vshrl.u32 %v2166, 7
    %v2168 = vsub.s32 2, %v2167
    %v2169 = vrot.slane %v1859, %v2168
    %v2170 = vlaneseq
    %v2171 = vshrl.u32 %v2170, 7
    %v2172 = vsub.s32 3, %v2171
    %v2173 = vrot.slane %v1859, %v2172
    %v2174 = vlaneseq
    %v2175 = vshrl.u32 %v2174, 7
    %v2176 = vsub.s32 4, %v2175
    %v2177 = vrot.slane %v1859, %v2176
    %v2178 = vlaneseq
    %v2179 = vshrl.u32 %v2178, 7
    %v2180 = vsub.s32 5, %v2179
    %v2181 = vrot.slane %v1859, %v2180
    %v2182 = vlaneseq
    %v2183 = vshrl.u32 %v2182, 7
    %v2184 = vsub.s32 6, %v2183
    %v2185 = vrot.slane %v1859, %v2184
    %v2186 = vlaneseq
    %v2187 = vshrl.u32 %v2186, 7
    %v2188 = vsub.s32 7, %v2187
    %v2189 = vrot.slane %v1859, %v2188
    %v2198 = vmul.f32 %v2125, %v2161
    %v2199 = vmul.f32 %v2126, %v2165
    %v2200 = vmul.f32 %v2127, %v2169
    %v2201 = vmul.f32 %v2128, %v2173
    %v2202 = vmul.f32 %v2129, %v2177
    %v2203 = vmul.f32 %v2130, %v2181
    %v2204 = vmul.f32 %v2131, %v2185
    %v2205 = vmul.f32 %v2132, %v2189
    %v2206 = vmul.f32 %v2133, %v2161
    %v2207 = vmul.f32 %v2134, %v2165
    %v2208 = vmul.f32 %v2135, %v2169
    %v2209 = vmul.f32 %v2136, %v2173
    %v2210 = vmul.f32 %v2137, %v2177
    %v2211 = vmul.f32 %v2138, %v2181
    %v2212 = vmul.f32 %v2139, %v2185
    %v2213 = vmul.f32 %v2140, %v2189
    %v2214 = vmul.f32 %v2141, %v2161
    %v2215 = vmul.f32 %v2142, %v2165
    %v2216 = vmul.f32 %v2143, %v2169
    %v2217 = vmul.f32 %v2144, %v2173
    %v2218 = vmul.f32 %v2145, %v2177
    %v2219 = vmul.f32 %v2146, %v2181
    %v2220 = vmul.f32 %v2147, %v2185
    %v2221 = vmul.f32 %v2148, %v2189
    %v2222 = vmul.f32 %v2149, %v2161
    %v2223 = vmul.f32 %v2150, %v2165
    %v2224 = vmul.f32 %v2151, %v2169
    %v2225 = vmul.f32 %v2152, %v2173
    %v2226 = vmul.f32 %v2153, %v2177
    %v2227 = vmul.f32 %v2154, %v2181
    %v2228 = vmul.f32 %v2155, %v2185
    %v2229 = vmul.f32 %v2156, %v2189
    %v2231 = vlaneseq
    %v2232 = vshrl.u32 %v2231, 7
    %v2233 = vsub.s32 0, %v2232
    %v2234 = vrot.slane %v1860, %v2233
    %v2235 = vlaneseq
    %v2236 = vshrl.u32 %v2235, 7
    %v2237 = vsub.s32 1, %v2236
    %v2238 = vrot.slane %v1860, %v2237
    %v2239 = vlaneseq
    %v2240 = vshrl.u32 %v2239, 7
    %v2241 = vsub.s32 2, %v2240
    %v2242 = vrot.slane %v1860, %v2241
    %v2243 = vlaneseq
    %v2244 = vshrl.u32 %v2243, 7
    %v2245 = vsub.s32 3, %v2244
    %v2246 = vrot.slane %v1860, %v2245
    %v2247 = vlaneseq
    %v2248 = vshrl.u32 %v2247, 7
    %v2249 = vsub.s32 4, %v2248
    %v2250 = vrot.slane %v1860, %v2249
    %v2251 = vlaneseq
    %v2252 = vshrl.u32 %v2251, 7
    %v2253 = vsub.s32 5, %v2252
    %v2254 = vrot.slane %v1860, %v2253
    %v2255 = vlaneseq
    %v2256 = vshrl.u32 %v2255, 7
    %v2257 = vsub.s32 6, %v2256
    %v2258 = vrot.slane %v1860, %v2257
    %v2259 = vlaneseq
    %v2260 = vshrl.u32 %v2259, 7
    %v2261 = vsub.s32 7, %v2260
    %v2262 = vrot.slane %v1860, %v2261
    %v2271 = vadd.f32 %v2198, %v2234
    %v2272 = vadd.f32 %v2199, %v2238
    %v2273 = vadd.f32 %v2200, %v2242
    %v2274 = vadd.f32 %v2201, %v2246
    %v2275 = vadd.f32 %v2202, %v2250
    %v2276 = vadd.f32 %v2203, %v2254
    %v2277 = vadd.f32 %v2204, %v2258
    %v2278 = vadd.f32 %v2205, %v2262
    %v2279 = vadd.f32 %v2206, %v2234
    %v2280 = vadd.f32 %v2207, %v2238
    %v2281 = vadd.f32 %v2208, %v2242
    %v2282 = vadd.f32 %v2209, %v2246
    %v2283 = vadd.f32 %v2210, %v2250
    %v2284 = vadd.f32 %v2211, %v2254
    %v2285 = vadd.f32 %v2212, %v2258
    %v2286 = vadd.f32 %v2213, %v2262
    %v2287 = vadd.f32 %v2214, %v2234
    %v2288 = vadd.f32 %v2215, %v2238
    %v2289 = vadd.f32 %v2216, %v2242
    %v2290 = vadd.f32 %v2217, %v2246
    %v2291 = vadd.f32 %v2218, %v2250
    %v2292 = vadd.f32 %v2219, %v2254
    %v2293 = vadd.f32 %v2220, %v2258
    %v2294 = vadd.f32 %v2221, %v2262
    %v2295 = vadd.f32 %v2222, %v2234
    %v2296 = vadd.f32 %v2223, %v2238
    %v2297 = vadd.f32 %v2224, %v2242
    %v2298 = vadd.f32 %v2225, %v2246
    %v2299 = vadd.f32 %v2226, %v2250
    %v2300 = vadd.f32 %v2227, %v2254
    %v2301 = vadd.f32 %v2228, %v2258
    %v2302 = vadd.f32 %v2229, %v2262
    %vm2303 = vcmp.gt.f32.partialorder %v2271, 0.0
    %vm2304 = vcmp.gt.f32.partialorder %v2272, 0.0
    %vm2305 = vcmp.gt.f32.partialorder %v2273, 0.0
    %vm2306 = vcmp.gt.f32.partialorder %v2274, 0.0
    %vm2307 = vcmp.gt.f32.partialorder %v2275, 0.0
    %vm2308 = vcmp.gt.f32.partialorder %v2276, 0.0
    %vm2309 = vcmp.gt.f32.partialorder %v2277, 0.0
    %vm2310 = vcmp.gt.f32.partialorder %v2278, 0.0
    %vm2311 = vcmp.gt.f32.partialorder %v2279, 0.0
    %vm2312 = vcmp.gt.f32.partialorder %v2280, 0.0
    %vm2313 = vcmp.gt.f32.partialorder %v2281, 0.0
    %vm2314 = vcmp.gt.f32.partialorder %v2282, 0.0
    %vm2315 = vcmp.gt.f32.partialorder %v2283, 0.0
    %vm2316 = vcmp.gt.f32.partialorder %v2284, 0.0
    %vm2317 = vcmp.gt.f32.partialorder %v2285, 0.0
    %vm2318 = vcmp.gt.f32.partialorder %v2286, 0.0
    %vm2319 = vcmp.gt.f32.partialorder %v2287, 0.0
    %vm2320 = vcmp.gt.f32.partialorder %v2288, 0.0
    %vm2321 = vcmp.gt.f32.partialorder %v2289, 0.0
    %vm2322 = vcmp.gt.f32.partialorder %v2290, 0.0
    %vm2323 = vcmp.gt.f32.partialorder %v2291, 0.0
    %vm2324 = vcmp.gt.f32.partialorder %v2292, 0.0
    %vm2325 = vcmp.gt.f32.partialorder %v2293, 0.0
    %vm2326 = vcmp.gt.f32.partialorder %v2294, 0.0
    %vm2327 = vcmp.gt.f32.partialorder %v2295, 0.0
    %vm2328 = vcmp.gt.f32.partialorder %v2296, 0.0
    %vm2329 = vcmp.gt.f32.partialorder %v2297, 0.0
    %vm2330 = vcmp.gt.f32.partialorder %v2298, 0.0
    %vm2331 = vcmp.gt.f32.partialorder %v2299, 0.0
    %vm2332 = vcmp.gt.f32.partialorder %v2300, 0.0
    %vm2333 = vcmp.gt.f32.partialorder %v2301, 0.0
    %vm2334 = vcmp.gt.f32.partialorder %v2302, 0.0
    %v2335 = vmul.f32 %v2271, 0.2
    %v2336 = vmul.f32 %v2272, 0.2
    %v2337 = vmul.f32 %v2273, 0.2
    %v2338 = vmul.f32 %v2274, 0.2
    %v2339 = vmul.f32 %v2275, 0.2
    %v2340 = vmul.f32 %v2276, 0.2
    %v2341 = vmul.f32 %v2277, 0.2
    %v2342 = vmul.f32 %v2278, 0.2
    %v2343 = vmul.f32 %v2279, 0.2
    %v2344 = vmul.f32 %v2280, 0.2
    %v2345 = vmul.f32 %v2281, 0.2
    %v2346 = vmul.f32 %v2282, 0.2
    %v2347 = vmul.f32 %v2283, 0.2
    %v2348 = vmul.f32 %v2284, 0.2
    %v2349 = vmul.f32 %v2285, 0.2
    %v2350 = vmul.f32 %v2286, 0.2
    %v2351 = vmul.f32 %v2287, 0.2
    %v2352 = vmul.f32 %v2288, 0.2
    %v2353 = vmul.f32 %v2289, 0.2
    %v2354 = vmul.f32 %v2290, 0.2
    %v2355 = vmul.f32 %v2291, 0.2
    %v2356 = vmul.f32 %v2292, 0.2
    %v2357 = vmul.f32 %v2293, 0.2
    %v2358 = vmul.f32 %v2294, 0.2
    %v2359 = vmul.f32 %v2295, 0.2
    %v2360 = vmul.f32 %v2296, 0.2
    %v2361 = vmul.f32 %v2297, 0.2
    %v2362 = vmul.f32 %v2298, 0.2
    %v2363 = vmul.f32 %v2299, 0.2
    %v2364 = vmul.f32 %v2300, 0.2
    %v2365 = vmul.f32 %v2301, 0.2
    %v2366 = vmul.f32 %v2302, 0.2
    %v2367 = vsel %vm2303, %v2271, %v2335
    %v2368 = vsel %vm2304, %v2272, %v2336
    %v2369 = vsel %vm2305, %v2273, %v2337
    %v2370 = vsel %vm2306, %v2274, %v2338
    %v2371 = vsel %vm2307, %v2275, %v2339
    %v2372 = vsel %vm2308, %v2276, %v2340
    %v2373 = vsel %vm2309, %v2277, %v2341
    %v2374 = vsel %vm2310, %v2278, %v2342
    %v2375 = vsel %vm2311, %v2279, %v2343
    %v2376 = vsel %vm2312, %v2280, %v2344
    %v2377 = vsel %vm2313, %v2281, %v2345
    %v2378 = vsel %vm2314, %v2282, %v2346
    %v2379 = vsel %vm2315, %v2283, %v2347
    %v2380 = vsel %vm2316, %v2284, %v2348
    %v2381 = vsel %vm2317, %v2285, %v2349
    %v2382 = vsel %vm2318, %v2286, %v2350
    %v2383 = vsel %vm2319, %v2287, %v2351
    %v2384 = vsel %vm2320, %v2288, %v2352
    %v2385 = vsel %vm2321, %v2289, %v2353
    %v2386 = vsel %vm2322, %v2290, %v2354
    %v2387 = vsel %vm2323, %v2291, %v2355
    %v2388 = vsel %vm2324, %v2292, %v2356
    %v2389 = vsel %vm2325, %v2293, %v2357
    %v2390 = vsel %vm2326, %v2294, %v2358
    %v2391 = vsel %vm2327, %v2295, %v2359
    %v2392 = vsel %vm2328, %v2296, %v2360
    %v2393 = vsel %vm2329, %v2297, %v2361
    %v2394 = vsel %vm2330, %v2298, %v2362
    %v2395 = vsel %vm2331, %v2299, %v2363
    %v2396 = vsel %vm2332, %v2300, %v2364
    %v2397 = vsel %vm2333, %v2301, %v2365
    %v2398 = vsel %vm2334, %v2302, %v2366
    %s2399 = smul.u32 4, 128
    %s2400 = smul.u32 %s2399, 7
    %s2401 = sshll.u32 %s2400, 4
    %2402 = dma.done %s306, %s2401
    %v2403 = vld [vmem:[#allocation6] sm:$0xff]
    %v2404 = vld [vmem:[#allocation6 + $0x8] sm:$0xff]
    %v2405 = vld [vmem:[#allocation6 + $0x10] sm:$0xff]
    %v2406 = vld [vmem:[#allocation6 + $0x18] sm:$0xff]
    %v2407 = vld [vmem:[#allocation6 + $0x20] sm:$0xff]
    %v2408 = vld [vmem:[#allocation6 + $0x28] sm:$0xff]
    %v2409 = vld [vmem:[#allocation6 + $0x30] sm:$0xff]
    %v2410 = vld [vmem:[#allocation6 + $0x38] sm:$0xff]
    %v2411 = vld [vmem:[#allocation6 + $0x40] sm:$0xff]
    %v2412 = vld [vmem:[#allocation6 + $0x48] sm:$0xff]
    %v2413 = vld [vmem:[#allocation6 + $0x50] sm:$0xff]
    %v2414 = vld [vmem:[#allocation6 + $0x58] sm:$0xff]
    %v2415 = vld [vmem:[#allocation6 + $0x60] sm:$0xff]
    %v2416 = vld [vmem:[#allocation6 + $0x68] sm:$0xff]
    %v2417 = vld [vmem:[#allocation6 + $0x70] sm:$0xff]
    %v2418 = vld [vmem:[#allocation6 + $0x78] sm:$0xff]
    %v2419 = vld [vmem:[#allocation6 + $0x80] sm:$0xff]
    %v2420 = vld [vmem:[#allocation6 + $0x88] sm:$0xff]
    %v2421 = vld [vmem:[#allocation6 + $0x90] sm:$0xff]
    %v2422 = vld [vmem:[#allocation6 + $0x98] sm:$0xff]
    %v2423 = vld [vmem:[#allocation6 + $0xa0] sm:$0xff]
    %v2424 = vld [vmem:[#allocation6 + $0xa8] sm:$0xff]
    %v2425 = vld [vmem:[#allocation6 + $0xb0] sm:$0xff]
    %v2426 = vld [vmem:[#allocation6 + $0xb8] sm:$0xff]
    %v2427 = vld [vmem:[#allocation6 + $0xc0] sm:$0xff]
    %v2428 = vld [vmem:[#allocation6 + $0xc8] sm:$0xff]
    %v2429 = vld [vmem:[#allocation6 + $0xd0] sm:$0xff]
    %v2430 = vld [vmem:[#allocation6 + $0xd8] sm:$0xff]
    %v2431 = vld [vmem:[#allocation6 + $0xe0] sm:$0xff]
    %v2432 = vld [vmem:[#allocation6 + $0xe8] sm:$0xff]
    %v2433 = vld [vmem:[#allocation6 + $0xf0] sm:$0xff]
    %v2434 = vld [vmem:[#allocation6 + $0xf8] sm:$0xff]
    %v2435 = vld [vmem:[#allocation6 + $0x100] sm:$0xff]
    %v2436 = vld [vmem:[#allocation6 + $0x108] sm:$0xff]
    %v2437 = vld [vmem:[#allocation6 + $0x110] sm:$0xff]
    %v2438 = vld [vmem:[#allocation6 + $0x118] sm:$0xff]
    %v2439 = vld [vmem:[#allocation6 + $0x120] sm:$0xff]
    %v2440 = vld [vmem:[#allocation6 + $0x128] sm:$0xff]
    %v2441 = vld [vmem:[#allocation6 + $0x130] sm:$0xff]
    %v2442 = vld [vmem:[#allocation6 + $0x138] sm:$0xff]
    %v2443 = vld [vmem:[#allocation6 + $0x140] sm:$0xff]
    %v2444 = vld [vmem:[#allocation6 + $0x148] sm:$0xff]
    %v2445 = vld [vmem:[#allocation6 + $0x150] sm:$0xff]
    %v2446 = vld [vmem:[#allocation6 + $0x158] sm:$0xff]
    %v2447 = vld [vmem:[#allocation6 + $0x160] sm:$0xff]
    %v2448 = vld [vmem:[#allocation6 + $0x168] sm:$0xff]
    %v2449 = vld [vmem:[#allocation6 + $0x170] sm:$0xff]
    %v2450 = vld [vmem:[#allocation6 + $0x178] sm:$0xff]
    %v2451 = vld [vmem:[#allocation6 + $0x180] sm:$0xff]
    %v2452 = vld [vmem:[#allocation6 + $0x188] sm:$0xff]
    %v2453 = vld [vmem:[#allocation6 + $0x190] sm:$0xff]
    %v2454 = vld [vmem:[#allocation6 + $0x198] sm:$0xff]
    %v2455 = vld [vmem:[#allocation6 + $0x1a0] sm:$0xff]
    %v2456 = vld [vmem:[#allocation6 + $0x1a8] sm:$0xff]
    %v2457 = vld [vmem:[#allocation6 + $0x1b0] sm:$0xff]
    %v2458 = vld [vmem:[#allocation6 + $0x1b8] sm:$0xff]
    %v2459 = vld [vmem:[#allocation6 + $0x1c0] sm:$0xff]
    %v2460 = vld [vmem:[#allocation6 + $0x1c8] sm:$0xff]
    %v2461 = vld [vmem:[#allocation6 + $0x1d0] sm:$0xff]
    %v2462 = vld [vmem:[#allocation6 + $0x1d8] sm:$0xff]
    %v2463 = vld [vmem:[#allocation6 + $0x1e0] sm:$0xff]
    %v2464 = vld [vmem:[#allocation6 + $0x1e8] sm:$0xff]
    %v2465 = vld [vmem:[#allocation6 + $0x1f0] sm:$0xff]
    %v2466 = vld [vmem:[#allocation6 + $0x1f8] sm:$0xff]
    %v2467 = vld [vmem:[#allocation6 + $0x200] sm:$0xff]
    %v2468 = vld [vmem:[#allocation6 + $0x208] sm:$0xff]
    %v2469 = vld [vmem:[#allocation6 + $0x210] sm:$0xff]
    %v2470 = vld [vmem:[#allocation6 + $0x218] sm:$0xff]
    %v2471 = vld [vmem:[#allocation6 + $0x220] sm:$0xff]
    %v2472 = vld [vmem:[#allocation6 + $0x228] sm:$0xff]
    %v2473 = vld [vmem:[#allocation6 + $0x230] sm:$0xff]
    %v2474 = vld [vmem:[#allocation6 + $0x238] sm:$0xff]
    %v2475 = vld [vmem:[#allocation6 + $0x240] sm:$0xff]
    %v2476 = vld [vmem:[#allocation6 + $0x248] sm:$0xff]
    %v2477 = vld [vmem:[#allocation6 + $0x250] sm:$0xff]
    %v2478 = vld [vmem:[#allocation6 + $0x258] sm:$0xff]
    %v2479 = vld [vmem:[#allocation6 + $0x260] sm:$0xff]
    %v2480 = vld [vmem:[#allocation6 + $0x268] sm:$0xff]
    %v2481 = vld [vmem:[#allocation6 + $0x270] sm:$0xff]
    %v2482 = vld [vmem:[#allocation6 + $0x278] sm:$0xff]
    %v2483 = vld [vmem:[#allocation6 + $0x280] sm:$0xff]
    %v2484 = vld [vmem:[#allocation6 + $0x288] sm:$0xff]
    %v2485 = vld [vmem:[#allocation6 + $0x290] sm:$0xff]
    %v2486 = vld [vmem:[#allocation6 + $0x298] sm:$0xff]
    %v2487 = vld [vmem:[#allocation6 + $0x2a0] sm:$0xff]
    %v2488 = vld [vmem:[#allocation6 + $0x2a8] sm:$0xff]
    %v2489 = vld [vmem:[#allocation6 + $0x2b0] sm:$0xff]
    %v2490 = vld [vmem:[#allocation6 + $0x2b8] sm:$0xff]
    %v2491 = vld [vmem:[#allocation6 + $0x2c0] sm:$0xff]
    %v2492 = vld [vmem:[#allocation6 + $0x2c8] sm:$0xff]
    %v2493 = vld [vmem:[#allocation6 + $0x2d0] sm:$0xff]
    %v2494 = vld [vmem:[#allocation6 + $0x2d8] sm:$0xff]
    %v2495 = vld [vmem:[#allocation6 + $0x2e0] sm:$0xff]
    %v2496 = vld [vmem:[#allocation6 + $0x2e8] sm:$0xff]
    %v2497 = vld [vmem:[#allocation6 + $0x2f0] sm:$0xff]
    %v2498 = vld [vmem:[#allocation6 + $0x2f8] sm:$0xff]
    %v2499 = vld [vmem:[#allocation6 + $0x300] sm:$0xff]
    %v2500 = vld [vmem:[#allocation6 + $0x308] sm:$0xff]
    %v2501 = vld [vmem:[#allocation6 + $0x310] sm:$0xff]
    %v2502 = vld [vmem:[#allocation6 + $0x318] sm:$0xff]
    %v2503 = vld [vmem:[#allocation6 + $0x320] sm:$0xff]
    %v2504 = vld [vmem:[#allocation6 + $0x328] sm:$0xff]
    %v2505 = vld [vmem:[#allocation6 + $0x330] sm:$0xff]
    %v2506 = vld [vmem:[#allocation6 + $0x338] sm:$0xff]
    %v2507 = vld [vmem:[#allocation6 + $0x340] sm:$0xff]
    %v2508 = vld [vmem:[#allocation6 + $0x348] sm:$0xff]
    %v2509 = vld [vmem:[#allocation6 + $0x350] sm:$0xff]
    %v2510 = vld [vmem:[#allocation6 + $0x358] sm:$0xff]
    %v2511 = vld [vmem:[#allocation6 + $0x360] sm:$0xff]
    %v2512 = vld [vmem:[#allocation6 + $0x368] sm:$0xff]
    %v2513 = vld [vmem:[#allocation6 + $0x370] sm:$0xff]
    %v2514 = vld [vmem:[#allocation6 + $0x378] sm:$0xff]
    %v2515 = vld [vmem:[#allocation6 + $0x380] sm:$0xff]
    %v2516 = vld [vmem:[#allocation6 + $0x388] sm:$0xff]
    %v2517 = vld [vmem:[#allocation6 + $0x390] sm:$0xff]
    %v2518 = vld [vmem:[#allocation6 + $0x398] sm:$0xff]
    %v2519 = vld [vmem:[#allocation6 + $0x3a0] sm:$0xff]
    %v2520 = vld [vmem:[#allocation6 + $0x3a8] sm:$0xff]
    %v2521 = vld [vmem:[#allocation6 + $0x3b0] sm:$0xff]
    %v2522 = vld [vmem:[#allocation6 + $0x3b8] sm:$0xff]
    %v2523 = vld [vmem:[#allocation6 + $0x3c0] sm:$0xff]
    %v2524 = vld [vmem:[#allocation6 + $0x3c8] sm:$0xff]
    %v2525 = vld [vmem:[#allocation6 + $0x3d0] sm:$0xff]
    %v2526 = vld [vmem:[#allocation6 + $0x3d8] sm:$0xff]
    %v2527 = vld [vmem:[#allocation6 + $0x3e0] sm:$0xff]
    %v2528 = vld [vmem:[#allocation6 + $0x3e8] sm:$0xff]
    %v2529 = vld [vmem:[#allocation6 + $0x3f0] sm:$0xff]
    %v2530 = vld [vmem:[#allocation6 + $0x3f8] sm:$0xff]
    %v2531 = vld [vmem:[#allocation6 + $0x400] sm:$0xff]
    %v2532 = vld [vmem:[#allocation6 + $0x408] sm:$0xff]
    %v2533 = vld [vmem:[#allocation6 + $0x410] sm:$0xff]
    %v2534 = vld [vmem:[#allocation6 + $0x418] sm:$0xff]
    %v2535 = vld [vmem:[#allocation6 + $0x420] sm:$0xff]
    %v2536 = vld [vmem:[#allocation6 + $0x428] sm:$0xff]
    %v2537 = vld [vmem:[#allocation6 + $0x430] sm:$0xff]
    %v2538 = vld [vmem:[#allocation6 + $0x438] sm:$0xff]
    %v2539 = vld [vmem:[#allocation6 + $0x440] sm:$0xff]
    %v2540 = vld [vmem:[#allocation6 + $0x448] sm:$0xff]
    %v2541 = vld [vmem:[#allocation6 + $0x450] sm:$0xff]
    %v2542 = vld [vmem:[#allocation6 + $0x458] sm:$0xff]
    %v2543 = vld [vmem:[#allocation6 + $0x460] sm:$0xff]
    %v2544 = vld [vmem:[#allocation6 + $0x468] sm:$0xff]
    %v2545 = vld [vmem:[#allocation6 + $0x470] sm:$0xff]
    %v2546 = vld [vmem:[#allocation6 + $0x478] sm:$0xff]
    %v2547 = vld [vmem:[#allocation6 + $0x480] sm:$0xff]
    %v2548 = vld [vmem:[#allocation6 + $0x488] sm:$0xff]
    %v2549 = vld [vmem:[#allocation6 + $0x490] sm:$0xff]
    %v2550 = vld [vmem:[#allocation6 + $0x498] sm:$0xff]
    %v2551 = vld [vmem:[#allocation6 + $0x4a0] sm:$0xff]
    %v2552 = vld [vmem:[#allocation6 + $0x4a8] sm:$0xff]
    %v2553 = vld [vmem:[#allocation6 + $0x4b0] sm:$0xff]
    %v2554 = vld [vmem:[#allocation6 + $0x4b8] sm:$0xff]
    %v2555 = vld [vmem:[#allocation6 + $0x4c0] sm:$0xff]
    %v2556 = vld [vmem:[#allocation6 + $0x4c8] sm:$0xff]
    %v2557 = vld [vmem:[#allocation6 + $0x4d0] sm:$0xff]
    %v2558 = vld [vmem:[#allocation6 + $0x4d8] sm:$0xff]
    %v2559 = vld [vmem:[#allocation6 + $0x4e0] sm:$0xff]
    %v2560 = vld [vmem:[#allocation6 + $0x4e8] sm:$0xff]
    %v2561 = vld [vmem:[#allocation6 + $0x4f0] sm:$0xff]
    %v2562 = vld [vmem:[#allocation6 + $0x4f8] sm:$0xff]
    %v2563 = vld [vmem:[#allocation6 + $0x500] sm:$0xff]
    %v2564 = vld [vmem:[#allocation6 + $0x508] sm:$0xff]
    %v2565 = vld [vmem:[#allocation6 + $0x510] sm:$0xff]
    %v2566 = vld [vmem:[#allocation6 + $0x518] sm:$0xff]
    %v2567 = vld [vmem:[#allocation6 + $0x520] sm:$0xff]
    %v2568 = vld [vmem:[#allocation6 + $0x528] sm:$0xff]
    %v2569 = vld [vmem:[#allocation6 + $0x530] sm:$0xff]
    %v2570 = vld [vmem:[#allocation6 + $0x538] sm:$0xff]
    %v2571 = vld [vmem:[#allocation6 + $0x540] sm:$0xff]
    %v2572 = vld [vmem:[#allocation6 + $0x548] sm:$0xff]
    %v2573 = vld [vmem:[#allocation6 + $0x550] sm:$0xff]
    %v2574 = vld [vmem:[#allocation6 + $0x558] sm:$0xff]
    %v2575 = vld [vmem:[#allocation6 + $0x560] sm:$0xff]
    %v2576 = vld [vmem:[#allocation6 + $0x568] sm:$0xff]
    %v2577 = vld [vmem:[#allocation6 + $0x570] sm:$0xff]
    %v2578 = vld [vmem:[#allocation6 + $0x578] sm:$0xff]
    %v2579 = vld [vmem:[#allocation6 + $0x580] sm:$0xff]
    %v2580 = vld [vmem:[#allocation6 + $0x588] sm:$0xff]
    %v2581 = vld [vmem:[#allocation6 + $0x590] sm:$0xff]
    %v2582 = vld [vmem:[#allocation6 + $0x598] sm:$0xff]
    %v2583 = vld [vmem:[#allocation6 + $0x5a0] sm:$0xff]
    %v2584 = vld [vmem:[#allocation6 + $0x5a8] sm:$0xff]
    %v2585 = vld [vmem:[#allocation6 + $0x5b0] sm:$0xff]
    %v2586 = vld [vmem:[#allocation6 + $0x5b8] sm:$0xff]
    %v2587 = vld [vmem:[#allocation6 + $0x5c0] sm:$0xff]
    %v2588 = vld [vmem:[#allocation6 + $0x5c8] sm:$0xff]
    %v2589 = vld [vmem:[#allocation6 + $0x5d0] sm:$0xff]
    %v2590 = vld [vmem:[#allocation6 + $0x5d8] sm:$0xff]
    %v2591 = vld [vmem:[#allocation6 + $0x5e0] sm:$0xff]
    %v2592 = vld [vmem:[#allocation6 + $0x5e8] sm:$0xff]
    %v2593 = vld [vmem:[#allocation6 + $0x5f0] sm:$0xff]
    %v2594 = vld [vmem:[#allocation6 + $0x5f8] sm:$0xff]
    %v2595 = vld [vmem:[#allocation6 + $0x600] sm:$0xff]
    %v2596 = vld [vmem:[#allocation6 + $0x608] sm:$0xff]
    %v2597 = vld [vmem:[#allocation6 + $0x610] sm:$0xff]
    %v2598 = vld [vmem:[#allocation6 + $0x618] sm:$0xff]
    %v2599 = vld [vmem:[#allocation6 + $0x620] sm:$0xff]
    %v2600 = vld [vmem:[#allocation6 + $0x628] sm:$0xff]
    %v2601 = vld [vmem:[#allocation6 + $0x630] sm:$0xff]
    %v2602 = vld [vmem:[#allocation6 + $0x638] sm:$0xff]
    %v2603 = vld [vmem:[#allocation6 + $0x640] sm:$0xff]
    %v2604 = vld [vmem:[#allocation6 + $0x648] sm:$0xff]
    %v2605 = vld [vmem:[#allocation6 + $0x650] sm:$0xff]
    %v2606 = vld [vmem:[#allocation6 + $0x658] sm:$0xff]
    %v2607 = vld [vmem:[#allocation6 + $0x660] sm:$0xff]
    %v2608 = vld [vmem:[#allocation6 + $0x668] sm:$0xff]
    %v2609 = vld [vmem:[#allocation6 + $0x670] sm:$0xff]
    %v2610 = vld [vmem:[#allocation6 + $0x678] sm:$0xff]
    %v2611 = vld [vmem:[#allocation6 + $0x680] sm:$0xff]
    %v2612 = vld [vmem:[#allocation6 + $0x688] sm:$0xff]
    %v2613 = vld [vmem:[#allocation6 + $0x690] sm:$0xff]
    %v2614 = vld [vmem:[#allocation6 + $0x698] sm:$0xff]
    %v2615 = vld [vmem:[#allocation6 + $0x6a0] sm:$0xff]
    %v2616 = vld [vmem:[#allocation6 + $0x6a8] sm:$0xff]
    %v2617 = vld [vmem:[#allocation6 + $0x6b0] sm:$0xff]
    %v2618 = vld [vmem:[#allocation6 + $0x6b8] sm:$0xff]
    %v2619 = vld [vmem:[#allocation6 + $0x6c0] sm:$0xff]
    %v2620 = vld [vmem:[#allocation6 + $0x6c8] sm:$0xff]
    %v2621 = vld [vmem:[#allocation6 + $0x6d0] sm:$0xff]
    %v2622 = vld [vmem:[#allocation6 + $0x6d8] sm:$0xff]
    %v2623 = vld [vmem:[#allocation6 + $0x6e0] sm:$0xff]
    %v2624 = vld [vmem:[#allocation6 + $0x6e8] sm:$0xff]
    %v2625 = vld [vmem:[#allocation6 + $0x6f0] sm:$0xff]
    %v2626 = vld [vmem:[#allocation6 + $0x6f8] sm:$0xff]
    %v2627 = vld [vmem:[#allocation6 + $0x700] sm:$0xff]
    %v2628 = vld [vmem:[#allocation6 + $0x708] sm:$0xff]
    %v2629 = vld [vmem:[#allocation6 + $0x710] sm:$0xff]
    %v2630 = vld [vmem:[#allocation6 + $0x718] sm:$0xff]
    %v2631 = vld [vmem:[#allocation6 + $0x720] sm:$0xff]
    %v2632 = vld [vmem:[#allocation6 + $0x728] sm:$0xff]
    %v2633 = vld [vmem:[#allocation6 + $0x730] sm:$0xff]
    %v2634 = vld [vmem:[#allocation6 + $0x738] sm:$0xff]
    %v2635 = vld [vmem:[#allocation6 + $0x740] sm:$0xff]
    %v2636 = vld [vmem:[#allocation6 + $0x748] sm:$0xff]
    %v2637 = vld [vmem:[#allocation6 + $0x750] sm:$0xff]
    %v2638 = vld [vmem:[#allocation6 + $0x758] sm:$0xff]
    %v2639 = vld [vmem:[#allocation6 + $0x760] sm:$0xff]
    %v2640 = vld [vmem:[#allocation6 + $0x768] sm:$0xff]
    %v2641 = vld [vmem:[#allocation6 + $0x770] sm:$0xff]
    %v2642 = vld [vmem:[#allocation6 + $0x778] sm:$0xff]
    %v2643 = vld [vmem:[#allocation6 + $0x780] sm:$0xff]
    %v2644 = vld [vmem:[#allocation6 + $0x788] sm:$0xff]
    %v2645 = vld [vmem:[#allocation6 + $0x790] sm:$0xff]
    %v2646 = vld [vmem:[#allocation6 + $0x798] sm:$0xff]
    %v2647 = vld [vmem:[#allocation6 + $0x7a0] sm:$0xff]
    %v2648 = vld [vmem:[#allocation6 + $0x7a8] sm:$0xff]
    %v2649 = vld [vmem:[#allocation6 + $0x7b0] sm:$0xff]
    %v2650 = vld [vmem:[#allocation6 + $0x7b8] sm:$0xff]
    %v2651 = vld [vmem:[#allocation6 + $0x7c0] sm:$0xff]
    %v2652 = vld [vmem:[#allocation6 + $0x7c8] sm:$0xff]
    %v2653 = vld [vmem:[#allocation6 + $0x7d0] sm:$0xff]
    %v2654 = vld [vmem:[#allocation6 + $0x7d8] sm:$0xff]
    %v2655 = vld [vmem:[#allocation6 + $0x7e0] sm:$0xff]
    %v2656 = vld [vmem:[#allocation6 + $0x7e8] sm:$0xff]
    %v2657 = vld [vmem:[#allocation6 + $0x7f0] sm:$0xff]
    %v2658 = vld [vmem:[#allocation6 + $0x7f8] sm:$0xff]
    %v2659 = vld [vmem:[#allocation6 + $0x800] sm:$0xff]
    %v2660 = vld [vmem:[#allocation6 + $0x808] sm:$0xff]
    %v2661 = vld [vmem:[#allocation6 + $0x810] sm:$0xff]
    %v2662 = vld [vmem:[#allocation6 + $0x818] sm:$0xff]
    %v2663 = vld [vmem:[#allocation6 + $0x820] sm:$0xff]
    %v2664 = vld [vmem:[#allocation6 + $0x828] sm:$0xff]
    %v2665 = vld [vmem:[#allocation6 + $0x830] sm:$0xff]
    %v2666 = vld [vmem:[#allocation6 + $0x838] sm:$0xff]
    %v2667 = vld [vmem:[#allocation6 + $0x840] sm:$0xff]
    %v2668 = vld [vmem:[#allocation6 + $0x848] sm:$0xff]
    %v2669 = vld [vmem:[#allocation6 + $0x850] sm:$0xff]
    %v2670 = vld [vmem:[#allocation6 + $0x858] sm:$0xff]
    %v2671 = vld [vmem:[#allocation6 + $0x860] sm:$0xff]
    %v2672 = vld [vmem:[#allocation6 + $0x868] sm:$0xff]
    %v2673 = vld [vmem:[#allocation6 + $0x870] sm:$0xff]
    %v2674 = vld [vmem:[#allocation6 + $0x878] sm:$0xff]
    %v2675 = vld [vmem:[#allocation6 + $0x880] sm:$0xff]
    %v2676 = vld [vmem:[#allocation6 + $0x888] sm:$0xff]
    %v2677 = vld [vmem:[#allocation6 + $0x890] sm:$0xff]
    %v2678 = vld [vmem:[#allocation6 + $0x898] sm:$0xff]
    %v2679 = vld [vmem:[#allocation6 + $0x8a0] sm:$0xff]
    %v2680 = vld [vmem:[#allocation6 + $0x8a8] sm:$0xff]
    %v2681 = vld [vmem:[#allocation6 + $0x8b0] sm:$0xff]
    %v2682 = vld [vmem:[#allocation6 + $0x8b8] sm:$0xff]
    %v2683 = vld [vmem:[#allocation6 + $0x8c0] sm:$0xff]
    %v2684 = vld [vmem:[#allocation6 + $0x8c8] sm:$0xff]
    %v2685 = vld [vmem:[#allocation6 + $0x8d0] sm:$0xff]
    %v2686 = vld [vmem:[#allocation6 + $0x8d8] sm:$0xff]
    %v2687 = vld [vmem:[#allocation6 + $0x8e0] sm:$0xff]
    %v2688 = vld [vmem:[#allocation6 + $0x8e8] sm:$0xff]
    %v2689 = vld [vmem:[#allocation6 + $0x8f0] sm:$0xff]
    %v2690 = vld [vmem:[#allocation6 + $0x8f8] sm:$0xff]
    %v2691 = vld [vmem:[#allocation6 + $0x900] sm:$0xff]
    %v2692 = vld [vmem:[#allocation6 + $0x908] sm:$0xff]
    %v2693 = vld [vmem:[#allocation6 + $0x910] sm:$0xff]
    %v2694 = vld [vmem:[#allocation6 + $0x918] sm:$0xff]
    %v2695 = vld [vmem:[#allocation6 + $0x920] sm:$0xff]
    %v2696 = vld [vmem:[#allocation6 + $0x928] sm:$0xff]
    %v2697 = vld [vmem:[#allocation6 + $0x930] sm:$0xff]
    %v2698 = vld [vmem:[#allocation6 + $0x938] sm:$0xff]
    %v2699 = vld [vmem:[#allocation6 + $0x940] sm:$0xff]
    %v2700 = vld [vmem:[#allocation6 + $0x948] sm:$0xff]
    %v2701 = vld [vmem:[#allocation6 + $0x950] sm:$0xff]
    %v2702 = vld [vmem:[#allocation6 + $0x958] sm:$0xff]
    %v2703 = vld [vmem:[#allocation6 + $0x960] sm:$0xff]
    %v2704 = vld [vmem:[#allocation6 + $0x968] sm:$0xff]
    %v2705 = vld [vmem:[#allocation6 + $0x970] sm:$0xff]
    %v2706 = vld [vmem:[#allocation6 + $0x978] sm:$0xff]
    %v2707 = vld [vmem:[#allocation6 + $0x980] sm:$0xff]
    %v2708 = vld [vmem:[#allocation6 + $0x988] sm:$0xff]
    %v2709 = vld [vmem:[#allocation6 + $0x990] sm:$0xff]
    %v2710 = vld [vmem:[#allocation6 + $0x998] sm:$0xff]
    %v2711 = vld [vmem:[#allocation6 + $0x9a0] sm:$0xff]
    %v2712 = vld [vmem:[#allocation6 + $0x9a8] sm:$0xff]
    %v2713 = vld [vmem:[#allocation6 + $0x9b0] sm:$0xff]
    %v2714 = vld [vmem:[#allocation6 + $0x9b8] sm:$0xff]
    %v2715 = vld [vmem:[#allocation6 + $0x9c0] sm:$0xff]
    %v2716 = vld [vmem:[#allocation6 + $0x9c8] sm:$0xff]
    %v2717 = vld [vmem:[#allocation6 + $0x9d0] sm:$0xff]
    %v2718 = vld [vmem:[#allocation6 + $0x9d8] sm:$0xff]
    %v2719 = vld [vmem:[#allocation6 + $0x9e0] sm:$0xff]
    %v2720 = vld [vmem:[#allocation6 + $0x9e8] sm:$0xff]
    %v2721 = vld [vmem:[#allocation6 + $0x9f0] sm:$0xff]
    %v2722 = vld [vmem:[#allocation6 + $0x9f8] sm:$0xff]
    %v2723 = vld [vmem:[#allocation6 + $0xa00] sm:$0xff]
    %v2724 = vld [vmem:[#allocation6 + $0xa08] sm:$0xff]
    %v2725 = vld [vmem:[#allocation6 + $0xa10] sm:$0xff]
    %v2726 = vld [vmem:[#allocation6 + $0xa18] sm:$0xff]
    %v2727 = vld [vmem:[#allocation6 + $0xa20] sm:$0xff]
    %v2728 = vld [vmem:[#allocation6 + $0xa28] sm:$0xff]
    %v2729 = vld [vmem:[#allocation6 + $0xa30] sm:$0xff]
    %v2730 = vld [vmem:[#allocation6 + $0xa38] sm:$0xff]
    %v2731 = vld [vmem:[#allocation6 + $0xa40] sm:$0xff]
    %v2732 = vld [vmem:[#allocation6 + $0xa48] sm:$0xff]
    %v2733 = vld [vmem:[#allocation6 + $0xa50] sm:$0xff]
    %v2734 = vld [vmem:[#allocation6 + $0xa58] sm:$0xff]
    %v2735 = vld [vmem:[#allocation6 + $0xa60] sm:$0xff]
    %v2736 = vld [vmem:[#allocation6 + $0xa68] sm:$0xff]
    %v2737 = vld [vmem:[#allocation6 + $0xa70] sm:$0xff]
    %v2738 = vld [vmem:[#allocation6 + $0xa78] sm:$0xff]
    %v2739 = vld [vmem:[#allocation6 + $0xa80] sm:$0xff]
    %v2740 = vld [vmem:[#allocation6 + $0xa88] sm:$0xff]
    %v2741 = vld [vmem:[#allocation6 + $0xa90] sm:$0xff]
    %v2742 = vld [vmem:[#allocation6 + $0xa98] sm:$0xff]
    %v2743 = vld [vmem:[#allocation6 + $0xaa0] sm:$0xff]
    %v2744 = vld [vmem:[#allocation6 + $0xaa8] sm:$0xff]
    %v2745 = vld [vmem:[#allocation6 + $0xab0] sm:$0xff]
    %v2746 = vld [vmem:[#allocation6 + $0xab8] sm:$0xff]
    %v2747 = vld [vmem:[#allocation6 + $0xac0] sm:$0xff]
    %v2748 = vld [vmem:[#allocation6 + $0xac8] sm:$0xff]
    %v2749 = vld [vmem:[#allocation6 + $0xad0] sm:$0xff]
    %v2750 = vld [vmem:[#allocation6 + $0xad8] sm:$0xff]
    %v2751 = vld [vmem:[#allocation6 + $0xae0] sm:$0xff]
    %v2752 = vld [vmem:[#allocation6 + $0xae8] sm:$0xff]
    %v2753 = vld [vmem:[#allocation6 + $0xaf0] sm:$0xff]
    %v2754 = vld [vmem:[#allocation6 + $0xaf8] sm:$0xff]
    %v2755 = vld [vmem:[#allocation6 + $0xb00] sm:$0xff]
    %v2756 = vld [vmem:[#allocation6 + $0xb08] sm:$0xff]
    %v2757 = vld [vmem:[#allocation6 + $0xb10] sm:$0xff]
    %v2758 = vld [vmem:[#allocation6 + $0xb18] sm:$0xff]
    %v2759 = vld [vmem:[#allocation6 + $0xb20] sm:$0xff]
    %v2760 = vld [vmem:[#allocation6 + $0xb28] sm:$0xff]
    %v2761 = vld [vmem:[#allocation6 + $0xb30] sm:$0xff]
    %v2762 = vld [vmem:[#allocation6 + $0xb38] sm:$0xff]
    %v2763 = vld [vmem:[#allocation6 + $0xb40] sm:$0xff]
    %v2764 = vld [vmem:[#allocation6 + $0xb48] sm:$0xff]
    %v2765 = vld [vmem:[#allocation6 + $0xb50] sm:$0xff]
    %v2766 = vld [vmem:[#allocation6 + $0xb58] sm:$0xff]
    %v2767 = vld [vmem:[#allocation6 + $0xb60] sm:$0xff]
    %v2768 = vld [vmem:[#allocation6 + $0xb68] sm:$0xff]
    %v2769 = vld [vmem:[#allocation6 + $0xb70] sm:$0xff]
    %v2770 = vld [vmem:[#allocation6 + $0xb78] sm:$0xff]
    %v2771 = vld [vmem:[#allocation6 + $0xb80] sm:$0xff]
    %v2772 = vld [vmem:[#allocation6 + $0xb88] sm:$0xff]
    %v2773 = vld [vmem:[#allocation6 + $0xb90] sm:$0xff]
    %v2774 = vld [vmem:[#allocation6 + $0xb98] sm:$0xff]
    %v2775 = vld [vmem:[#allocation6 + $0xba0] sm:$0xff]
    %v2776 = vld [vmem:[#allocation6 + $0xba8] sm:$0xff]
    %v2777 = vld [vmem:[#allocation6 + $0xbb0] sm:$0xff]
    %v2778 = vld [vmem:[#allocation6 + $0xbb8] sm:$0xff]
    %v2779 = vld [vmem:[#allocation6 + $0xbc0] sm:$0xff]
    %v2780 = vld [vmem:[#allocation6 + $0xbc8] sm:$0xff]
    %v2781 = vld [vmem:[#allocation6 + $0xbd0] sm:$0xff]
    %v2782 = vld [vmem:[#allocation6 + $0xbd8] sm:$0xff]
    %v2783 = vld [vmem:[#allocation6 + $0xbe0] sm:$0xff]
    %v2784 = vld [vmem:[#allocation6 + $0xbe8] sm:$0xff]
    %v2785 = vld [vmem:[#allocation6 + $0xbf0] sm:$0xff]
    %v2786 = vld [vmem:[#allocation6 + $0xbf8] sm:$0xff]
    %v2787 = vld [vmem:[#allocation6 + $0xc00] sm:$0xff]
    %v2788 = vld [vmem:[#allocation6 + $0xc08] sm:$0xff]
    %v2789 = vld [vmem:[#allocation6 + $0xc10] sm:$0xff]
    %v2790 = vld [vmem:[#allocation6 + $0xc18] sm:$0xff]
    %v2791 = vld [vmem:[#allocation6 + $0xc20] sm:$0xff]
    %v2792 = vld [vmem:[#allocation6 + $0xc28] sm:$0xff]
    %v2793 = vld [vmem:[#allocation6 + $0xc30] sm:$0xff]
    %v2794 = vld [vmem:[#allocation6 + $0xc38] sm:$0xff]
    %v2795 = vld [vmem:[#allocation6 + $0xc40] sm:$0xff]
    %v2796 = vld [vmem:[#allocation6 + $0xc48] sm:$0xff]
    %v2797 = vld [vmem:[#allocation6 + $0xc50] sm:$0xff]
    %v2798 = vld [vmem:[#allocation6 + $0xc58] sm:$0xff]
    %v2799 = vld [vmem:[#allocation6 + $0xc60] sm:$0xff]
    %v2800 = vld [vmem:[#allocation6 + $0xc68] sm:$0xff]
    %v2801 = vld [vmem:[#allocation6 + $0xc70] sm:$0xff]
    %v2802 = vld [vmem:[#allocation6 + $0xc78] sm:$0xff]
    %v2803 = vld [vmem:[#allocation6 + $0xc80] sm:$0xff]
    %v2804 = vld [vmem:[#allocation6 + $0xc88] sm:$0xff]
    %v2805 = vld [vmem:[#allocation6 + $0xc90] sm:$0xff]
    %v2806 = vld [vmem:[#allocation6 + $0xc98] sm:$0xff]
    %v2807 = vld [vmem:[#allocation6 + $0xca0] sm:$0xff]
    %v2808 = vld [vmem:[#allocation6 + $0xca8] sm:$0xff]
    %v2809 = vld [vmem:[#allocation6 + $0xcb0] sm:$0xff]
    %v2810 = vld [vmem:[#allocation6 + $0xcb8] sm:$0xff]
    %v2811 = vld [vmem:[#allocation6 + $0xcc0] sm:$0xff]
    %v2812 = vld [vmem:[#allocation6 + $0xcc8] sm:$0xff]
    %v2813 = vld [vmem:[#allocation6 + $0xcd0] sm:$0xff]
    %v2814 = vld [vmem:[#allocation6 + $0xcd8] sm:$0xff]
    %v2815 = vld [vmem:[#allocation6 + $0xce0] sm:$0xff]
    %v2816 = vld [vmem:[#allocation6 + $0xce8] sm:$0xff]
    %v2817 = vld [vmem:[#allocation6 + $0xcf0] sm:$0xff]
    %v2818 = vld [vmem:[#allocation6 + $0xcf8] sm:$0xff]
    %v2819 = vld [vmem:[#allocation6 + $0xd00] sm:$0xff]
    %v2820 = vld [vmem:[#allocation6 + $0xd08] sm:$0xff]
    %v2821 = vld [vmem:[#allocation6 + $0xd10] sm:$0xff]
    %v2822 = vld [vmem:[#allocation6 + $0xd18] sm:$0xff]
    %v2823 = vld [vmem:[#allocation6 + $0xd20] sm:$0xff]
    %v2824 = vld [vmem:[#allocation6 + $0xd28] sm:$0xff]
    %v2825 = vld [vmem:[#allocation6 + $0xd30] sm:$0xff]
    %v2826 = vld [vmem:[#allocation6 + $0xd38] sm:$0xff]
    %v2827 = vld [vmem:[#allocation6 + $0xd40] sm:$0xff]
    %v2828 = vld [vmem:[#allocation6 + $0xd48] sm:$0xff]
    %v2829 = vld [vmem:[#allocation6 + $0xd50] sm:$0xff]
    %v2830 = vld [vmem:[#allocation6 + $0xd58] sm:$0xff]
    %v2831 = vld [vmem:[#allocation6 + $0xd60] sm:$0xff]
    %v2832 = vld [vmem:[#allocation6 + $0xd68] sm:$0xff]
    %v2833 = vld [vmem:[#allocation6 + $0xd70] sm:$0xff]
    %v2834 = vld [vmem:[#allocation6 + $0xd78] sm:$0xff]
    %v2835 = vld [vmem:[#allocation6 + $0xd80] sm:$0xff]
    %v2836 = vld [vmem:[#allocation6 + $0xd88] sm:$0xff]
    %v2837 = vld [vmem:[#allocation6 + $0xd90] sm:$0xff]
    %v2838 = vld [vmem:[#allocation6 + $0xd98] sm:$0xff]
    %v2839 = vld [vmem:[#allocation6 + $0xda0] sm:$0xff]
    %v2840 = vld [vmem:[#allocation6 + $0xda8] sm:$0xff]
    %v2841 = vld [vmem:[#allocation6 + $0xdb0] sm:$0xff]
    %v2842 = vld [vmem:[#allocation6 + $0xdb8] sm:$0xff]
    %v2843 = vld [vmem:[#allocation6 + $0xdc0] sm:$0xff]
    %v2844 = vld [vmem:[#allocation6 + $0xdc8] sm:$0xff]
    %v2845 = vld [vmem:[#allocation6 + $0xdd0] sm:$0xff]
    %v2846 = vld [vmem:[#allocation6 + $0xdd8] sm:$0xff]
    %v2847 = vld [vmem:[#allocation6 + $0xde0] sm:$0xff]
    %v2848 = vld [vmem:[#allocation6 + $0xde8] sm:$0xff]
    %v2849 = vld [vmem:[#allocation6 + $0xdf0] sm:$0xff]
    %v2850 = vld [vmem:[#allocation6 + $0xdf8] sm:$0xff]
    %v2851 = vld [vmem:[#allocation26] sm:$0xff]
    %v2852 = vpack.c.bf16 %v2375, %v2367
    %v2853 = vpack.c.bf16 %v2376, %v2368
    %v2854 = vpack.c.bf16 %v2377, %v2369
    %v2855 = vpack.c.bf16 %v2378, %v2370
    %v2856 = vpack.c.bf16 %v2379, %v2371
    %v2857 = vpack.c.bf16 %v2380, %v2372
    %v2858 = vpack.c.bf16 %v2381, %v2373
    %v2859 = vpack.c.bf16 %v2382, %v2374
    %v2860 = vpack.c.bf16 %v2391, %v2383
    %v2861 = vpack.c.bf16 %v2392, %v2384
    %v2862 = vpack.c.bf16 %v2393, %v2385
    %v2863 = vpack.c.bf16 %v2394, %v2386
    %v2864 = vpack.c.bf16 %v2395, %v2387
    %v2865 = vpack.c.bf16 %v2396, %v2388
    %v2866 = vpack.c.bf16 %v2397, %v2389
    %v2867 = vpack.c.bf16 %v2398, %v2390
    %v2869 = vlaneseq
    %v2870 = vshrl.u32 %v2869, 7
    %v2871 = vsub.s32 0, %v2870
    %v2872 = vrot.slane %v2851, %v2871
    %v2873 = vlaneseq
    %v2874 = vshrl.u32 %v2873, 7
    %v2875 = vsub.s32 1, %v2874
    %v2876 = vrot.slane %v2851, %v2875
    %v2877 = vlaneseq
    %v2878 = vshrl.u32 %v2877, 7
    %v2879 = vsub.s32 2, %v2878
    %v2880 = vrot.slane %v2851, %v2879
    %v2881 = vlaneseq
    %v2882 = vshrl.u32 %v2881, 7
    %v2883 = vsub.s32 3, %v2882
    %v2884 = vrot.slane %v2851, %v2883
    %v2885 = vlaneseq
    %v2886 = vshrl.u32 %v2885, 7
    %v2887 = vsub.s32 4, %v2886
    %v2888 = vrot.slane %v2851, %v2887
    %v2889 = vlaneseq
    %v2890 = vshrl.u32 %v2889, 7
    %v2891 = vsub.s32 5, %v2890
    %v2892 = vrot.slane %v2851, %v2891
    %v2893 = vlaneseq
    %v2894 = vshrl.u32 %v2893, 7
    %v2895 = vsub.s32 6, %v2894
    %v2896 = vrot.slane %v2851, %v2895
    %2904 = vmatprep.subr.bf16.mxu0 %v2404
    %2905 = vmatpush1.bf16.msra.mxu0 %v2403
    %2906 = vmatprep.subr.bf16.mxu0 %v2411
    %2907 = vmatpush1.bf16.msra.mxu0 %v2410
    %2908 = vmatprep.subr.bf16.mxu0 %v2418
    %2909 = vmatpush1.bf16.msra.mxu0 %v2417
    %2910 = vmatprep.subr.bf16.mxu0 %v2425
    %2911 = vmatpush1.bf16.msra.mxu0 %v2424
    %2912 = vmatprep.subr.bf16.mxu0 %v2432
    %2913 = vmatpush1.bf16.msra.mxu0 %v2431
    %2914 = vmatprep.subr.bf16.mxu0 %v2439
    %2915 = vmatpush1.bf16.msra.mxu0 %v2438
    %2916 = vmatprep.subr.bf16.mxu0 %v2446
    %2917 = vmatpush1.bf16.msra.mxu0 %v2445
    %2918 = vmatprep.subr.bf16.mxu0 %v2453
    %2919 = vmatpush1.bf16.msra.mxu0 %v2452
    %2920 = vmatprep.subr.bf16.mxu0 %v2460
    %2921 = vmatpush1.bf16.msra.mxu0 %v2459
    %2922 = vmatprep.subr.bf16.mxu0 %v2467
    %2923 = vmatpush1.bf16.msra.mxu0 %v2466
    %2924 = vmatprep.subr.bf16.mxu0 %v2474
    %2925 = vmatpush1.bf16.msra.mxu0 %v2473
    %2926 = vmatprep.subr.bf16.mxu0 %v2481
    %2927 = vmatpush1.bf16.msra.mxu0 %v2480
    %2928 = vmatprep.subr.bf16.mxu0 %v2488
    %2929 = vmatpush1.bf16.msra.mxu0 %v2487
    %2930 = vmatprep.subr.bf16.mxu0 %v2495
    %2931 = vmatpush1.bf16.msra.mxu0 %v2494
    %2932 = vmatprep.subr.bf16.mxu0 %v2502
    %2933 = vmatpush1.bf16.msra.mxu0 %v2501
    %2934 = vmatprep.subr.bf16.mxu0 %v2509
    %2935 = vmatpush1.bf16.msra.mxu0 %v2508
    %2936 = vmatprep.mubr.bf16.mxu0 %v2853
    %2937 = vmatmul.mubr.bf16.gmra.mrb[0].mxu0 %v2852
    %v2938 = vpop.f32.mrb[0].mxu0
    %v2939 = vadd.f32 %v2872, %v2938
    %v2940 = vpop.f32.mrb[0].mxu0
    %v2941 = vadd.f32 %v2876, %v2940
    %v2942 = vpop.f32.mrb[0].mxu0
    %v2943 = vadd.f32 %v2872, %v2942
    %v2944 = vpop.f32.mrb[0].mxu0
    %v2945 = vadd.f32 %v2876, %v2944
    %2946 = vmatprep.mubr.bf16.mxu0 %v2861
    %2947 = vmatmul.mubr.bf16.gmra.mrb[0].mxu0 %v2860
    %v2948 = vpop.f32.mrb[0].mxu0
    %v2949 = vadd.f32 %v2872, %v2948
    %v2950 = vpop.f32.mrb[0].mxu0
    %v2951 = vadd.f32 %v2876, %v2950
    %v2952 = vpop.f32.mrb[0].mxu0
    %v2953 = vadd.f32 %v2872, %v2952
    %v2954 = vpop.f32.mrb[0].mxu0
    %v2955 = vadd.f32 %v2876, %v2954
    %2956 = vdwg.mxu0
    %2957 = vmatprep.subr.bf16.mxu0 %v2516
    %2958 = vmatpush1.bf16.msra.mxu0 %v2515
    %2959 = vmatprep.subr.bf16.mxu0 %v2523
    %2960 = vmatpush1.bf16.msra.mxu0 %v2522
    %2961 = vmatprep.subr.bf16.mxu0 %v2530
    %2962 = vmatpush1.bf16.msra.mxu0 %v2529
    %2963 = vmatprep.subr.bf16.mxu0 %v2537
    %2964 = vmatpush1.bf16.msra.mxu0 %v2536
    %2965 = vmatprep.subr.bf16.mxu0 %v2544
    %2966 = vmatpush1.bf16.msra.mxu0 %v2543
    %2967 = vmatprep.subr.bf16.mxu0 %v2551
    %2968 = vmatpush1.bf16.msra.mxu0 %v2550
    %2969 = vmatprep.subr.bf16.mxu0 %v2558
    %2970 = vmatpush1.bf16.msra.mxu0 %v2557
    %2971 = vmatprep.subr.bf16.mxu0 %v2565
    %2972 = vmatpush1.bf16.msra.mxu0 %v2564
    %2973 = vmatprep.subr.bf16.mxu0 %v2572
    %2974 = vmatpush1.bf16.msra.mxu0 %v2571
    %2975 = vmatprep.subr.bf16.mxu0 %v2579
    %2976 = vmatpush1.bf16.msra.mxu0 %v2578
    %2977 = vmatprep.subr.bf16.mxu0 %v2586
    %2978 = vmatpush1.bf16.msra.mxu0 %v2585
    %2979 = vmatprep.subr.bf16.mxu0 %v2593
    %2980 = vmatpush1.bf16.msra.mxu0 %v2592
    %2981 = vmatprep.subr.bf16.mxu0 %v2600
    %2982 = vmatpush1.bf16.msra.mxu0 %v2599
    %2983 = vmatprep.subr.bf16.mxu0 %v2607
    %2984 = vmatpush1.bf16.msra.mxu0 %v2606
    %2985 = vmatprep.subr.bf16.mxu0 %v2614
    %2986 = vmatpush1.bf16.msra.mxu0 %v2613
    %2987 = vmatprep.subr.bf16.mxu0 %v2621
    %2988 = vmatpush1.bf16.msra.mxu0 %v2620
    %2989 = vmatprep.mubr.bf16.mxu0 %v2855
    %2990 = vmatmul.mubr.bf16.gmra.mrb[0].mxu0 %v2854
    %v2991 = vpop.f32.mrb[0].mxu0
    %v2992 = vadd.f32 %v2939, %v2991
    %v2993 = vpop.f32.mrb[0].mxu0
    %v2994 = vadd.f32 %v2941, %v2993
    %v2995 = vpop.f32.mrb[0].mxu0
    %v2996 = vadd.f32 %v2943, %v2995
    %v2997 = vpop.f32.mrb[0].mxu0
    %v2998 = vadd.f32 %v2945, %v2997
    %2999 = vmatprep.mubr.bf16.mxu0 %v2863
    %3000 = vmatmul.mubr.bf16.gmra.mrb[0].mxu0 %v2862
    %v3001 = vpop.f32.mrb[0].mxu0
    %v3002 = vadd.f32 %v2949, %v3001
    %v3003 = vpop.f32.mrb[0].mxu0
    %v3004 = vadd.f32 %v2951, %v3003
    %v3005 = vpop.f32.mrb[0].mxu0
    %v3006 = vadd.f32 %v2953, %v3005
    %v3007 = vpop.f32.mrb[0].mxu0
    %v3008 = vadd.f32 %v2955, %v3007
    %3009 = vdwg.mxu0
    %3010 = vmatprep.subr.bf16.mxu0 %v2628
    %3011 = vmatpush1.bf16.msra.mxu0 %v2627
    %3012 = vmatprep.subr.bf16.mxu0 %v2635
    %3013 = vmatpush1.bf16.msra.mxu0 %v2634
    %3014 = vmatprep.subr.bf16.mxu0 %v2642
    %3015 = vmatpush1.bf16.msra.mxu0 %v2641
    %3016 = vmatprep.subr.bf16.mxu0 %v2649
    %3017 = vmatpush1.bf16.msra.mxu0 %v2648
    %3018 = vmatprep.subr.bf16.mxu0 %v2656
    %3019 = vmatpush1.bf16.msra.mxu0 %v2655
    %3020 = vmatprep.subr.bf16.mxu0 %v2663
    %3021 = vmatpush1.bf16.msra.mxu0 %v2662
    %3022 = vmatprep.subr.bf16.mxu0 %v2670
    %3023 = vmatpush1.bf16.msra.mxu0 %v2669
    %3024 = vmatprep.subr.bf16.mxu0 %v2677
    %3025 = vmatpush1.bf16.msra.mxu0 %v2676
    %3026 = vmatprep.subr.bf16.mxu0 %v2684
    %3027 = vmatpush1.bf16.msra.mxu0 %v2683
    %3028 = vmatprep.subr.bf16.mxu0 %v2691
    %3029 = vmatpush1.bf16.msra.mxu0 %v2690
    %3030 = vmatprep.subr.bf16.mxu0 %v2698
    %3031 = vmatpush1.bf16.msra.mxu0 %v2697
    %3032 = vmatprep.subr.bf16.mxu0 %v2705
    %3033 = vmatpush1.bf16.msra.mxu0 %v2704
    %3034 = vmatprep.subr.bf16.mxu0 %v2712
    %3035 = vmatpush1.bf16.msra.mxu0 %v2711
    %3036 = vmatprep.subr.bf16.mxu0 %v2719
    %3037 = vmatpush1.bf16.msra.mxu0 %v2718
    %3038 = vmatprep.subr.bf16.mxu0 %v2726
    %3039 = vmatpush1.bf16.msra.mxu0 %v2725
    %3040 = vmatprep.subr.bf16.mxu0 %v2733
    %3041 = vmatpush1.bf16.msra.mxu0 %v2732
    %3042 = vmatprep.mubr.bf16.mxu0 %v2857
    %3043 = vmatmul.mubr.bf16.gmra.mrb[0].mxu0 %v2856
    %v3044 = vpop.f32.mrb[0].mxu0
    %v3045 = vadd.f32 %v2992, %v3044
    %v3046 = vpop.f32.mrb[0].mxu0
    %v3047 = vadd.f32 %v2994, %v3046
    %v3048 = vpop.f32.mrb[0].mxu0
    %v3049 = vadd.f32 %v2996, %v3048
    %v3050 = vpop.f32.mrb[0].mxu0
    %v3051 = vadd.f32 %v2998, %v3050
    %3052 = vmatprep.mubr.bf16.mxu0 %v2865
    %3053 = vmatmul.mubr.bf16.gmra.mrb[0].mxu0 %v2864
    %v3054 = vpop.f32.mrb[0].mxu0
    %v3055 = vadd.f32 %v3002, %v3054
    %v3056 = vpop.f32.mrb[0].mxu0
    %v3057 = vadd.f32 %v3004, %v3056
    %v3058 = vpop.f32.mrb[0].mxu0
    %v3059 = vadd.f32 %v3006, %v3058
    %v3060 = vpop.f32.mrb[0].mxu0
    %v3061 = vadd.f32 %v3008, %v3060
    %3062 = vdwg.mxu0
    %3063 = vmatprep.subr.bf16.mxu0 %v2740
    %3064 = vmatpush1.bf16.msra.mxu0 %v2739
    %3065 = vmatprep.subr.bf16.mxu0 %v2747
    %3066 = vmatpush1.bf16.msra.mxu0 %v2746
    %3067 = vmatprep.subr.bf16.mxu0 %v2754
    %3068 = vmatpush1.bf16.msra.mxu0 %v2753
    %3069 = vmatprep.subr.bf16.mxu0 %v2761
    %3070 = vmatpush1.bf16.msra.mxu0 %v2760
    %3071 = vmatprep.subr.bf16.mxu0 %v2768
    %3072 = vmatpush1.bf16.msra.mxu0 %v2767
    %3073 = vmatprep.subr.bf16.mxu0 %v2775
    %3074 = vmatpush1.bf16.msra.mxu0 %v2774
    %3075 = vmatprep.subr.bf16.mxu0 %v2782
    %3076 = vmatpush1.bf16.msra.mxu0 %v2781
    %3077 = vmatprep.subr.bf16.mxu0 %v2789
    %3078 = vmatpush1.bf16.msra.mxu0 %v2788
    %3079 = vmatprep.subr.bf16.mxu0 %v2796
    %3080 = vmatpush1.bf16.msra.mxu0 %v2795
    %3081 = vmatprep.subr.bf16.mxu0 %v2803
    %3082 = vmatpush1.bf16.msra.mxu0 %v2802
    %3083 = vmatprep.subr.bf16.mxu0 %v2810
    %3084 = vmatpush1.bf16.msra.mxu0 %v2809
    %3085 = vmatprep.subr.bf16.mxu0 %v2817
    %3086 = vmatpush1.bf16.msra.mxu0 %v2816
    %3087 = vmatprep.subr.bf16.mxu0 %v2824
    %3088 = vmatpush1.bf16.msra.mxu0 %v2823
    %3089 = vmatprep.subr.bf16.mxu0 %v2831
    %3090 = vmatpush1.bf16.msra.mxu0 %v2830
    %3091 = vmatprep.subr.bf16.mxu0 %v2838
    %3092 = vmatpush1.bf16.msra.mxu0 %v2837
    %3093 = vmatprep.subr.bf16.mxu0 %v2845
    %3094 = vmatpush1.bf16.msra.mxu0 %v2844
    %3095 = vmatprep.mubr.bf16.mxu0 %v2859
    %3096 = vmatmul.mubr.bf16.gmra.mrb[0].mxu0 %v2858
    %v3097 = vpop.f32.mrb[0].mxu0
    %v3098 = vadd.f32 %v3045, %v3097
    %v3099 = vpop.f32.mrb[0].mxu0
    %v3100 = vadd.f32 %v3047, %v3099
    %v3101 = vpop.f32.mrb[0].mxu0
    %v3102 = vadd.f32 %v3049, %v3101
    %v3103 = vpop.f32.mrb[0].mxu0
    %v3104 = vadd.f32 %v3051, %v3103
    %3105 = vmatprep.mubr.bf16.mxu0 %v2867
    %3106 = vmatmul.mubr.bf16.gmra.mrb[0].mxu0 %v2866
    %v3107 = vpop.f32.mrb[0].mxu0
    %v3108 = vadd.f32 %v3055, %v3107
    %v3109 = vpop.f32.mrb[0].mxu0
    %v3110 = vadd.f32 %v3057, %v3109
    %v3111 = vpop.f32.mrb[0].mxu0
    %v3112 = vadd.f32 %v3059, %v3111
    %v3113 = vpop.f32.mrb[0].mxu0
    %v3114 = vadd.f32 %v3061, %v3113
    %3115 = vdwg.mxu0
    %3116 = vmatprep.subr.bf16.mxu0 %v2406
    %3117 = vmatpush1.bf16.msra.mxu0 %v2405
    %3118 = vmatprep.subr.bf16.mxu0 %v2413
    %3119 = vmatpush1.bf16.msra.mxu0 %v2412
    %3120 = vmatprep.subr.bf16.mxu0 %v2420
    %3121 = vmatpush1.bf16.msra.mxu0 %v2419
    %3122 = vmatprep.subr.bf16.mxu0 %v2427
    %3123 = vmatpush1.bf16.msra.mxu0 %v2426
    %3124 = vmatprep.subr.bf16.mxu0 %v2434
    %3125 = vmatpush1.bf16.msra.mxu0 %v2433
    %3126 = vmatprep.subr.bf16.mxu0 %v2441
    %3127 = vmatpush1.bf16.msra.mxu0 %v2440
    %3128 = vmatprep.subr.bf16.mxu0 %v2448
    %3129 = vmatpush1.bf16.msra.mxu0 %v2447
    %3130 = vmatprep.subr.bf16.mxu0 %v2455
    %3131 = vmatpush1.bf16.msra.mxu0 %v2454
    %3132 = vmatprep.subr.bf16.mxu0 %v2462
    %3133 = vmatpush1.bf16.msra.mxu0 %v2461
    %3134 = vmatprep.subr.bf16.mxu0 %v2469
    %3135 = vmatpush1.bf16.msra.mxu0 %v2468
    %3136 = vmatprep.subr.bf16.mxu0 %v2476
    %3137 = vmatpush1.bf16.msra.mxu0 %v2475
    %3138 = vmatprep.subr.bf16.mxu0 %v2483
    %3139 = vmatpush1.bf16.msra.mxu0 %v2482
    %3140 = vmatprep.subr.bf16.mxu0 %v2490
    %3141 = vmatpush1.bf16.msra.mxu0 %v2489
    %3142 = vmatprep.subr.bf16.mxu0 %v2497
    %3143 = vmatpush1.bf16.msra.mxu0 %v2496
    %3144 = vmatprep.subr.bf16.mxu0 %v2504
    %3145 = vmatpush1.bf16.msra.mxu0 %v2503
    %3146 = vmatprep.subr.bf16.mxu0 %v2511
    %3147 = vmatpush1.bf16.msra.mxu0 %v2510
    %3148 = vmatprep.mubr.bf16.mxu0 %v2853
    %3149 = vmatmul.mubr.bf16.gmra.mrb[0].mxu0 %v2852
    %v3150 = vpop.f32.mrb[0].mxu0
    %v3151 = vadd.f32 %v2880, %v3150
    %v3152 = vpop.f32.mrb[0].mxu0
    %v3153 = vadd.f32 %v2884, %v3152
    %v3154 = vpop.f32.mrb[0].mxu0
    %v3155 = vadd.f32 %v2880, %v3154
    %v3156 = vpop.f32.mrb[0].mxu0
    %v3157 = vadd.f32 %v2884, %v3156
    %3158 = vmatprep.mubr.bf16.mxu0 %v2861
    %3159 = vmatmul.mubr.bf16.gmra.mrb[0].mxu0 %v2860
    %v3160 = vpop.f32.mrb[0].mxu0
    %v3161 = vadd.f32 %v2880, %v3160
    %v3162 = vpop.f32.mrb[0].mxu0
    %v3163 = vadd.f32 %v2884, %v3162
    %v3164 = vpop.f32.mrb[0].mxu0
    %v3165 = vadd.f32 %v2880, %v3164
    %v3166 = vpop.f32.mrb[0].mxu0
    %v3167 = vadd.f32 %v2884, %v3166
    %3168 = vdwg.mxu0
    %3169 = vmatprep.subr.bf16.mxu0 %v2518
    %3170 = vmatpush1.bf16.msra.mxu0 %v2517
    %3171 = vmatprep.subr.bf16.mxu0 %v2525
    %3172 = vmatpush1.bf16.msra.mxu0 %v2524
    %3173 = vmatprep.subr.bf16.mxu0 %v2532
    %3174 = vmatpush1.bf16.msra.mxu0 %v2531
    %3175 = vmatprep.subr.bf16.mxu0 %v2539
    %3176 = vmatpush1.bf16.msra.mxu0 %v2538
    %3177 = vmatprep.subr.bf16.mxu0 %v2546
    %3178 = vmatpush1.bf16.msra.mxu0 %v2545
    %3179 = vmatprep.subr.bf16.mxu0 %v2553
    %3180 = vmatpush1.bf16.msra.mxu0 %v2552
    %3181 = vmatprep.subr.bf16.mxu0 %v2560
    %3182 = vmatpush1.bf16.msra.mxu0 %v2559
    %3183 = vmatprep.subr.bf16.mxu0 %v2567
    %3184 = vmatpush1.bf16.msra.mxu0 %v2566
    %3185 = vmatprep.subr.bf16.mxu0 %v2574
    %3186 = vmatpush1.bf16.msra.mxu0 %v2573
    %3187 = vmatprep.subr.bf16.mxu0 %v2581
    %3188 = vmatpush1.bf16.msra.mxu0 %v2580
    %3189 = vmatprep.subr.bf16.mxu0 %v2588
    %3190 = vmatpush1.bf16.msra.mxu0 %v2587
    %3191 = vmatprep.subr.bf16.mxu0 %v2595
    %3192 = vmatpush1.bf16.msra.mxu0 %v2594
    %3193 = vmatprep.subr.bf16.mxu0 %v2602
    %3194 = vmatpush1.bf16.msra.mxu0 %v2601
    %3195 = vmatprep.subr.bf16.mxu0 %v2609
    %3196 = vmatpush1.bf16.msra.mxu0 %v2608
    %3197 = vmatprep.subr.bf16.mxu0 %v2616
    %3198 = vmatpush1.bf16.msra.mxu0 %v2615
    %3199 = vmatprep.subr.bf16.mxu0 %v2623
    %3200 = vmatpush1.bf16.msra.mxu0 %v2622
    %3201 = vmatprep.mubr.bf16.mxu0 %v2855
    %3202 = vmatmul.mubr.bf16.gmra.mrb[0].mxu0 %v2854
    %v3203 = vpop.f32.mrb[0].mxu0
    %v3204 = vadd.f32 %v3151, %v3203
    %v3205 = vpop.f32.mrb[0].mxu0
    %v3206 = vadd.f32 %v3153, %v3205
    %v3207 = vpop.f32.mrb[0].mxu0
    %v3208 = vadd.f32 %v3155, %v3207
    %v3209 = vpop.f32.mrb[0].mxu0
    %v3210 = vadd.f32 %v3157, %v3209
    %3211 = vmatprep.mubr.bf16.mxu0 %v2863
    %3212 = vmatmul.mubr.bf16.gmra.mrb[0].mxu0 %v2862
    %v3213 = vpop.f32.mrb[0].mxu0
    %v3214 = vadd.f32 %v3161, %v3213
    %v3215 = vpop.f32.mrb[0].mxu0
    %v3216 = vadd.f32 %v3163, %v3215
    %v3217 = vpop.f32.mrb[0].mxu0
    %v3218 = vadd.f32 %v3165, %v3217
    %v3219 = vpop.f32.mrb[0].mxu0
    %v3220 = vadd.f32 %v3167, %v3219
    %3221 = vdwg.mxu0
    %3222 = vmatprep.subr.bf16.mxu0 %v2630
    %3223 = vmatpush1.bf16.msra.mxu0 %v2629
    %3224 = vmatprep.subr.bf16.mxu0 %v2637
    %3225 = vmatpush1.bf16.msra.mxu0 %v2636
    %3226 = vmatprep.subr.bf16.mxu0 %v2644
    %3227 = vmatpush1.bf16.msra.mxu0 %v2643
    %3228 = vmatprep.subr.bf16.mxu0 %v2651
    %3229 = vmatpush1.bf16.msra.mxu0 %v2650
    %3230 = vmatprep.subr.bf16.mxu0 %v2658
    %3231 = vmatpush1.bf16.msra.mxu0 %v2657
    %3232 = vmatprep.subr.bf16.mxu0 %v2665
    %3233 = vmatpush1.bf16.msra.mxu0 %v2664
    %3234 = vmatprep.subr.bf16.mxu0 %v2672
    %3235 = vmatpush1.bf16.msra.mxu0 %v2671
    %3236 = vmatprep.subr.bf16.mxu0 %v2679
    %3237 = vmatpush1.bf16.msra.mxu0 %v2678
    %3238 = vmatprep.subr.bf16.mxu0 %v2686
    %3239 = vmatpush1.bf16.msra.mxu0 %v2685
    %3240 = vmatprep.subr.bf16.mxu0 %v2693
    %3241 = vmatpush1.bf16.msra.mxu0 %v2692
    %3242 = vmatprep.subr.bf16.mxu0 %v2700
    %3243 = vmatpush1.bf16.msra.mxu0 %v2699
    %3244 = vmatprep.subr.bf16.mxu0 %v2707
    %3245 = vmatpush1.bf16.msra.mxu0 %v2706
    %3246 = vmatprep.subr.bf16.mxu0 %v2714
    %3247 = vmatpush1.bf16.msra.mxu0 %v2713
    %3248 = vmatprep.subr.bf16.mxu0 %v2721
    %3249 = vmatpush1.bf16.msra.mxu0 %v2720
    %3250 = vmatprep.subr.bf16.mxu0 %v2728
    %3251 = vmatpush1.bf16.msra.mxu0 %v2727
    %3252 = vmatprep.subr.bf16.mxu0 %v2735
    %3253 = vmatpush1.bf16.msra.mxu0 %v2734
    %3254 = vmatprep.mubr.bf16.mxu0 %v2857
    %3255 = vmatmul.mubr.bf16.gmra.mrb[0].mxu0 %v2856
    %v3256 = vpop.f32.mrb[0].mxu0
    %v3257 = vadd.f32 %v3204, %v3256
    %v3258 = vpop.f32.mrb[0].mxu0
    %v3259 = vadd.f32 %v3206, %v3258
    %v3260 = vpop.f32.mrb[0].mxu0
    %v3261 = vadd.f32 %v3208, %v3260
    %v3262 = vpop.f32.mrb[0].mxu0
    %v3263 = vadd.f32 %v3210, %v3262
    %3264 = vmatprep.mubr.bf16.mxu0 %v2865
    %3265 = vmatmul.mubr.bf16.gmra.mrb[0].mxu0 %v2864
    %v3266 = vpop.f32.mrb[0].mxu0
    %v3267 = vadd.f32 %v3214, %v3266
    %v3268 = vpop.f32.mrb[0].mxu0
    %v3269 = vadd.f32 %v3216, %v3268
    %v3270 = vpop.f32.mrb[0].mxu0
    %v3271 = vadd.f32 %v3218, %v3270
    %v3272 = vpop.f32.mrb[0].mxu0
    %v3273 = vadd.f32 %v3220, %v3272
    %3274 = vdwg.mxu0
    %3275 = vmatprep.subr.bf16.mxu0 %v2742
    %3276 = vmatpush1.bf16.msra.mxu0 %v2741
    %3277 = vmatprep.subr.bf16.mxu0 %v2749
    %3278 = vmatpush1.bf16.msra.mxu0 %v2748
    %3279 = vmatprep.subr.bf16.mxu0 %v2756
    %3280 = vmatpush1.bf16.msra.mxu0 %v2755
    %3281 = vmatprep.subr.bf16.mxu0 %v2763
    %3282 = vmatpush1.bf16.msra.mxu0 %v2762
    %3283 = vmatprep.subr.bf16.mxu0 %v2770
    %3284 = vmatpush1.bf16.msra.mxu0 %v2769
    %3285 = vmatprep.subr.bf16.mxu0 %v2777
    %3286 = vmatpush1.bf16.msra.mxu0 %v2776
    %3287 = vmatprep.subr.bf16.mxu0 %v2784
    %3288 = vmatpush1.bf16.msra.mxu0 %v2783
    %3289 = vmatprep.subr.bf16.mxu0 %v2791
    %3290 = vmatpush1.bf16.msra.mxu0 %v2790
    %3291 = vmatprep.subr.bf16.mxu0 %v2798
    %3292 = vmatpush1.bf16.msra.mxu0 %v2797
    %3293 = vmatprep.subr.bf16.mxu0 %v2805
    %3294 = vmatpush1.bf16.msra.mxu0 %v2804
    %3295 = vmatprep.subr.bf16.mxu0 %v2812
    %3296 = vmatpush1.bf16.msra.mxu0 %v2811
    %3297 = vmatprep.subr.bf16.mxu0 %v2819
    %3298 = vmatpush1.bf16.msra.mxu0 %v2818
    %3299 = vmatprep.subr.bf16.mxu0 %v2826
    %3300 = vmatpush1.bf16.msra.mxu0 %v2825
    %3301 = vmatprep.subr.bf16.mxu0 %v2833
    %3302 = vmatpush1.bf16.msra.mxu0 %v2832
    %3303 = vmatprep.subr.bf16.mxu0 %v2840
    %3304 = vmatpush1.bf16.msra.mxu0 %v2839
    %3305 = vmatprep.subr.bf16.mxu0 %v2847
    %3306 = vmatpush1.bf16.msra.mxu0 %v2846
    %3307 = vmatprep.mubr.bf16.mxu0 %v2859
    %3308 = vmatmul.mubr.bf16.gmra.mrb[0].mxu0 %v2858
    %v3309 = vpop.f32.mrb[0].mxu0
    %v3310 = vadd.f32 %v3257, %v3309
    %v3311 = vpop.f32.mrb[0].mxu0
    %v3312 = vadd.f32 %v3259, %v3311
    %v3313 = vpop.f32.mrb[0].mxu0
    %v3314 = vadd.f32 %v3261, %v3313
    %v3315 = vpop.f32.mrb[0].mxu0
    %v3316 = vadd.f32 %v3263, %v3315
    %3317 = vmatprep.mubr.bf16.mxu0 %v2867
    %3318 = vmatmul.mubr.bf16.gmra.mrb[0].mxu0 %v2866
    %v3319 = vpop.f32.mrb[0].mxu0
    %v3320 = vadd.f32 %v3267, %v3319
    %v3321 = vpop.f32.mrb[0].mxu0
    %v3322 = vadd.f32 %v3269, %v3321
    %v3323 = vpop.f32.mrb[0].mxu0
    %v3324 = vadd.f32 %v3271, %v3323
    %v3325 = vpop.f32.mrb[0].mxu0
    %v3326 = vadd.f32 %v3273, %v3325
    %3327 = vdwg.mxu0
    %3328 = vmatprep.subr.bf16.mxu0 %v2408
    %3329 = vmatpush1.bf16.msra.mxu0 %v2407
    %3330 = vmatprep.subr.bf16.mxu0 %v2415
    %3331 = vmatpush1.bf16.msra.mxu0 %v2414
    %3332 = vmatprep.subr.bf16.mxu0 %v2422
    %3333 = vmatpush1.bf16.msra.mxu0 %v2421
    %3334 = vmatprep.subr.bf16.mxu0 %v2429
    %3335 = vmatpush1.bf16.msra.mxu0 %v2428
    %3336 = vmatprep.subr.bf16.mxu0 %v2436
    %3337 = vmatpush1.bf16.msra.mxu0 %v2435
    %3338 = vmatprep.subr.bf16.mxu0 %v2443
    %3339 = vmatpush1.bf16.msra.mxu0 %v2442
    %3340 = vmatprep.subr.bf16.mxu0 %v2450
    %3341 = vmatpush1.bf16.msra.mxu0 %v2449
    %3342 = vmatprep.subr.bf16.mxu0 %v2457
    %3343 = vmatpush1.bf16.msra.mxu0 %v2456
    %3344 = vmatprep.subr.bf16.mxu0 %v2464
    %3345 = vmatpush1.bf16.msra.mxu0 %v2463
    %3346 = vmatprep.subr.bf16.mxu0 %v2471
    %3347 = vmatpush1.bf16.msra.mxu0 %v2470
    %3348 = vmatprep.subr.bf16.mxu0 %v2478
    %3349 = vmatpush1.bf16.msra.mxu0 %v2477
    %3350 = vmatprep.subr.bf16.mxu0 %v2485
    %3351 = vmatpush1.bf16.msra.mxu0 %v2484
    %3352 = vmatprep.subr.bf16.mxu0 %v2492
    %3353 = vmatpush1.bf16.msra.mxu0 %v2491
    %3354 = vmatprep.subr.bf16.mxu0 %v2499
    %3355 = vmatpush1.bf16.msra.mxu0 %v2498
    %3356 = vmatprep.subr.bf16.mxu0 %v2506
    %3357 = vmatpush1.bf16.msra.mxu0 %v2505
    %3358 = vmatprep.subr.bf16.mxu0 %v2513
    %3359 = vmatpush1.bf16.msra.mxu0 %v2512
    %3360 = vmatprep.mubr.bf16.mxu0 %v2853
    %3361 = vmatmul.mubr.bf16.gmra.mrb[0].mxu0 %v2852
    %v3362 = vpop.f32.mrb[0].mxu0
    %v3363 = vadd.f32 %v2888, %v3362
    %v3364 = vpop.f32.mrb[0].mxu0
    %v3365 = vadd.f32 %v2892, %v3364
    %v3366 = vpop.f32.mrb[0].mxu0
    %v3367 = vadd.f32 %v2888, %v3366
    %v3368 = vpop.f32.mrb[0].mxu0
    %v3369 = vadd.f32 %v2892, %v3368
    %3370 = vmatprep.mubr.bf16.mxu0 %v2861
    %3371 = vmatmul.mubr.bf16.gmra.mrb[0].mxu0 %v2860
    %v3372 = vpop.f32.mrb[0].mxu0
    %v3373 = vadd.f32 %v2888, %v3372
    %v3374 = vpop.f32.mrb[0].mxu0
    %v3375 = vadd.f32 %v2892, %v3374
    %v3376 = vpop.f32.mrb[0].mxu0
    %v3377 = vadd.f32 %v2888, %v3376
    %v3378 = vpop.f32.mrb[0].mxu0
    %v3379 = vadd.f32 %v2892, %v3378
    %3380 = vdwg.mxu0
    %3381 = vmatprep.subr.bf16.mxu0 %v2520
    %3382 = vmatpush1.bf16.msra.mxu0 %v2519
    %3383 = vmatprep.subr.bf16.mxu0 %v2527
    %3384 = vmatpush1.bf16.msra.mxu0 %v2526
    %3385 = vmatprep.subr.bf16.mxu0 %v2534
    %3386 = vmatpush1.bf16.msra.mxu0 %v2533
    %3387 = vmatprep.subr.bf16.mxu0 %v2541
    %3388 = vmatpush1.bf16.msra.mxu0 %v2540
    %3389 = vmatprep.subr.bf16.mxu0 %v2548
    %3390 = vmatpush1.bf16.msra.mxu0 %v2547
    %3391 = vmatprep.subr.bf16.mxu0 %v2555
    %3392 = vmatpush1.bf16.msra.mxu0 %v2554
    %3393 = vmatprep.subr.bf16.mxu0 %v2562
    %3394 = vmatpush1.bf16.msra.mxu0 %v2561
    %3395 = vmatprep.subr.bf16.mxu0 %v2569
    %3396 = vmatpush1.bf16.msra.mxu0 %v2568
    %3397 = vmatprep.subr.bf16.mxu0 %v2576
    %3398 = vmatpush1.bf16.msra.mxu0 %v2575
    %3399 = vmatprep.subr.bf16.mxu0 %v2583
    %3400 = vmatpush1.bf16.msra.mxu0 %v2582
    %3401 = vmatprep.subr.bf16.mxu0 %v2590
    %3402 = vmatpush1.bf16.msra.mxu0 %v2589
    %3403 = vmatprep.subr.bf16.mxu0 %v2597
    %3404 = vmatpush1.bf16.msra.mxu0 %v2596
    %3405 = vmatprep.subr.bf16.mxu0 %v2604
    %3406 = vmatpush1.bf16.msra.mxu0 %v2603
    %3407 = vmatprep.subr.bf16.mxu0 %v2611
    %3408 = vmatpush1.bf16.msra.mxu0 %v2610
    %3409 = vmatprep.subr.bf16.mxu0 %v2618
    %3410 = vmatpush1.bf16.msra.mxu0 %v2617
    %3411 = vmatprep.subr.bf16.mxu0 %v2625
    %3412 = vmatpush1.bf16.msra.mxu0 %v2624
    %3413 = vmatprep.mubr.bf16.mxu0 %v2855
    %3414 = vmatmul.mubr.bf16.gmra.mrb[0].mxu0 %v2854
    %v3415 = vpop.f32.mrb[0].mxu0
    %v3416 = vadd.f32 %v3363, %v3415
    %v3417 = vpop.f32.mrb[0].mxu0
    %v3418 = vadd.f32 %v3365, %v3417
    %v3419 = vpop.f32.mrb[0].mxu0
    %v3420 = vadd.f32 %v3367, %v3419
    %v3421 = vpop.f32.mrb[0].mxu0
    %v3422 = vadd.f32 %v3369, %v3421
    %3423 = vmatprep.mubr.bf16.mxu0 %v2863
    %3424 = vmatmul.mubr.bf16.gmra.mrb[0].mxu0 %v2862
    %v3425 = vpop.f32.mrb[0].mxu0
    %v3426 = vadd.f32 %v3373, %v3425
    %v3427 = vpop.f32.mrb[0].mxu0
    %v3428 = vadd.f32 %v3375, %v3427
    %v3429 = vpop.f32.mrb[0].mxu0
    %v3430 = vadd.f32 %v3377, %v3429
    %v3431 = vpop.f32.mrb[0].mxu0
    %v3432 = vadd.f32 %v3379, %v3431
    %3433 = vdwg.mxu0
    %3434 = vmatprep.subr.bf16.mxu0 %v2632
    %3435 = vmatpush1.bf16.msra.mxu0 %v2631
    %3436 = vmatprep.subr.bf16.mxu0 %v2639
    %3437 = vmatpush1.bf16.msra.mxu0 %v2638
    %3438 = vmatprep.subr.bf16.mxu0 %v2646
    %3439 = vmatpush1.bf16.msra.mxu0 %v2645
    %3440 = vmatprep.subr.bf16.mxu0 %v2653
    %3441 = vmatpush1.bf16.msra.mxu0 %v2652
    %3442 = vmatprep.subr.bf16.mxu0 %v2660
    %3443 = vmatpush1.bf16.msra.mxu0 %v2659
    %3444 = vmatprep.subr.bf16.mxu0 %v2667
    %3445 = vmatpush1.bf16.msra.mxu0 %v2666
    %3446 = vmatprep.subr.bf16.mxu0 %v2674
    %3447 = vmatpush1.bf16.msra.mxu0 %v2673
    %3448 = vmatprep.subr.bf16.mxu0 %v2681
    %3449 = vmatpush1.bf16.msra.mxu0 %v2680
    %3450 = vmatprep.subr.bf16.mxu0 %v2688
    %3451 = vmatpush1.bf16.msra.mxu0 %v2687
    %3452 = vmatprep.subr.bf16.mxu0 %v2695
    %3453 = vmatpush1.bf16.msra.mxu0 %v2694
    %3454 = vmatprep.subr.bf16.mxu0 %v2702
    %3455 = vmatpush1.bf16.msra.mxu0 %v2701
    %3456 = vmatprep.subr.bf16.mxu0 %v2709
    %3457 = vmatpush1.bf16.msra.mxu0 %v2708
    %3458 = vmatprep.subr.bf16.mxu0 %v2716
    %3459 = vmatpush1.bf16.msra.mxu0 %v2715
    %3460 = vmatprep.subr.bf16.mxu0 %v2723
    %3461 = vmatpush1.bf16.msra.mxu0 %v2722
    %3462 = vmatprep.subr.bf16.mxu0 %v2730
    %3463 = vmatpush1.bf16.msra.mxu0 %v2729
    %3464 = vmatprep.subr.bf16.mxu0 %v2737
    %3465 = vmatpush1.bf16.msra.mxu0 %v2736
    %3466 = vmatprep.mubr.bf16.mxu0 %v2857
    %3467 = vmatmul.mubr.bf16.gmra.mrb[0].mxu0 %v2856
    %v3468 = vpop.f32.mrb[0].mxu0
    %v3469 = vadd.f32 %v3416, %v3468
    %v3470 = vpop.f32.mrb[0].mxu0
    %v3471 = vadd.f32 %v3418, %v3470
    %v3472 = vpop.f32.mrb[0].mxu0
    %v3473 = vadd.f32 %v3420, %v3472
    %v3474 = vpop.f32.mrb[0].mxu0
    %v3475 = vadd.f32 %v3422, %v3474
    %3476 = vmatprep.mubr.bf16.mxu0 %v2865
    %3477 = vmatmul.mubr.bf16.gmra.mrb[0].mxu0 %v2864
    %v3478 = vpop.f32.mrb[0].mxu0
    %v3479 = vadd.f32 %v3426, %v3478
    %v3480 = vpop.f32.mrb[0].mxu0
    %v3481 = vadd.f32 %v3428, %v3480
    %v3482 = vpop.f32.mrb[0].mxu0
    %v3483 = vadd.f32 %v3430, %v3482
    %v3484 = vpop.f32.mrb[0].mxu0
    %v3485 = vadd.f32 %v3432, %v3484
    %3486 = vdwg.mxu0
    %3487 = vmatprep.subr.bf16.mxu0 %v2744
    %3488 = vmatpush1.bf16.msra.mxu0 %v2743
    %3489 = vmatprep.subr.bf16.mxu0 %v2751
    %3490 = vmatpush1.bf16.msra.mxu0 %v2750
    %3491 = vmatprep.subr.bf16.mxu0 %v2758
    %3492 = vmatpush1.bf16.msra.mxu0 %v2757
    %3493 = vmatprep.subr.bf16.mxu0 %v2765
    %3494 = vmatpush1.bf16.msra.mxu0 %v2764
    %3495 = vmatprep.subr.bf16.mxu0 %v2772
    %3496 = vmatpush1.bf16.msra.mxu0 %v2771
    %3497 = vmatprep.subr.bf16.mxu0 %v2779
    %3498 = vmatpush1.bf16.msra.mxu0 %v2778
    %3499 = vmatprep.subr.bf16.mxu0 %v2786
    %3500 = vmatpush1.bf16.msra.mxu0 %v2785
    %3501 = vmatprep.subr.bf16.mxu0 %v2793
    %3502 = vmatpush1.bf16.msra.mxu0 %v2792
    %3503 = vmatprep.subr.bf16.mxu0 %v2800
    %3504 = vmatpush1.bf16.msra.mxu0 %v2799
    %3505 = vmatprep.subr.bf16.mxu0 %v2807
    %3506 = vmatpush1.bf16.msra.mxu0 %v2806
    %3507 = vmatprep.subr.bf16.mxu0 %v2814
    %3508 = vmatpush1.bf16.msra.mxu0 %v2813
    %3509 = vmatprep.subr.bf16.mxu0 %v2821
    %3510 = vmatpush1.bf16.msra.mxu0 %v2820
    %3511 = vmatprep.subr.bf16.mxu0 %v2828
    %3512 = vmatpush1.bf16.msra.mxu0 %v2827
    %3513 = vmatprep.subr.bf16.mxu0 %v2835
    %3514 = vmatpush1.bf16.msra.mxu0 %v2834
    %3515 = vmatprep.subr.bf16.mxu0 %v2842
    %3516 = vmatpush1.bf16.msra.mxu0 %v2841
    %3517 = vmatprep.subr.bf16.mxu0 %v2849
    %3518 = vmatpush1.bf16.msra.mxu0 %v2848
    %3519 = vmatprep.mubr.bf16.mxu0 %v2859
    %3520 = vmatmul.mubr.bf16.gmra.mrb[0].mxu0 %v2858
    %v3521 = vpop.f32.mrb[0].mxu0
    %v3522 = vadd.f32 %v3469, %v3521
    %v3523 = vpop.f32.mrb[0].mxu0
    %v3524 = vadd.f32 %v3471, %v3523
    %v3525 = vpop.f32.mrb[0].mxu0
    %v3526 = vadd.f32 %v3473, %v3525
    %v3527 = vpop.f32.mrb[0].mxu0
    %v3528 = vadd.f32 %v3475, %v3527
    %3529 = vmatprep.mubr.bf16.mxu0 %v2867
    %3530 = vmatmul.mubr.bf16.gmra.mrb[0].mxu0 %v2866
    %v3531 = vpop.f32.mrb[0].mxu0
    %v3532 = vadd.f32 %v3479, %v3531
    %v3533 = vpop.f32.mrb[0].mxu0
    %v3534 = vadd.f32 %v3481, %v3533
    %v3535 = vpop.f32.mrb[0].mxu0
    %v3536 = vadd.f32 %v3483, %v3535
    %v3537 = vpop.f32.mrb[0].mxu0
    %v3538 = vadd.f32 %v3485, %v3537
    %3539 = vdwg.mxu0
    %3540 = vmatprep.subr.bf16.mxu0 0
    %3541 = vmatpush1.bf16.msra.mxu0 %v2409
    %3542 = vmatprep.subr.bf16.mxu0 0
    %3543 = vmatpush1.bf16.msra.mxu0 %v2416
    %3544 = vmatprep.subr.bf16.mxu0 0
    %3545 = vmatpush1.bf16.msra.mxu0 %v2423
    %3546 = vmatprep.subr.bf16.mxu0 0
    %3547 = vmatpush1.bf16.msra.mxu0 %v2430
    %3548 = vmatprep.subr.bf16.mxu0 0
    %3549 = vmatpush1.bf16.msra.mxu0 %v2437
    %3550 = vmatprep.subr.bf16.mxu0 0
    %3551 = vmatpush1.bf16.msra.mxu0 %v2444
    %3552 = vmatprep.subr.bf16.mxu0 0
    %3553 = vmatpush1.bf16.msra.mxu0 %v2451
    %3554 = vmatprep.subr.bf16.mxu0 0
    %3555 = vmatpush1.bf16.msra.mxu0 %v2458
    %3556 = vmatprep.subr.bf16.mxu0 0
    %3557 = vmatpush1.bf16.msra.mxu0 %v2465
    %3558 = vmatprep.subr.bf16.mxu0 0
    %3559 = vmatpush1.bf16.msra.mxu0 %v2472
    %3560 = vmatprep.subr.bf16.mxu0 0
    %3561 = vmatpush1.bf16.msra.mxu0 %v2479
    %3562 = vmatprep.subr.bf16.mxu0 0
    %3563 = vmatpush1.bf16.msra.mxu0 %v2486
    %3564 = vmatprep.subr.bf16.mxu0 0
    %3565 = vmatpush1.bf16.msra.mxu0 %v2493
    %3566 = vmatprep.subr.bf16.mxu0 0
    %3567 = vmatpush1.bf16.msra.mxu0 %v2500
    %3568 = vmatprep.subr.bf16.mxu0 0
    %3569 = vmatpush1.bf16.msra.mxu0 %v2507
    %3570 = vmatprep.subr.bf16.mxu0 0
    %3571 = vmatpush1.bf16.msra.mxu0 %v2514
    %3572 = vmatprep.mubr.bf16.mxu0 %v2853
    %3573 = vmatmul.mubr.bf16.gmra.mrb[0].mxu0 %v2852
    %v3574 = vpop.f32.mrb[0].mxu0
    %v3575 = vadd.f32 %v2896, %v3574
    %v3576 = vpop.f32.mrb[0].mxu0
    %v3577 = vpop.f32.mrb[0].mxu0
    %v3578 = vadd.f32 %v2896, %v3577
    %v3579 = vpop.f32.mrb[0].mxu0
    %3580 = vmatprep.mubr.bf16.mxu0 %v2861
    %3581 = vmatmul.mubr.bf16.gmra.mrb[0].mxu0 %v2860
    %v3582 = vpop.f32.mrb[0].mxu0
    %v3583 = vadd.f32 %v2896, %v3582
    %v3584 = vpop.f32.mrb[0].mxu0
    %v3585 = vpop.f32.mrb[0].mxu0
    %v3586 = vadd.f32 %v2896, %v3585
    %v3587 = vpop.f32.mrb[0].mxu0
    %3588 = vdwg.mxu0
    %3589 = vmatprep.subr.bf16.mxu0 0
    %3590 = vmatpush1.bf16.msra.mxu0 %v2521
    %3591 = vmatprep.subr.bf16.mxu0 0
    %3592 = vmatpush1.bf16.msra.mxu0 %v2528
    %3593 = vmatprep.subr.bf16.mxu0 0
    %3594 = vmatpush1.bf16.msra.mxu0 %v2535
    %3595 = vmatprep.subr.bf16.mxu0 0
    %3596 = vmatpush1.bf16.msra.mxu0 %v2542
    %3597 = vmatprep.subr.bf16.mxu0 0
    %3598 = vmatpush1.bf16.msra.mxu0 %v2549
    %3599 = vmatprep.subr.bf16.mxu0 0
    %3600 = vmatpush1.bf16.msra.mxu0 %v2556
    %3601 = vmatprep.subr.bf16.mxu0 0
    %3602 = vmatpush1.bf16.msra.mxu0 %v2563
    %3603 = vmatprep.subr.bf16.mxu0 0
    %3604 = vmatpush1.bf16.msra.mxu0 %v2570
    %3605 = vmatprep.subr.bf16.mxu0 0
    %3606 = vmatpush1.bf16.msra.mxu0 %v2577
    %3607 = vmatprep.subr.bf16.mxu0 0
    %3608 = vmatpush1.bf16.msra.mxu0 %v2584
    %3609 = vmatprep.subr.bf16.mxu0 0
    %3610 = vmatpush1.bf16.msra.mxu0 %v2591
    %3611 = vmatprep.subr.bf16.mxu0 0
    %3612 = vmatpush1.bf16.msra.mxu0 %v2598
    %3613 = vmatprep.subr.bf16.mxu0 0
    %3614 = vmatpush1.bf16.msra.mxu0 %v2605
    %3615 = vmatprep.subr.bf16.mxu0 0
    %3616 = vmatpush1.bf16.msra.mxu0 %v2612
    %3617 = vmatprep.subr.bf16.mxu0 0
    %3618 = vmatpush1.bf16.msra.mxu0 %v2619
    %3619 = vmatprep.subr.bf16.mxu0 0
    %3620 = vmatpush1.bf16.msra.mxu0 %v2626
    %3621 = vmatprep.mubr.bf16.mxu0 %v2855
    %3622 = vmatmul.mubr.bf16.gmra.mrb[0].mxu0 %v2854
    %v3623 = vpop.f32.mrb[0].mxu0
    %v3624 = vadd.f32 %v3575, %v3623
    %v3625 = vpop.f32.mrb[0].mxu0
    %v3626 = vpop.f32.mrb[0].mxu0
    %v3627 = vadd.f32 %v3578, %v3626
    %v3628 = vpop.f32.mrb[0].mxu0
    %3629 = vmatprep.mubr.bf16.mxu0 %v2863
    %3630 = vmatmul.mubr.bf16.gmra.mrb[0].mxu0 %v2862
    %v3631 = vpop.f32.mrb[0].mxu0
    %v3632 = vadd.f32 %v3583, %v3631
    %v3633 = vpop.f32.mrb[0].mxu0
    %v3634 = vpop.f32.mrb[0].mxu0
    %v3635 = vadd.f32 %v3586, %v3634
    %v3636 = vpop.f32.mrb[0].mxu0
    %3637 = vdwg.mxu0
    %3638 = vmatprep.subr.bf16.mxu0 0
    %3639 = vmatpush1.bf16.msra.mxu0 %v2633
    %3640 = vmatprep.subr.bf16.mxu0 0
    %3641 = vmatpush1.bf16.msra.mxu0 %v2640
    %3642 = vmatprep.subr.bf16.mxu0 0
    %3643 = vmatpush1.bf16.msra.mxu0 %v2647
    %3644 = vmatprep.subr.bf16.mxu0 0
    %3645 = vmatpush1.bf16.msra.mxu0 %v2654
    %3646 = vmatprep.subr.bf16.mxu0 0
    %3647 = vmatpush1.bf16.msra.mxu0 %v2661
    %3648 = vmatprep.subr.bf16.mxu0 0
    %3649 = vmatpush1.bf16.msra.mxu0 %v2668
    %3650 = vmatprep.subr.bf16.mxu0 0
    %3651 = vmatpush1.bf16.msra.mxu0 %v2675
    %3652 = vmatprep.subr.bf16.mxu0 0
    %3653 = vmatpush1.bf16.msra.mxu0 %v2682
    %3654 = vmatprep.subr.bf16.mxu0 0
    %3655 = vmatpush1.bf16.msra.mxu0 %v2689
    %3656 = vmatprep.subr.bf16.mxu0 0
    %3657 = vmatpush1.bf16.msra.mxu0 %v2696
    %3658 = vmatprep.subr.bf16.mxu0 0
    %3659 = vmatpush1.bf16.msra.mxu0 %v2703
    %3660 = vmatprep.subr.bf16.mxu0 0
    %3661 = vmatpush1.bf16.msra.mxu0 %v2710
    %3662 = vmatprep.subr.bf16.mxu0 0
    %3663 = vmatpush1.bf16.msra.mxu0 %v2717
    %3664 = vmatprep.subr.bf16.mxu0 0
    %3665 = vmatpush1.bf16.msra.mxu0 %v2724
    %3666 = vmatprep.subr.bf16.mxu0 0
    %3667 = vmatpush1.bf16.msra.mxu0 %v2731
    %3668 = vmatprep.subr.bf16.mxu0 0
    %3669 = vmatpush1.bf16.msra.mxu0 %v2738
    %3670 = vmatprep.mubr.bf16.mxu0 %v2857
    %3671 = vmatmul.mubr.bf16.gmra.mrb[0].mxu0 %v2856
    %v3672 = vpop.f32.mrb[0].mxu0
    %v3673 = vadd.f32 %v3624, %v3672
    %v3674 = vpop.f32.mrb[0].mxu0
    %v3675 = vpop.f32.mrb[0].mxu0
    %v3676 = vadd.f32 %v3627, %v3675
    %v3677 = vpop.f32.mrb[0].mxu0
    %3678 = vmatprep.mubr.bf16.mxu0 %v2865
    %3679 = vmatmul.mubr.bf16.gmra.mrb[0].mxu0 %v2864
    %v3680 = vpop.f32.mrb[0].mxu0
    %v3681 = vadd.f32 %v3632, %v3680
    %v3682 = vpop.f32.mrb[0].mxu0
    %v3683 = vpop.f32.mrb[0].mxu0
    %v3684 = vadd.f32 %v3635, %v3683
    %v3685 = vpop.f32.mrb[0].mxu0
    %3686 = vdwg.mxu0
    %3687 = vmatprep.subr.bf16.mxu0 0
    %3688 = vmatpush1.bf16.msra.mxu0 %v2745
    %3689 = vmatprep.subr.bf16.mxu0 0
    %3690 = vmatpush1.bf16.msra.mxu0 %v2752
    %3691 = vmatprep.subr.bf16.mxu0 0
    %3692 = vmatpush1.bf16.msra.mxu0 %v2759
    %3693 = vmatprep.subr.bf16.mxu0 0
    %3694 = vmatpush1.bf16.msra.mxu0 %v2766
    %3695 = vmatprep.subr.bf16.mxu0 0
    %3696 = vmatpush1.bf16.msra.mxu0 %v2773
    %3697 = vmatprep.subr.bf16.mxu0 0
    %3698 = vmatpush1.bf16.msra.mxu0 %v2780
    %3699 = vmatprep.subr.bf16.mxu0 0
    %3700 = vmatpush1.bf16.msra.mxu0 %v2787
    %3701 = vmatprep.subr.bf16.mxu0 0
    %3702 = vmatpush1.bf16.msra.mxu0 %v2794
    %3703 = vmatprep.subr.bf16.mxu0 0
    %3704 = vmatpush1.bf16.msra.mxu0 %v2801
    %3705 = vmatprep.subr.bf16.mxu0 0
    %3706 = vmatpush1.bf16.msra.mxu0 %v2808
    %3707 = vmatprep.subr.bf16.mxu0 0
    %3708 = vmatpush1.bf16.msra.mxu0 %v2815
    %3709 = vmatprep.subr.bf16.mxu0 0
    %3710 = vmatpush1.bf16.msra.mxu0 %v2822
    %3711 = vmatprep.subr.bf16.mxu0 0
    %3712 = vmatpush1.bf16.msra.mxu0 %v2829
    %3713 = vmatprep.subr.bf16.mxu0 0
    %3714 = vmatpush1.bf16.msra.mxu0 %v2836
    %3715 = vmatprep.subr.bf16.mxu0 0
    %3716 = vmatpush1.bf16.msra.mxu0 %v2843
    %3717 = vmatprep.subr.bf16.mxu0 0
    %3718 = vmatpush1.bf16.msra.mxu0 %v2850
    %3719 = vmatprep.mubr.bf16.mxu0 %v2859
    %3720 = vmatmul.mubr.bf16.gmra.mrb[0].mxu0 %v2858
    %v3721 = vpop.f32.mrb[0].mxu0
    %v3722 = vadd.f32 %v3673, %v3721
    %v3723 = vpop.f32.mrb[0].mxu0
    %v3724 = vpop.f32.mrb[0].mxu0
    %v3725 = vadd.f32 %v3676, %v3724
    %v3726 = vpop.f32.mrb[0].mxu0
    %3727 = vmatprep.mubr.bf16.mxu0 %v2867
    %3728 = vmatmul.mubr.bf16.gmra.mrb[0].mxu0 %v2866
    %v3729 = vpop.f32.mrb[0].mxu0
    %v3730 = vadd.f32 %v3681, %v3729
    %v3731 = vpop.f32.mrb[0].mxu0
    %v3732 = vpop.f32.mrb[0].mxu0
    %v3733 = vadd.f32 %v3684, %v3732
    %v3734 = vpop.f32.mrb[0].mxu0
    %3735 = vdwg.mxu0
    %v3736 = vtanh.pop %v3098
    %v3737 = vtanh.pop %v3100
    %v3738 = vtanh.pop %v3310
    %v3739 = vtanh.pop %v3312
    %v3740 = vtanh.pop %v3522
    %v3741 = vtanh.pop %v3524
    %v3742 = vtanh.pop %v3722
    %v3743 = vtanh.pop %v3102
    %v3744 = vtanh.pop %v3104
    %v3745 = vtanh.pop %v3314
    %v3746 = vtanh.pop %v3316
    %v3747 = vtanh.pop %v3526
    %v3748 = vtanh.pop %v3528
    %v3749 = vtanh.pop %v3725
    %v3750 = vtanh.pop %v3108
    %v3751 = vtanh.pop %v3110
    %v3752 = vtanh.pop %v3320
    %v3753 = vtanh.pop %v3322
    %v3754 = vtanh.pop %v3532
    %v3755 = vtanh.pop %v3534
    %v3756 = vtanh.pop %v3730
    %v3757 = vtanh.pop %v3112
    %v3758 = vtanh.pop %v3114
    %v3759 = vtanh.pop %v3324
    %v3760 = vtanh.pop %v3326
    %v3761 = vtanh.pop %v3536
    %v3762 = vtanh.pop %v3538
    %v3763 = vtanh.pop %v3733
    %3764 = vst [vmem:[#allocation28] sm:$0xff] %v3736
    %3765 = vst [vmem:[#allocation28 + $0x8] sm:$0xff] %v3737
    %3766 = vst [vmem:[#allocation28 + $0x10] sm:$0xff] %v3738
    %3767 = vst [vmem:[#allocation28 + $0x18] sm:$0xff] %v3739
    %3768 = vst [vmem:[#allocation28 + $0x20] sm:$0xff] %v3740
    %3769 = vst [vmem:[#allocation28 + $0x28] sm:$0xff] %v3741
    %3770 = vst [vmem:[#allocation28 + $0x30] sm:$0xff] %v3742
    %3771 = vst [vmem:[#allocation28 + $0x38] sm:$0xff] %v3743
    %3772 = vst [vmem:[#allocation28 + $0x40] sm:$0xff] %v3744
    %3773 = vst [vmem:[#allocation28 + $0x48] sm:$0xff] %v3745
    %3774 = vst [vmem:[#allocation28 + $0x50] sm:$0xff] %v3746
    %3775 = vst [vmem:[#allocation28 + $0x58] sm:$0xff] %v3747
    %3776 = vst [vmem:[#allocation28 + $0x60] sm:$0xff] %v3748
    %3777 = vst [vmem:[#allocation28 + $0x68] sm:$0xff] %v3749
    %3778 = vst [vmem:[#allocation28 + $0x70] sm:$0xff] %v3750
    %3779 = vst [vmem:[#allocation28 + $0x78] sm:$0xff] %v3751
    %3780 = vst [vmem:[#allocation28 + $0x80] sm:$0xff] %v3752
    %3781 = vst [vmem:[#allocation28 + $0x88] sm:$0xff] %v3753
    %3782 = vst [vmem:[#allocation28 + $0x90] sm:$0xff] %v3754
    %3783 = vst [vmem:[#allocation28 + $0x98] sm:$0xff] %v3755
    %3784 = vst [vmem:[#allocation28 + $0xa0] sm:$0xff] %v3756
    %3785 = vst [vmem:[#allocation28 + $0xa8] sm:$0xff] %v3757
    %3786 = vst [vmem:[#allocation28 + $0xb0] sm:$0xff] %v3758
    %3787 = vst [vmem:[#allocation28 + $0xb8] sm:$0xff] %v3759
    %3788 = vst [vmem:[#allocation28 + $0xc0] sm:$0xff] %v3760
    %3789 = vst [vmem:[#allocation28 + $0xc8] sm:$0xff] %v3761
    %3790 = vst [vmem:[#allocation28 + $0xd0] sm:$0xff] %v3762
    %3791 = vst [vmem:[#allocation28 + $0xd8] sm:$0xff] %v3763
    // Predicated region
    $region102: #{tpu_custom_call.1} parent=1 // pred_check
      _
    $region103: #{tpu_custom_call.1} parent=1 // pred_check_branch
      %3793 = sbr.rel (0) target = $region105
    $region104: #{tpu_custom_call.1} parent=1 // pred_region
      %s3795 = ssub.s32 3584, 3584
      %3796 = vsyncadd [#allocation10], %s3795
      %s3797 = sshll.u32 [#allocation28], 4
      %s3798 = int_to_ptr.vmem [resolvable:$true] %s3797
      %3803 = dma.vmem_to_hbm [thread:$0]  %s3798, 3584, %s17, [#allocation10], 896, 896, 56
    $region105: #{tpu_custom_call.1} parent=1 // pred_fallthru
      _
    // Predicated region
    $region106: #{tpu_custom_call.1} parent=1 // pred_check
      _
    $region107: #{tpu_custom_call.1} parent=1 // pred_check_branch
      %3805 = sbr.rel (0) target = $region109
    $region108: #{tpu_custom_call.1} parent=1 // pred_region
      %3806 = dma.done [#allocation10], 3584
    $region109: #{tpu_custom_call.1} parent=1 // pred_fallthru
      _
    %3807 = vsyncpa [#allocation9], 1
    %3808 = vsyncpa [#allocation12], 1
    %3809 = vsyncpa [#allocation15], 1
    %3810 = vsyncpa [#allocation18], 1
    %3811 = vsyncpa [#allocation21], 1
    %3812 = vsyncpa [#allocation24], 1
    %3813 = vsyncpa [#allocation27], 1
    %3814 = vsyncpa [#allocation10], 1
  %3815 = vsyncmov [#allocation7]
  %s3816 = vpop.sfrf %3815
  %p3817 = scmp.eq.s32.totalorder %s3816, 0
  %p3818 = pneg %p3817
  %3820 = shalt.err (%p3818)
  %s3821 = scalar_lea.sflag [#allocation7], 1
  %3822 = vsyncmov %s3821
  %s3823 = vpop.sfrf %3822
  %p3824 = scmp.eq.s32.totalorder %s3823, 0
  %p3825 = pneg %p3824
  %3827 = shalt.err (%p3825)
  %s3828 = scalar_lea.sflag [#allocation7], 2
  %3829 = vsyncmov %s3828
  %s3830 = vpop.sfrf %3829
  %p3831 = scmp.eq.s32.totalorder %s3830, 0
  %p3832 = pneg %p3831
  %3834 = shalt.err (%p3832)
  %s3835 = scalar_lea.sflag [#allocation7], 3
  %3836 = vsyncmov %s3835
  %s3837 = vpop.sfrf %3836
  %p3838 = scmp.eq.s32.totalorder %s3837, 0
  %p3839 = pneg %p3838
  %3841 = shalt.err (%p3839)
  %s3842 = scalar_lea.sflag [#allocation7], 4
  %3843 = vsyncmov %s3842
  %s3844 = vpop.sfrf %3843
  %p3845 = scmp.eq.s32.totalorder %s3844, 0
  %p3846 = pneg %p3845
  %3848 = shalt.err (%p3846)

</llo_original>
